<compile_context>
chip_gen: v7x
topology: tpu7x:2x2x1
jax: 0.10.0
libtpu: 0.0.40
codegen_flags: <defaults>
</compile_context>

<pallas_src>
import math

import jax
import jax.numpy as jnp
from jax.experimental import pallas as pl
from jax.experimental.pallas import tpu as pltpu


def _round_up(x, m):
    return ((x + m - 1) // m) * m


def _num_tensorcores():
    # Best-effort query; default 1 (=> never split small N into extra serial
    # grid steps on single-core v5e/v6e). On v7x this may report 2, in which
    # case large N is split so dimension_semantics=("parallel",) can shard
    # rows across both TensorCores.
    try:
        dev = jax.devices()[0]
        for attr in ("num_cores", "core_count"):
            n = getattr(dev, attr, None)
            if isinstance(n, int) and n > 0:
                return n
    except Exception:
        pass
    return 1


def _vmem_limit_bytes(est_bytes):
    try:
        cap = int(pltpu.get_tpu_info().vmem_capacity_bytes)
    except Exception:
        cap = 64 << 20  # conservative: v7x physical VMEM per TensorCore
    ceiling = (cap * 3) // 4          # leave ~25% headroom for compiler scratch
    limit = min(ceiling, max(32 << 20, 2 * est_bytes))
    return int(max(limit, 8 << 20))


def mlp_kernel(x_ref, w1_ref, b1_ref, w2_ref, b2_ref, w3_ref, b3_ref,
               g_ref, beta_ref, o_ref):
    # Lane-dense orientation: activations are [features, tile_n]; the row/node
    # dimension sits on the 128-lane axis, features on sublanes.
    f32 = jnp.float32
    # Layer 1: Linear + ReLU   (W1 [hid,in] @ X [in,tile_n] on the MXU)
    h = jnp.dot(w1_ref[...], x_ref[...], preferred_element_type=f32)
    h = jnp.maximum(h + b1_ref[...], 0.0)
    # Layer 2: Linear + ReLU   (cast activations to the streamed MXU dtype)
    h = jnp.dot(w2_ref[...], h.astype(w2_ref.dtype), preferred_element_type=f32)
    h = jnp.maximum(h + b2_ref[...], 0.0)
    # Layer 3: Linear (no ReLU)
    h = jnp.dot(w3_ref[...], h.astype(w3_ref.dtype), preferred_element_type=f32)
    h = h + b3_ref[...]

    # LayerNorm over the feature axis (axis 0 = sublanes), eps=1e-5.
    # Two-pass (centered) variance; all statistics stay per-column so padded
    # columns of a partial last block never contaminate valid ones.
    inv_f = 1.0 / h.shape[0]
    mean = jnp.sum(h, axis=0, keepdims=True) * inv_f          # [1, tile_n]
    c = h - mean
    var = jnp.sum(c * c, axis=0, keepdims=True) * inv_f       # [1, tile_n]
    scale = jax.lax.rsqrt(var + 1e-5)                         # [1, tile_n]
    o_ref[...] = (c * scale * g_ref[...] + beta_ref[...]).astype(o_ref.dtype)


def mlp_forward_t(x_t, w1, b1, w2, b2, w3, b3, gamma, beta, *,
                  tile_n=4096, stream_dtype=jnp.float32):
    """Lane-dense core. x_t: [in_size, N] (features, rows). Returns [out_size, N] f32.

    Weights are PyTorch-native [out_features, in_features]; biases / LN params 1-D.
    """
    in_size, N = x_t.shape
    hid_size = w1.shape[0]
    out_size = w3.shape[0]

    # --- tile sizing -------------------------------------------------------
    tile_n = max(128, min(_round_up(tile_n, 128), _round_up(N, 128)))
    cores = _num_tensorcores()
    if cores > 1:
        per_core = _round_up(pl.cdiv(N, cores), 128)
        if per_core >= 512:                    # only split when tiles stay big
            tile_n = min(tile_n, per_core)
    grid = (pl.cdiv(N, tile_n),)               # partial last block handled by Pallas

    # --- operand dtypes ----------------------------------------------------
    sdt = jnp.dtype(stream_dtype)
    x_t = x_t.astype(sdt)
    w1s, w2s, w3s = (jnp.asarray(w, sdt) for w in (w1, w2, w3))
    # biases / LN params stay f32 ([feat, 1]: broadcast along the lane axis)
    b1c = jnp.asarray(b1, jnp.float32).reshape(-1, 1)
    b2c = jnp.asarray(b2, jnp.float32).reshape(-1, 1)
    b3c = jnp.asarray(b3, jnp.float32).reshape(-1, 1)
    gc = jnp.asarray(gamma, jnp.float32).reshape(-1, 1)
    betac = jnp.asarray(beta, jnp.float32).reshape(-1, 1)

    # --- VMEM budget -------------------------------------------------------
    est = (2 * in_size * tile_n * sdt.itemsize          # x blocks (double-buffered)
           + 2 * out_size * tile_n * 4                  # out blocks (double-buffered)
           + 4 * hid_size * tile_n * 4                  # live f32 activations
           + 2 * sdt.itemsize * (hid_size * in_size + hid_size * hid_size
                                 + out_size * hid_size)
           + 2 * 4 * (2 * hid_size + 3 * out_size))
    vmem_limit = _vmem_limit_bytes(est)

    # --- specs -------------------------------------------------------------
    def stream_spec(feat):
        return pl.BlockSpec((feat, tile_n), lambda i: (0, i))

    def const_spec(shape):
        # Grid-invariant operands (weights / biases / LN params) stay resident.
        return pl.BlockSpec(shape, lambda i: (0, 0))

    out_t = pl.pallas_call(
        mlp_kernel,
        out_shape=jax.ShapeDtypeStruct((out_size, N), jnp.float32),
        grid_spec=pltpu.PrefetchScalarGridSpec(
            num_scalar_prefetch=0,
            grid=grid,
            in_specs=[
                stream_spec(in_size),                 # x tile  [in, tile_n]
                const_spec((hid_size, in_size)),      # w1
                const_spec((hid_size, 1)),            # b1
                const_spec((hid_size, hid_size)),     # w2
                const_spec((hid_size, 1)),            # b2
                const_spec((out_size, hid_size)),     # w3
                const_spec((out_size, 1)),            # b3
                const_spec((out_size, 1)),            # gamma
                const_spec((out_size, 1)),            # beta
            ],
            out_specs=stream_spec(out_size),          # [out, tile_n] lane-dense
        ),
        compiler_params=pltpu.CompilerParams(
            dimension_semantics=("parallel",),
            vmem_limit_bytes=vmem_limit),
    )(x_t, w1s, b1c, w2s, b2c, w3s, b3c, gc, betac)
    return out_t


def mlp_forward(x, *params, tile_n=4096, stream_dtype=jnp.float32):
    """Drop-in PyTorch layout: x [N, in_size] -> [N, out_size] (f32).

    The transposes are layout plumbing only; producers that can already emit a
    feature-major [in_size, N] slab should call mlp_forward_t directly.
    """
    out_t = mlp_forward_t(x.T, *params, tile_n=tile_n, stream_dtype=stream_dtype)
    return out_t.T


def make_params(key, input_size, hidden_size, output_size):
    """Deterministic params matching MLP.reset_parameters() (PyTorch layout)."""
    k1, k2, k3 = jax.random.split(key, 3)
    w1 = jax.random.normal(k1, (hidden_size, input_size), jnp.float32) / math.sqrt(input_size)
    w2 = jax.random.normal(k2, (hidden_size, hidden_size), jnp.float32) / math.sqrt(hidden_size)
    w3 = jax.random.normal(k3, (output_size, hidden_size), jnp.float32) / math.sqrt(hidden_size)
    b1 = jnp.zeros((hidden_size,), jnp.float32)
    b2 = jnp.zeros((hidden_size,), jnp.float32)
    b3 = jnp.zeros((output_size,), jnp.float32)
    gamma = jnp.ones((output_size,), jnp.float32)
    beta = jnp.zeros((output_size,), jnp.float32)
    return w1, b1, w2, b2, w3, b3, gamma, beta


def mlp_reference(x, w1, b1, w2, b2, w3, b3, gamma, beta, *, stream_dtype=jnp.float32):
    """Pure-JAX reference (PyTorch math: x @ W.T + b, LayerNorm eps=1e-5)."""
    sdt = jnp.dtype(stream_dtype)

    def lin(h, w, b):
        return jnp.dot(h.astype(sdt), w.T.astype(sdt),
                       preferred_element_type=jnp.float32) + b

    h = jnp.maximum(lin(x, w1, b1), 0.0)
    h = jnp.maximum(lin(h, w2, b2), 0.0)
    h = lin(h, w3, b3)
    mean = jnp.mean(h, axis=-1, keepdims=True)
    c = h - mean
    var = jnp.mean(c * c, axis=-1, keepdims=True)
    return c * jax.lax.rsqrt(var + 1e-5) * gamma + beta


if __name__ == "__main__":
    # MLP(input=16, hidden=32, output=32, layers=3, layernorm=True).
    input_size, hidden_size, output_size = 16, 32, 32

    key = jax.random.PRNGKey(0)
    kx, kp = jax.random.split(key)

    # Exact reset_parameters() params, plus a perturbed set to exercise the
    # bias / LayerNorm-affine broadcast path ([feat, 1] over the lane axis).
    w1, b1, w2, b2, w3, b3, g, bt = make_params(kp, input_size, hidden_size, output_size)
    kb = jax.random.split(jax.random.fold_in(kp, 1), 5)
    params_list = [
        (w1, b1, w2, b2, w3, b3, g, bt),
        (w1,
         b1 + 0.1 * jax.random.normal(kb[0], b1.shape, jnp.float32),
         w2,
         b2 + 0.1 * jax.random.normal(kb[1], b2.shape, jnp.float32),
         w3,
         b3 + 0.1 * jax.random.normal(kb[2], b3.shape, jnp.float32),
         g + 0.1 * jax.random.normal(kb[3], g.shape, jnp.float32),
         bt + 0.1 * jax.random.normal(kb[4], bt.shape, jnp.float32)),
    ]

    ok = True
    # f32 streaming: large N (single big lane-dense tile / multi-step on v7x)
    # and a ragged N (partial last block, no pad/slice copies).
    for params in params_list:
        for N in (2048, 100):
            x = jax.random.normal(jax.random.fold_in(kx, N), (N, input_size), jnp.float32)
            out = jax.block_until_ready(mlp_forward(x, *params))
            ref = mlp_reference(x, *params)
            ok &= out.shape == (N, output_size)
            ok &= bool(jnp.allclose(out, ref, atol=2e-3, rtol=2e-3))

    # bf16 streaming path (halved HBM traffic on v6e/v7x; f32 accumulation,
    # f32 elementwise/LayerNorm), compared against a bf16-cast reference.
    N = 1024
    x = jax.random.normal(jax.random.fold_in(kx, 7), (N, input_size), jnp.float32)
    out = jax.block_until_ready(
        mlp_forward(x, *params_list[0], stream_dtype=jnp.bfloat16))
    ref = mlp_reference(x, *params_list[0], stream_dtype=jnp.bfloat16)
    ok &= out.shape == (N, output_size)
    ok &= bool(jnp.allclose(out, ref, atol=3e-2, rtol=3e-2))

    assert ok, "mismatch vs JAX reference"
    print("KERNEL_OK")
</pallas_src>

<mosaic_0001>
module attributes {stable_mosaic.version = 11 : i64} {
  func.func @mlp_kernel(%arg0: i32, %arg1: memref<16x2048xf32, #tpu.memory_space<vmem>>, %arg2: memref<32x16xf32, #tpu.memory_space<vmem>>, %arg3: memref<32x1xf32, #tpu.memory_space<vmem>>, %arg4: memref<32x32xf32, #tpu.memory_space<vmem>>, %arg5: memref<32x1xf32, #tpu.memory_space<vmem>>, %arg6: memref<32x32xf32, #tpu.memory_space<vmem>>, %arg7: memref<32x1xf32, #tpu.memory_space<vmem>>, %arg8: memref<32x1xf32, #tpu.memory_space<vmem>>, %arg9: memref<32x1xf32, #tpu.memory_space<vmem>>, %arg10: memref<32x2048xf32, #tpu.memory_space<vmem>>) attributes {dimension_semantics = [#tpu.dimension_semantics<parallel>], iteration_bounds = array<i64: 1>, scalar_prefetch = 0 : i64, scratch_operands = 0 : i64, tpu.core_type = #tpu.core_type<tc>, window_params = [{transform_indices = @transform_0, window_bounds = array<i64: 16, 2048>}, {pipeline_mode = #tpu.pipeline_mode<synchronous>, transform_indices = @transform_1, window_bounds = array<i64: 32, 16>}, {pipeline_mode = #tpu.pipeline_mode<synchronous>, transform_indices = @transform_2, window_bounds = array<i64: 32, 1>}, {pipeline_mode = #tpu.pipeline_mode<synchronous>, transform_indices = @transform_3, window_bounds = array<i64: 32, 32>}, {pipeline_mode = #tpu.pipeline_mode<synchronous>, transform_indices = @transform_4, window_bounds = array<i64: 32, 1>}, {pipeline_mode = #tpu.pipeline_mode<synchronous>, transform_indices = @transform_5, window_bounds = array<i64: 32, 32>}, {pipeline_mode = #tpu.pipeline_mode<synchronous>, transform_indices = @transform_6, window_bounds = array<i64: 32, 1>}, {pipeline_mode = #tpu.pipeline_mode<synchronous>, transform_indices = @transform_7, window_bounds = array<i64: 32, 1>}, {pipeline_mode = #tpu.pipeline_mode<synchronous>, transform_indices = @transform_8, window_bounds = array<i64: 32, 1>}, {transform_indices = @transform_9, window_bounds = array<i64: 32, 2048>}]} {
    %c0 = arith.constant 0 : index
    %c0_0 = arith.constant 0 : index
    %0 = vector.load %arg2[%c0, %c0_0] : memref<32x16xf32, #tpu.memory_space<vmem>>, vector<32x16xf32>
    %c0_1 = arith.constant 0 : index
    %c0_2 = arith.constant 0 : index
    %1 = vector.load %arg1[%c0_1, %c0_2] : memref<16x2048xf32, #tpu.memory_space<vmem>>, vector<16x2048xf32>
    %cst = arith.constant dense<0.000000e+00> : vector<32x2048xf32>
    %2 = tpu.matmul %0, %1, %cst {dimension_numbers = #tpu.dot_dimension_numbers<[1], [0], [0], [1], [0, 0, 1, 1], [], []>} : vector<32x16xf32>, vector<16x2048xf32>, vector<32x2048xf32> -> vector<32x2048xf32>
    %c0_3 = arith.constant 0 : index
    %c0_4 = arith.constant 0 : index
    %3 = vector.load %arg3[%c0_3, %c0_4] : memref<32x1xf32, #tpu.memory_space<vmem>>, vector<32x1xf32>
    %4 = vector.broadcast %3 : vector<32x1xf32> to vector<32x2048xf32>
    %5 = arith.addf %2, %4 : vector<32x2048xf32>
    %cst_5 = arith.constant 0.000000e+00 : f32
    %6 = vector.broadcast %cst_5 : f32 to vector<32x2048xf32>
    %7 = arith.maximumf %5, %6 : vector<32x2048xf32>
    %c0_6 = arith.constant 0 : index
    %c0_7 = arith.constant 0 : index
    %8 = vector.load %arg4[%c0_6, %c0_7] : memref<32x32xf32, #tpu.memory_space<vmem>>, vector<32x32xf32>
    %cst_8 = arith.constant dense<0.000000e+00> : vector<32x2048xf32>
    %9 = tpu.matmul %8, %7, %cst_8 {dimension_numbers = #tpu.dot_dimension_numbers<[1], [0], [0], [1], [0, 0, 1, 1], [], []>} : vector<32x32xf32>, vector<32x2048xf32>, vector<32x2048xf32> -> vector<32x2048xf32>
    %c0_9 = arith.constant 0 : index
    %c0_10 = arith.constant 0 : index
    %10 = vector.load %arg5[%c0_9, %c0_10] : memref<32x1xf32, #tpu.memory_space<vmem>>, vector<32x1xf32>
    %11 = vector.broadcast %10 : vector<32x1xf32> to vector<32x2048xf32>
    %12 = arith.addf %9, %11 : vector<32x2048xf32>
    %cst_11 = arith.constant 0.000000e+00 : f32
    %13 = vector.broadcast %cst_11 : f32 to vector<32x2048xf32>
    %14 = arith.maximumf %12, %13 : vector<32x2048xf32>
    %c0_12 = arith.constant 0 : index
    %c0_13 = arith.constant 0 : index
    %15 = vector.load %arg6[%c0_12, %c0_13] : memref<32x32xf32, #tpu.memory_space<vmem>>, vector<32x32xf32>
    %cst_14 = arith.constant dense<0.000000e+00> : vector<32x2048xf32>
    %16 = tpu.matmul %15, %14, %cst_14 {dimension_numbers = #tpu.dot_dimension_numbers<[1], [0], [0], [1], [0, 0, 1, 1], [], []>} : vector<32x32xf32>, vector<32x2048xf32>, vector<32x2048xf32> -> vector<32x2048xf32>
    %c0_15 = arith.constant 0 : index
    %c0_16 = arith.constant 0 : index
    %17 = vector.load %arg7[%c0_15, %c0_16] : memref<32x1xf32, #tpu.memory_space<vmem>>, vector<32x1xf32>
    %18 = vector.broadcast %17 : vector<32x1xf32> to vector<32x2048xf32>
    %19 = arith.addf %16, %18 : vector<32x2048xf32>
    %cst_17 = arith.constant dense<0.000000e+00> : vector<2048xf32>
    %20 = vector.multi_reduction <add>, %19, %cst_17 [0] : vector<32x2048xf32> to vector<2048xf32>
    %21 = vector.shape_cast %20 : vector<2048xf32> to vector<1x2048xf32>
    %cst_18 = arith.constant 3.125000e-02 : f32
    %22 = vector.broadcast %cst_18 : f32 to vector<1x2048xf32>
    %23 = arith.mulf %21, %22 : vector<1x2048xf32>
    %24 = vector.broadcast %23 : vector<1x2048xf32> to vector<32x2048xf32>
    %25 = arith.subf %19, %24 : vector<32x2048xf32>
    %26 = arith.mulf %25, %25 : vector<32x2048xf32>
    %cst_19 = arith.constant dense<0.000000e+00> : vector<2048xf32>
    %27 = vector.multi_reduction <add>, %26, %cst_19 [0] : vector<32x2048xf32> to vector<2048xf32>
    %28 = vector.shape_cast %27 : vector<2048xf32> to vector<1x2048xf32>
    %cst_20 = arith.constant 3.125000e-02 : f32
    %29 = vector.broadcast %cst_20 : f32 to vector<1x2048xf32>
    %30 = arith.mulf %28, %29 : vector<1x2048xf32>
    %cst_21 = arith.constant 9.99999974E-6 : f32
    %31 = vector.broadcast %cst_21 : f32 to vector<1x2048xf32>
    %32 = arith.addf %30, %31 : vector<1x2048xf32>
    %33 = math.rsqrt %32 : vector<1x2048xf32>
    %34 = vector.broadcast %33 : vector<1x2048xf32> to vector<32x2048xf32>
    %35 = arith.mulf %25, %34 : vector<32x2048xf32>
    %c0_22 = arith.constant 0 : index
    %c0_23 = arith.constant 0 : index
    %36 = vector.load %arg8[%c0_22, %c0_23] : memref<32x1xf32, #tpu.memory_space<vmem>>, vector<32x1xf32>
    %37 = vector.broadcast %36 : vector<32x1xf32> to vector<32x2048xf32>
    %38 = arith.mulf %35, %37 : vector<32x2048xf32>
    %c0_24 = arith.constant 0 : index
    %c0_25 = arith.constant 0 : index
    %39 = vector.load %arg9[%c0_24, %c0_25] : memref<32x1xf32, #tpu.memory_space<vmem>>, vector<32x1xf32>
    %40 = vector.broadcast %39 : vector<32x1xf32> to vector<32x2048xf32>
    %41 = arith.addf %38, %40 : vector<32x2048xf32>
    %c0_26 = arith.constant 0 : index
    %c0_27 = arith.constant 0 : index
    %42 = vector.load %arg10[%c0_26, %c0_27] : memref<32x2048xf32, #tpu.memory_space<vmem>>, vector<32x2048xf32>
    tpu.vector_store %arg10[%c0_26, %c0_27], %41 {strides = array<i32>} : memref<32x2048xf32, #tpu.memory_space<vmem>>, vector<32x2048xf32>,
    return
  }
  func.func @transform_0(%arg0: i32) -> (i32, i32) {
    %c0_i32 = arith.constant 0 : i32
    %c0_i32_0 = arith.constant 0 : i32
    return %c0_i32, %arg0 : i32, i32
  }
  func.func @transform_1(%arg0: i32) -> (i32, i32) {
    %c0_i32 = arith.constant 0 : i32
    %c0_i32_0 = arith.constant 0 : i32
    %c0_i32_1 = arith.constant 0 : i32
    return %c0_i32, %c0_i32_0 : i32, i32
  }
  func.func @transform_2(%arg0: i32) -> (i32, i32) {
    %c0_i32 = arith.constant 0 : i32
    %c0_i32_0 = arith.constant 0 : i32
    %c0_i32_1 = arith.constant 0 : i32
    return %c0_i32, %c0_i32_0 : i32, i32
  }
  func.func @transform_3(%arg0: i32) -> (i32, i32) {
    %c0_i32 = arith.constant 0 : i32
    %c0_i32_0 = arith.constant 0 : i32
    %c0_i32_1 = arith.constant 0 : i32
    return %c0_i32, %c0_i32_0 : i32, i32
  }
  func.func @transform_4(%arg0: i32) -> (i32, i32) {
    %c0_i32 = arith.constant 0 : i32
    %c0_i32_0 = arith.constant 0 : i32
    %c0_i32_1 = arith.constant 0 : i32
    return %c0_i32, %c0_i32_0 : i32, i32
  }
  func.func @transform_5(%arg0: i32) -> (i32, i32) {
    %c0_i32 = arith.constant 0 : i32
    %c0_i32_0 = arith.constant 0 : i32
    %c0_i32_1 = arith.constant 0 : i32
    return %c0_i32, %c0_i32_0 : i32, i32
  }
  func.func @transform_6(%arg0: i32) -> (i32, i32) {
    %c0_i32 = arith.constant 0 : i32
    %c0_i32_0 = arith.constant 0 : i32
    %c0_i32_1 = arith.constant 0 : i32
    return %c0_i32, %c0_i32_0 : i32, i32
  }
  func.func @transform_7(%arg0: i32) -> (i32, i32) {
    %c0_i32 = arith.constant 0 : i32
    %c0_i32_0 = arith.constant 0 : i32
    %c0_i32_1 = arith.constant 0 : i32
    return %c0_i32, %c0_i32_0 : i32, i32
  }
  func.func @transform_8(%arg0: i32) -> (i32, i32) {
    %c0_i32 = arith.constant 0 : i32
    %c0_i32_0 = arith.constant 0 : i32
    %c0_i32_1 = arith.constant 0 : i32
    return %c0_i32, %c0_i32_0 : i32, i32
  }
  func.func @transform_9(%arg0: i32) -> (i32, i32) {
    %c0_i32 = arith.constant 0 : i32
    %c0_i32_0 = arith.constant 0 : i32
    return %c0_i32, %arg0 : i32, i32
  }
}

</mosaic_0001>

<llo_original>
// kernel: tpu_custom_call.1
$region0: #{tpu_custom_call.1}
  #allocation0 [shape = 'u32[]', space=smem, size = 0x4, offset = 0x4, fixed_abs, tag = 'smem constant byte address 0x4 - core index']
  #allocation1 [shape = 'u32[144,128]{1,0:T(1,128)}', space=vmem, size = 0x12000, scoped, tag = 'internal scratch']
  %s0 = inlined_call_operand.hbm [shape: f32[16,2048], index: 0, kind: input, shape index: {}]
  %s1 = inlined_call_operand.vmem [shape: f32[32,16], index: 1, kind: input, shape index: {}]
  %s2 = inlined_call_operand.vmem [shape: f32[32,1], index: 2, kind: input, shape index: {}]
  %s3 = inlined_call_operand.vmem [shape: f32[32,32], index: 3, kind: input, shape index: {}]
  %s4 = inlined_call_operand.vmem [shape: f32[32,1], index: 4, kind: input, shape index: {}]
  %s5 = inlined_call_operand.vmem [shape: f32[32,32], index: 5, kind: input, shape index: {}]
  %s6 = inlined_call_operand.vmem [shape: f32[32,1], index: 6, kind: input, shape index: {}]
  %s7 = inlined_call_operand.vmem [shape: f32[32,1], index: 7, kind: input, shape index: {}]
  %s8 = inlined_call_operand.vmem [shape: f32[32,1], index: 8, kind: input, shape index: {}]
  %s9 = inlined_call_operand.hbm [shape: f32[32,2048], index: 9, kind: output, shape index: {}]
  %s10 = sld [smem:[#allocation0]]
  $region50: #{tpu_custom_call.1} parent=0
    _
  %s12 = ssub.s32 1, %s10
  %s13 = scalar_select 0, %s12, %s10
  $region1: #{tpu_custom_call.1} parent=0
    #allocation2 [shape = 'u8[131072]{0}', space=vmem, size = 0x20000, scoped, tag = 'input window, operand 0, single buffered']
    #allocation3 [shape = 's32[1]{0}', space=sflag, size = 0x4, scoped, tag = 'scoped memory for tpu_custom_call.1']
    #allocation4 [shape = 's32[1]{0}', space=sflag, size = 0x4, scoped, tag = 'scoped memory for tpu_custom_call.1']
    #allocation5 [shape = 'u8[262144]{0}', space=vmem, size = 0x40000, scoped, tag = 'output window, operand 0, single buffered']
    %14 = vsyncpa [#allocation3], 0
    %15 = vsyncpa [#allocation4], 0
    // Predicated region
    $region2: #{tpu_custom_call.1} parent=1 // pred_check
      _
    $region3: #{tpu_custom_call.1} parent=1 // pred_check_branch
      %17 = sbr.rel (0) target = $region5
    $region4: #{tpu_custom_call.1} parent=1 // pred_region
      %s19 = ssub.s32 4096, 4096
      %20 = vsyncadd [#allocation3], %s19
      %s21 = sshll.u32 [#allocation2], 4
      %s22 = int_to_ptr.vmem [resolvable:$true] %s21
      %27 = dma.hbm_to_vmem [thread:$0]  %s0, 4096, %s22, [#allocation3], 2048, 2048, 128
    $region5: #{tpu_custom_call.1} parent=1 // pred_fallthru
      _
    // Predicated region
    $region6: #{tpu_custom_call.1} parent=1 // pred_check
      _
    $region7: #{tpu_custom_call.1} parent=1 // pred_check_branch
      %29 = sbr.rel (0) target = $region9
    $region8: #{tpu_custom_call.1} parent=1 // pred_region
      _
    $region9: #{tpu_custom_call.1} parent=1 // pred_fallthru
      _
    // Predicated region
    $region10: #{tpu_custom_call.1} parent=1 // pred_check
      _
    $region11: #{tpu_custom_call.1} parent=1 // pred_check_branch
      %31 = sbr.rel (0) target = $region13
    $region12: #{tpu_custom_call.1} parent=1 // pred_region
      _
    $region13: #{tpu_custom_call.1} parent=1 // pred_fallthru
      _
    // Predicated region
    $region14: #{tpu_custom_call.1} parent=1 // pred_check
      _
    $region15: #{tpu_custom_call.1} parent=1 // pred_check_branch
      %33 = sbr.rel (0) target = $region17
    $region16: #{tpu_custom_call.1} parent=1 // pred_region
      _
    $region17: #{tpu_custom_call.1} parent=1 // pred_fallthru
      _
    // Predicated region
    $region18: #{tpu_custom_call.1} parent=1 // pred_check
      _
    $region19: #{tpu_custom_call.1} parent=1 // pred_check_branch
      %35 = sbr.rel (0) target = $region21
    $region20: #{tpu_custom_call.1} parent=1 // pred_region
      _
    $region21: #{tpu_custom_call.1} parent=1 // pred_fallthru
      _
    // Predicated region
    $region22: #{tpu_custom_call.1} parent=1 // pred_check
      _
    $region23: #{tpu_custom_call.1} parent=1 // pred_check_branch
      %37 = sbr.rel (0) target = $region25
    $region24: #{tpu_custom_call.1} parent=1 // pred_region
      _
    $region25: #{tpu_custom_call.1} parent=1 // pred_fallthru
      _
    // Predicated region
    $region26: #{tpu_custom_call.1} parent=1 // pred_check
      _
    $region27: #{tpu_custom_call.1} parent=1 // pred_check_branch
      %39 = sbr.rel (0) target = $region29
    $region28: #{tpu_custom_call.1} parent=1 // pred_region
      _
    $region29: #{tpu_custom_call.1} parent=1 // pred_fallthru
      _
    // Predicated region
    $region30: #{tpu_custom_call.1} parent=1 // pred_check
      _
    $region31: #{tpu_custom_call.1} parent=1 // pred_check_branch
      %41 = sbr.rel (0) target = $region33
    $region32: #{tpu_custom_call.1} parent=1 // pred_region
      _
    $region33: #{tpu_custom_call.1} parent=1 // pred_fallthru
      _
    // Predicated region
    $region34: #{tpu_custom_call.1} parent=1 // pred_check
      _
    $region35: #{tpu_custom_call.1} parent=1 // pred_check_branch
      %43 = sbr.rel (0) target = $region37
    $region36: #{tpu_custom_call.1} parent=1 // pred_region
      _
    $region37: #{tpu_custom_call.1} parent=1 // pred_fallthru
      _
    // Predicated region
    $region38: #{tpu_custom_call.1} parent=1 // pred_check
      _
    $region39: #{tpu_custom_call.1} parent=1 // pred_check_branch
      %45 = sbr.rel (0) target = $region41
    $region40: #{tpu_custom_call.1} parent=1 // pred_region
      %46 = dma.done [#allocation3], 4096
    $region41: #{tpu_custom_call.1} parent=1 // pred_fallthru
      _
    %v47 = vld [vmem:[%s1] sm:$0xff]
    %v48 = vld [vmem:[%s1 + $0x8] sm:$0xff]
    %v49 = vld [vmem:[%s1 + $0x10] sm:$0xff]
    %v50 = vld [vmem:[%s1 + $0x18] sm:$0xff]
    %v51 = vld [vmem:[#allocation2] sm:$0xff]
    %v52 = vld [vmem:[#allocation2 + $0x8] sm:$0xff]
    %v53 = vld [vmem:[#allocation2 + $0x10] sm:$0xff]
    %v54 = vld [vmem:[#allocation2 + $0x18] sm:$0xff]
    %v55 = vld [vmem:[#allocation2 + $0x20] sm:$0xff]
    %v56 = vld [vmem:[#allocation2 + $0x28] sm:$0xff]
    %v57 = vld [vmem:[#allocation2 + $0x30] sm:$0xff]
    %v58 = vld [vmem:[#allocation2 + $0x38] sm:$0xff]
    %v59 = vld [vmem:[#allocation2 + $0x40] sm:$0xff]
    %v60 = vld [vmem:[#allocation2 + $0x48] sm:$0xff]
    %v61 = vld [vmem:[#allocation2 + $0x50] sm:$0xff]
    %v62 = vld [vmem:[#allocation2 + $0x58] sm:$0xff]
    %v63 = vld [vmem:[#allocation2 + $0x60] sm:$0xff]
    %v64 = vld [vmem:[#allocation2 + $0x68] sm:$0xff]
    %v65 = vld [vmem:[#allocation2 + $0x70] sm:$0xff]
    %v66 = vld [vmem:[#allocation2 + $0x78] sm:$0xff]
    %v67 = vld [vmem:[#allocation2 + $0x80] sm:$0xff]
    %v68 = vld [vmem:[#allocation2 + $0x88] sm:$0xff]
    %v69 = vld [vmem:[#allocation2 + $0x90] sm:$0xff]
    %v70 = vld [vmem:[#allocation2 + $0x98] sm:$0xff]
    %v71 = vld [vmem:[#allocation2 + $0xa0] sm:$0xff]
    %v72 = vld [vmem:[#allocation2 + $0xa8] sm:$0xff]
    %v73 = vld [vmem:[#allocation2 + $0xb0] sm:$0xff]
    %v74 = vld [vmem:[#allocation2 + $0xb8] sm:$0xff]
    %v75 = vld [vmem:[#allocation2 + $0xc0] sm:$0xff]
    %v76 = vld [vmem:[#allocation2 + $0xc8] sm:$0xff]
    %v77 = vld [vmem:[#allocation2 + $0xd0] sm:$0xff]
    %v78 = vld [vmem:[#allocation2 + $0xd8] sm:$0xff]
    %v79 = vld [vmem:[#allocation2 + $0xe0] sm:$0xff]
    %v80 = vld [vmem:[#allocation2 + $0xe8] sm:$0xff]
    %v81 = vld [vmem:[#allocation2 + $0xf0] sm:$0xff]
    %v82 = vld [vmem:[#allocation2 + $0xf8] sm:$0xff]
    %v83 = vld [vmem:[%s2] sm:$0xff]
    %v84 = vld [vmem:[%s2 + $0x8] sm:$0xff]
    %v85 = vld [vmem:[%s2 + $0x10] sm:$0xff]
    %v86 = vld [vmem:[%s2 + $0x18] sm:$0xff]
    %88 = vset.pattern.permute.xlu0 0
    %89 = vperm.xlu0 %88, %v83
    %v90 = vpop.permute.xlu0 %89
    %93 = vset.pattern.permute.xlu0 0
    %94 = vperm.xlu0 %93, %v84
    %v95 = vpop.permute.xlu0 %94
    %98 = vset.pattern.permute.xlu0 0
    %99 = vperm.xlu0 %98, %v85
    %v100 = vpop.permute.xlu0 %99
    %103 = vset.pattern.permute.xlu0 0
    %104 = vperm.xlu0 %103, %v86
    %v105 = vpop.permute.xlu0 %104
    %vm107 = vcmask 130048
    %v109 = vsel %vm107, %v47, 0
    %v112 = vsel %vm107, %v48, 0
    %v115 = vsel %vm107, %v49, 0
    %v118 = vsel %vm107, %v50, 0
    %120 = vmatprep.subr.mxu0 %v52
    %121 = vmatpush1.msra.mxu0 %v51
    %122 = vmatprep.subr.mxu0 %v68
    %123 = vmatpush1.msra.mxu0 %v67
    %124 = vmatprep.subr.mxu0 0.0
    %125 = vmatpush1.msra.mxu0 0.0
    %126 = vmatprep.subr.mxu0 0.0
    %127 = vmatpush1.msra.mxu0 0.0
    %128 = vmatprep.subr.mxu0 0.0
    %129 = vmatpush1.msra.mxu0 0.0
    %130 = vmatprep.subr.mxu0 0.0
    %131 = vmatpush1.msra.mxu0 0.0
    %132 = vmatprep.subr.mxu0 0.0
    %133 = vmatpush1.msra.mxu0 0.0
    %134 = vmatprep.subr.mxu0 0.0
    %135 = vmatpush1.msra.mxu0 0.0
    %136 = vmatprep.subr.mxu0 0.0
    %137 = vmatpush1.msra.mxu0 0.0
    %138 = vmatprep.subr.mxu0 0.0
    %139 = vmatpush1.msra.mxu0 0.0
    %140 = vmatprep.subr.mxu0 0.0
    %141 = vmatpush1.msra.mxu0 0.0
    %142 = vmatprep.subr.mxu0 0.0
    %143 = vmatpush1.msra.mxu0 0.0
    %144 = vmatprep.subr.mxu0 0.0
    %145 = vmatpush1.msra.mxu0 0.0
    %146 = vmatprep.subr.mxu0 0.0
    %147 = vmatpush1.msra.mxu0 0.0
    %148 = vmatprep.subr.mxu0 0.0
    %149 = vmatpush1.msra.mxu0 0.0
    %150 = vmatprep.subr.mxu0 0.0
    %151 = vmatpush1.msra.mxu0 0.0
    %152 = vmatprep.subr.mxu0 0.0
    %153 = vmatpush1.msra.mxu0 0.0
    %154 = vmatprep.subr.mxu0 0.0
    %155 = vmatpush1.msra.mxu0 0.0
    %156 = vmatprep.subr.mxu0 0.0
    %157 = vmatpush1.msra.mxu0 0.0
    %158 = vmatprep.subr.mxu0 0.0
    %159 = vmatpush1.msra.mxu0 0.0
    %160 = vmatprep.subr.mxu0 0.0
    %161 = vmatpush1.msra.mxu0 0.0
    %162 = vmatprep.subr.mxu0 0.0
    %163 = vmatpush1.msra.mxu0 0.0
    %164 = vmatprep.subr.mxu0 0.0
    %165 = vmatpush1.msra.mxu0 0.0
    %166 = vmatprep.subr.mxu0 0.0
    %167 = vmatpush1.msra.mxu0 0.0
    %168 = vmatprep.subr.mxu0 0.0
    %169 = vmatpush1.msra.mxu0 0.0
    %170 = vmatprep.subr.mxu0 0.0
    %171 = vmatpush1.msra.mxu0 0.0
    %172 = vmatprep.subr.mxu0 0.0
    %173 = vmatpush1.msra.mxu0 0.0
    %174 = vmatprep.subr.mxu0 0.0
    %175 = vmatpush1.msra.mxu0 0.0
    %176 = vmatprep.subr.mxu0 0.0
    %177 = vmatpush1.msra.mxu0 0.0
    %178 = vmatprep.subr.mxu0 0.0
    %179 = vmatpush1.msra.mxu0 0.0
    %180 = vmatprep.subr.mxu0 0.0
    %181 = vmatpush1.msra.mxu0 0.0
    %182 = vmatprep.subr.mxu0 0.0
    %183 = vmatpush1.msra.mxu0 0.0
    %184 = vmatprep.mubr.f32.mxu0 0.0
    %185 = vmatmul.mubr.f32.gmra.mrb[0].mxu0 %v109
    %v186 = vpop.f32.mrb[0].mxu0
    %v187 = vadd.f32 %v90, %v186
    %v188 = vpop.f32.mrb[0].mxu0
    %v189 = vadd.f32 %v90, %v188
    %190 = vmatprep.mubr.f32.mxu0 0.0
    %191 = vmatmul.mubr.f32.gmra.mrb[0].mxu0 %v112
    %v192 = vpop.f32.mrb[0].mxu0
    %v193 = vadd.f32 %v95, %v192
    %v194 = vpop.f32.mrb[0].mxu0
    %v195 = vadd.f32 %v95, %v194
    %196 = vmatprep.mubr.f32.mxu0 0.0
    %197 = vmatmul.mubr.f32.gmra.mrb[0].mxu0 %v115
    %v198 = vpop.f32.mrb[0].mxu0
    %v199 = vadd.f32 %v100, %v198
    %v200 = vpop.f32.mrb[0].mxu0
    %v201 = vadd.f32 %v100, %v200
    %202 = vmatprep.mubr.f32.mxu0 0.0
    %203 = vmatmul.mubr.f32.gmra.mrb[0].mxu0 %v118
    %v204 = vpop.f32.mrb[0].mxu0
    %v205 = vadd.f32 %v105, %v204
    %v206 = vpop.f32.mrb[0].mxu0
    %v207 = vadd.f32 %v105, %v206
    %208 = vdwg.mxu0
    %209 = vmatprep.subr.mxu0 %v54
    %210 = vmatpush1.msra.mxu0 %v53
    %211 = vmatprep.subr.mxu0 %v70
    %212 = vmatpush1.msra.mxu0 %v69
    %213 = vmatprep.subr.mxu0 0.0
    %214 = vmatpush1.msra.mxu0 0.0
    %215 = vmatprep.subr.mxu0 0.0
    %216 = vmatpush1.msra.mxu0 0.0
    %217 = vmatprep.subr.mxu0 0.0
    %218 = vmatpush1.msra.mxu0 0.0
    %219 = vmatprep.subr.mxu0 0.0
    %220 = vmatpush1.msra.mxu0 0.0
    %221 = vmatprep.subr.mxu0 0.0
    %222 = vmatpush1.msra.mxu0 0.0
    %223 = vmatprep.subr.mxu0 0.0
    %224 = vmatpush1.msra.mxu0 0.0
    %225 = vmatprep.subr.mxu0 0.0
    %226 = vmatpush1.msra.mxu0 0.0
    %227 = vmatprep.subr.mxu0 0.0
    %228 = vmatpush1.msra.mxu0 0.0
    %229 = vmatprep.subr.mxu0 0.0
    %230 = vmatpush1.msra.mxu0 0.0
    %231 = vmatprep.subr.mxu0 0.0
    %232 = vmatpush1.msra.mxu0 0.0
    %233 = vmatprep.subr.mxu0 0.0
    %234 = vmatpush1.msra.mxu0 0.0
    %235 = vmatprep.subr.mxu0 0.0
    %236 = vmatpush1.msra.mxu0 0.0
    %237 = vmatprep.subr.mxu0 0.0
    %238 = vmatpush1.msra.mxu0 0.0
    %239 = vmatprep.subr.mxu0 0.0
    %240 = vmatpush1.msra.mxu0 0.0
    %241 = vmatprep.subr.mxu0 0.0
    %242 = vmatpush1.msra.mxu0 0.0
    %243 = vmatprep.subr.mxu0 0.0
    %244 = vmatpush1.msra.mxu0 0.0
    %245 = vmatprep.subr.mxu0 0.0
    %246 = vmatpush1.msra.mxu0 0.0
    %247 = vmatprep.subr.mxu0 0.0
    %248 = vmatpush1.msra.mxu0 0.0
    %249 = vmatprep.subr.mxu0 0.0
    %250 = vmatpush1.msra.mxu0 0.0
    %251 = vmatprep.subr.mxu0 0.0
    %252 = vmatpush1.msra.mxu0 0.0
    %253 = vmatprep.subr.mxu0 0.0
    %254 = vmatpush1.msra.mxu0 0.0
    %255 = vmatprep.subr.mxu0 0.0
    %256 = vmatpush1.msra.mxu0 0.0
    %257 = vmatprep.subr.mxu0 0.0
    %258 = vmatpush1.msra.mxu0 0.0
    %259 = vmatprep.subr.mxu0 0.0
    %260 = vmatpush1.msra.mxu0 0.0
    %261 = vmatprep.subr.mxu0 0.0
    %262 = vmatpush1.msra.mxu0 0.0
    %263 = vmatprep.subr.mxu0 0.0
    %264 = vmatpush1.msra.mxu0 0.0
    %265 = vmatprep.subr.mxu0 0.0
    %266 = vmatpush1.msra.mxu0 0.0
    %267 = vmatprep.subr.mxu0 0.0
    %268 = vmatpush1.msra.mxu0 0.0
    %269 = vmatprep.subr.mxu0 0.0
    %270 = vmatpush1.msra.mxu0 0.0
    %271 = vmatprep.subr.mxu0 0.0
    %272 = vmatpush1.msra.mxu0 0.0
    %273 = vmatprep.mubr.f32.mxu0 0.0
    %274 = vmatmul.mubr.f32.gmra.mrb[0].mxu0 %v109
    %v275 = vpop.f32.mrb[0].mxu0
    %v276 = vadd.f32 %v90, %v275
    %v277 = vpop.f32.mrb[0].mxu0
    %v278 = vadd.f32 %v90, %v277
    %279 = vmatprep.mubr.f32.mxu0 0.0
    %280 = vmatmul.mubr.f32.gmra.mrb[0].mxu0 %v112
    %v281 = vpop.f32.mrb[0].mxu0
    %v282 = vadd.f32 %v95, %v281
    %v283 = vpop.f32.mrb[0].mxu0
    %v284 = vadd.f32 %v95, %v283
    %285 = vmatprep.mubr.f32.mxu0 0.0
    %286 = vmatmul.mubr.f32.gmra.mrb[0].mxu0 %v115
    %v287 = vpop.f32.mrb[0].mxu0
    %v288 = vadd.f32 %v100, %v287
    %v289 = vpop.f32.mrb[0].mxu0
    %v290 = vadd.f32 %v100, %v289
    %291 = vmatprep.mubr.f32.mxu0 0.0
    %292 = vmatmul.mubr.f32.gmra.mrb[0].mxu0 %v118
    %v293 = vpop.f32.mrb[0].mxu0
    %v294 = vadd.f32 %v105, %v293
    %v295 = vpop.f32.mrb[0].mxu0
    %v296 = vadd.f32 %v105, %v295
    %297 = vdwg.mxu0
    %298 = vmatprep.subr.mxu0 %v56
    %299 = vmatpush1.msra.mxu0 %v55
    %300 = vmatprep.subr.mxu0 %v72
    %301 = vmatpush1.msra.mxu0 %v71
    %302 = vmatprep.subr.mxu0 0.0
    %303 = vmatpush1.msra.mxu0 0.0
    %304 = vmatprep.subr.mxu0 0.0
    %305 = vmatpush1.msra.mxu0 0.0
    %306 = vmatprep.subr.mxu0 0.0
    %307 = vmatpush1.msra.mxu0 0.0
    %308 = vmatprep.subr.mxu0 0.0
    %309 = vmatpush1.msra.mxu0 0.0
    %310 = vmatprep.subr.mxu0 0.0
    %311 = vmatpush1.msra.mxu0 0.0
    %312 = vmatprep.subr.mxu0 0.0
    %313 = vmatpush1.msra.mxu0 0.0
    %314 = vmatprep.subr.mxu0 0.0
    %315 = vmatpush1.msra.mxu0 0.0
    %316 = vmatprep.subr.mxu0 0.0
    %317 = vmatpush1.msra.mxu0 0.0
    %318 = vmatprep.subr.mxu0 0.0
    %319 = vmatpush1.msra.mxu0 0.0
    %320 = vmatprep.subr.mxu0 0.0
    %321 = vmatpush1.msra.mxu0 0.0
    %322 = vmatprep.subr.mxu0 0.0
    %323 = vmatpush1.msra.mxu0 0.0
    %324 = vmatprep.subr.mxu0 0.0
    %325 = vmatpush1.msra.mxu0 0.0
    %326 = vmatprep.subr.mxu0 0.0
    %327 = vmatpush1.msra.mxu0 0.0
    %328 = vmatprep.subr.mxu0 0.0
    %329 = vmatpush1.msra.mxu0 0.0
    %330 = vmatprep.subr.mxu0 0.0
    %331 = vmatpush1.msra.mxu0 0.0
    %332 = vmatprep.subr.mxu0 0.0
    %333 = vmatpush1.msra.mxu0 0.0
    %334 = vmatprep.subr.mxu0 0.0
    %335 = vmatpush1.msra.mxu0 0.0
    %336 = vmatprep.subr.mxu0 0.0
    %337 = vmatpush1.msra.mxu0 0.0
    %338 = vmatprep.subr.mxu0 0.0
    %339 = vmatpush1.msra.mxu0 0.0
    %340 = vmatprep.subr.mxu0 0.0
    %341 = vmatpush1.msra.mxu0 0.0
    %342 = vmatprep.subr.mxu0 0.0
    %343 = vmatpush1.msra.mxu0 0.0
    %344 = vmatprep.subr.mxu0 0.0
    %345 = vmatpush1.msra.mxu0 0.0
    %346 = vmatprep.subr.mxu0 0.0
    %347 = vmatpush1.msra.mxu0 0.0
    %348 = vmatprep.subr.mxu0 0.0
    %349 = vmatpush1.msra.mxu0 0.0
    %350 = vmatprep.subr.mxu0 0.0
    %351 = vmatpush1.msra.mxu0 0.0
    %352 = vmatprep.subr.mxu0 0.0
    %353 = vmatpush1.msra.mxu0 0.0
    %354 = vmatprep.subr.mxu0 0.0
    %355 = vmatpush1.msra.mxu0 0.0
    %356 = vmatprep.subr.mxu0 0.0
    %357 = vmatpush1.msra.mxu0 0.0
    %358 = vmatprep.subr.mxu0 0.0
    %359 = vmatpush1.msra.mxu0 0.0
    %360 = vmatprep.subr.mxu0 0.0
    %361 = vmatpush1.msra.mxu0 0.0
    %362 = vmatprep.mubr.f32.mxu0 0.0
    %363 = vmatmul.mubr.f32.gmra.mrb[0].mxu0 %v109
    %v364 = vpop.f32.mrb[0].mxu0
    %v365 = vadd.f32 %v90, %v364
    %v366 = vpop.f32.mrb[0].mxu0
    %v367 = vadd.f32 %v90, %v366
    %368 = vmatprep.mubr.f32.mxu0 0.0
    %369 = vmatmul.mubr.f32.gmra.mrb[0].mxu0 %v112
    %v370 = vpop.f32.mrb[0].mxu0
    %v371 = vadd.f32 %v95, %v370
    %v372 = vpop.f32.mrb[0].mxu0
    %v373 = vadd.f32 %v95, %v372
    %374 = vmatprep.mubr.f32.mxu0 0.0
    %375 = vmatmul.mubr.f32.gmra.mrb[0].mxu0 %v115
    %v376 = vpop.f32.mrb[0].mxu0
    %v377 = vadd.f32 %v100, %v376
    %v378 = vpop.f32.mrb[0].mxu0
    %v379 = vadd.f32 %v100, %v378
    %380 = vmatprep.mubr.f32.mxu0 0.0
    %381 = vmatmul.mubr.f32.gmra.mrb[0].mxu0 %v118
    %v382 = vpop.f32.mrb[0].mxu0
    %v383 = vadd.f32 %v105, %v382
    %v384 = vpop.f32.mrb[0].mxu0
    %v385 = vadd.f32 %v105, %v384
    %386 = vdwg.mxu0
    %387 = vmatprep.subr.mxu0 %v58
    %388 = vmatpush1.msra.mxu0 %v57
    %389 = vmatprep.subr.mxu0 %v74
    %390 = vmatpush1.msra.mxu0 %v73
    %391 = vmatprep.subr.mxu0 0.0
    %392 = vmatpush1.msra.mxu0 0.0
    %393 = vmatprep.subr.mxu0 0.0
    %394 = vmatpush1.msra.mxu0 0.0
    %395 = vmatprep.subr.mxu0 0.0
    %396 = vmatpush1.msra.mxu0 0.0
    %397 = vmatprep.subr.mxu0 0.0
    %398 = vmatpush1.msra.mxu0 0.0
    %399 = vmatprep.subr.mxu0 0.0
    %400 = vmatpush1.msra.mxu0 0.0
    %401 = vmatprep.subr.mxu0 0.0
    %402 = vmatpush1.msra.mxu0 0.0
    %403 = vmatprep.subr.mxu0 0.0
    %404 = vmatpush1.msra.mxu0 0.0
    %405 = vmatprep.subr.mxu0 0.0
    %406 = vmatpush1.msra.mxu0 0.0
    %407 = vmatprep.subr.mxu0 0.0
    %408 = vmatpush1.msra.mxu0 0.0
    %409 = vmatprep.subr.mxu0 0.0
    %410 = vmatpush1.msra.mxu0 0.0
    %411 = vmatprep.subr.mxu0 0.0
    %412 = vmatpush1.msra.mxu0 0.0
    %413 = vmatprep.subr.mxu0 0.0
    %414 = vmatpush1.msra.mxu0 0.0
    %415 = vmatprep.subr.mxu0 0.0
    %416 = vmatpush1.msra.mxu0 0.0
    %417 = vmatprep.subr.mxu0 0.0
    %418 = vmatpush1.msra.mxu0 0.0
    %419 = vmatprep.subr.mxu0 0.0
    %420 = vmatpush1.msra.mxu0 0.0
    %421 = vmatprep.subr.mxu0 0.0
    %422 = vmatpush1.msra.mxu0 0.0
    %423 = vmatprep.subr.mxu0 0.0
    %424 = vmatpush1.msra.mxu0 0.0
    %425 = vmatprep.subr.mxu0 0.0
    %426 = vmatpush1.msra.mxu0 0.0
    %427 = vmatprep.subr.mxu0 0.0
    %428 = vmatpush1.msra.mxu0 0.0
    %429 = vmatprep.subr.mxu0 0.0
    %430 = vmatpush1.msra.mxu0 0.0
    %431 = vmatprep.subr.mxu0 0.0
    %432 = vmatpush1.msra.mxu0 0.0
    %433 = vmatprep.subr.mxu0 0.0
    %434 = vmatpush1.msra.mxu0 0.0
    %435 = vmatprep.subr.mxu0 0.0
    %436 = vmatpush1.msra.mxu0 0.0
    %437 = vmatprep.subr.mxu0 0.0
    %438 = vmatpush1.msra.mxu0 0.0
    %439 = vmatprep.subr.mxu0 0.0
    %440 = vmatpush1.msra.mxu0 0.0
    %441 = vmatprep.subr.mxu0 0.0
    %442 = vmatpush1.msra.mxu0 0.0
    %443 = vmatprep.subr.mxu0 0.0
    %444 = vmatpush1.msra.mxu0 0.0
    %445 = vmatprep.subr.mxu0 0.0
    %446 = vmatpush1.msra.mxu0 0.0
    %447 = vmatprep.subr.mxu0 0.0
    %448 = vmatpush1.msra.mxu0 0.0
    %449 = vmatprep.subr.mxu0 0.0
    %450 = vmatpush1.msra.mxu0 0.0
    %451 = vmatprep.mubr.f32.mxu0 0.0
    %452 = vmatmul.mubr.f32.gmra.mrb[0].mxu0 %v109
    %v453 = vpop.f32.mrb[0].mxu0
    %v454 = vadd.f32 %v90, %v453
    %v455 = vpop.f32.mrb[0].mxu0
    %v456 = vadd.f32 %v90, %v455
    %457 = vmatprep.mubr.f32.mxu0 0.0
    %458 = vmatmul.mubr.f32.gmra.mrb[0].mxu0 %v112
    %v459 = vpop.f32.mrb[0].mxu0
    %v460 = vadd.f32 %v95, %v459
    %v461 = vpop.f32.mrb[0].mxu0
    %v462 = vadd.f32 %v95, %v461
    %463 = vmatprep.mubr.f32.mxu0 0.0
    %464 = vmatmul.mubr.f32.gmra.mrb[0].mxu0 %v115
    %v465 = vpop.f32.mrb[0].mxu0
    %v466 = vadd.f32 %v100, %v465
    %v467 = vpop.f32.mrb[0].mxu0
    %v468 = vadd.f32 %v100, %v467
    %469 = vmatprep.mubr.f32.mxu0 0.0
    %470 = vmatmul.mubr.f32.gmra.mrb[0].mxu0 %v118
    %v471 = vpop.f32.mrb[0].mxu0
    %v472 = vadd.f32 %v105, %v471
    %v473 = vpop.f32.mrb[0].mxu0
    %v474 = vadd.f32 %v105, %v473
    %475 = vdwg.mxu0
    %476 = vmatprep.subr.mxu0 %v60
    %477 = vmatpush1.msra.mxu0 %v59
    %478 = vmatprep.subr.mxu0 %v76
    %479 = vmatpush1.msra.mxu0 %v75
    %480 = vmatprep.subr.mxu0 0.0
    %481 = vmatpush1.msra.mxu0 0.0
    %482 = vmatprep.subr.mxu0 0.0
    %483 = vmatpush1.msra.mxu0 0.0
    %484 = vmatprep.subr.mxu0 0.0
    %485 = vmatpush1.msra.mxu0 0.0
    %486 = vmatprep.subr.mxu0 0.0
    %487 = vmatpush1.msra.mxu0 0.0
    %488 = vmatprep.subr.mxu0 0.0
    %489 = vmatpush1.msra.mxu0 0.0
    %490 = vmatprep.subr.mxu0 0.0
    %491 = vmatpush1.msra.mxu0 0.0
    %492 = vmatprep.subr.mxu0 0.0
    %493 = vmatpush1.msra.mxu0 0.0
    %494 = vmatprep.subr.mxu0 0.0
    %495 = vmatpush1.msra.mxu0 0.0
    %496 = vmatprep.subr.mxu0 0.0
    %497 = vmatpush1.msra.mxu0 0.0
    %498 = vmatprep.subr.mxu0 0.0
    %499 = vmatpush1.msra.mxu0 0.0
    %500 = vmatprep.subr.mxu0 0.0
    %501 = vmatpush1.msra.mxu0 0.0
    %502 = vmatprep.subr.mxu0 0.0
    %503 = vmatpush1.msra.mxu0 0.0
    %504 = vmatprep.subr.mxu0 0.0
    %505 = vmatpush1.msra.mxu0 0.0
    %506 = vmatprep.subr.mxu0 0.0
    %507 = vmatpush1.msra.mxu0 0.0
    %508 = vmatprep.subr.mxu0 0.0
    %509 = vmatpush1.msra.mxu0 0.0
    %510 = vmatprep.subr.mxu0 0.0
    %511 = vmatpush1.msra.mxu0 0.0
    %512 = vmatprep.subr.mxu0 0.0
    %513 = vmatpush1.msra.mxu0 0.0
    %514 = vmatprep.subr.mxu0 0.0
    %515 = vmatpush1.msra.mxu0 0.0
    %516 = vmatprep.subr.mxu0 0.0
    %517 = vmatpush1.msra.mxu0 0.0
    %518 = vmatprep.subr.mxu0 0.0
    %519 = vmatpush1.msra.mxu0 0.0
    %520 = vmatprep.subr.mxu0 0.0
    %521 = vmatpush1.msra.mxu0 0.0
    %522 = vmatprep.subr.mxu0 0.0
    %523 = vmatpush1.msra.mxu0 0.0
    %524 = vmatprep.subr.mxu0 0.0
    %525 = vmatpush1.msra.mxu0 0.0
    %526 = vmatprep.subr.mxu0 0.0
    %527 = vmatpush1.msra.mxu0 0.0
    %528 = vmatprep.subr.mxu0 0.0
    %529 = vmatpush1.msra.mxu0 0.0
    %530 = vmatprep.subr.mxu0 0.0
    %531 = vmatpush1.msra.mxu0 0.0
    %532 = vmatprep.subr.mxu0 0.0
    %533 = vmatpush1.msra.mxu0 0.0
    %534 = vmatprep.subr.mxu0 0.0
    %535 = vmatpush1.msra.mxu0 0.0
    %536 = vmatprep.subr.mxu0 0.0
    %537 = vmatpush1.msra.mxu0 0.0
    %538 = vmatprep.subr.mxu0 0.0
    %539 = vmatpush1.msra.mxu0 0.0
    %540 = vmatprep.mubr.f32.mxu0 0.0
    %541 = vmatmul.mubr.f32.gmra.mrb[0].mxu0 %v109
    %v542 = vpop.f32.mrb[0].mxu0
    %v543 = vadd.f32 %v90, %v542
    %v544 = vpop.f32.mrb[0].mxu0
    %v545 = vadd.f32 %v90, %v544
    %546 = vmatprep.mubr.f32.mxu0 0.0
    %547 = vmatmul.mubr.f32.gmra.mrb[0].mxu0 %v112
    %v548 = vpop.f32.mrb[0].mxu0
    %v549 = vadd.f32 %v95, %v548
    %v550 = vpop.f32.mrb[0].mxu0
    %v551 = vadd.f32 %v95, %v550
    %552 = vmatprep.mubr.f32.mxu0 0.0
    %553 = vmatmul.mubr.f32.gmra.mrb[0].mxu0 %v115
    %v554 = vpop.f32.mrb[0].mxu0
    %v555 = vadd.f32 %v100, %v554
    %v556 = vpop.f32.mrb[0].mxu0
    %v557 = vadd.f32 %v100, %v556
    %558 = vmatprep.mubr.f32.mxu0 0.0
    %559 = vmatmul.mubr.f32.gmra.mrb[0].mxu0 %v118
    %v560 = vpop.f32.mrb[0].mxu0
    %v561 = vadd.f32 %v105, %v560
    %v562 = vpop.f32.mrb[0].mxu0
    %v563 = vadd.f32 %v105, %v562
    %564 = vdwg.mxu0
    %565 = vmatprep.subr.mxu0 %v62
    %566 = vmatpush1.msra.mxu0 %v61
    %567 = vmatprep.subr.mxu0 %v78
    %568 = vmatpush1.msra.mxu0 %v77
    %569 = vmatprep.subr.mxu0 0.0
    %570 = vmatpush1.msra.mxu0 0.0
    %571 = vmatprep.subr.mxu0 0.0
    %572 = vmatpush1.msra.mxu0 0.0
    %573 = vmatprep.subr.mxu0 0.0
    %574 = vmatpush1.msra.mxu0 0.0
    %575 = vmatprep.subr.mxu0 0.0
    %576 = vmatpush1.msra.mxu0 0.0
    %577 = vmatprep.subr.mxu0 0.0
    %578 = vmatpush1.msra.mxu0 0.0
    %579 = vmatprep.subr.mxu0 0.0
    %580 = vmatpush1.msra.mxu0 0.0
    %581 = vmatprep.subr.mxu0 0.0
    %582 = vmatpush1.msra.mxu0 0.0
    %583 = vmatprep.subr.mxu0 0.0
    %584 = vmatpush1.msra.mxu0 0.0
    %585 = vmatprep.subr.mxu0 0.0
    %586 = vmatpush1.msra.mxu0 0.0
    %587 = vmatprep.subr.mxu0 0.0
    %588 = vmatpush1.msra.mxu0 0.0
    %589 = vmatprep.subr.mxu0 0.0
    %590 = vmatpush1.msra.mxu0 0.0
    %591 = vmatprep.subr.mxu0 0.0
    %592 = vmatpush1.msra.mxu0 0.0
    %593 = vmatprep.subr.mxu0 0.0
    %594 = vmatpush1.msra.mxu0 0.0
    %595 = vmatprep.subr.mxu0 0.0
    %596 = vmatpush1.msra.mxu0 0.0
    %597 = vmatprep.subr.mxu0 0.0
    %598 = vmatpush1.msra.mxu0 0.0
    %599 = vmatprep.subr.mxu0 0.0
    %600 = vmatpush1.msra.mxu0 0.0
    %601 = vmatprep.subr.mxu0 0.0
    %602 = vmatpush1.msra.mxu0 0.0
    %603 = vmatprep.subr.mxu0 0.0
    %604 = vmatpush1.msra.mxu0 0.0
    %605 = vmatprep.subr.mxu0 0.0
    %606 = vmatpush1.msra.mxu0 0.0
    %607 = vmatprep.subr.mxu0 0.0
    %608 = vmatpush1.msra.mxu0 0.0
    %609 = vmatprep.subr.mxu0 0.0
    %610 = vmatpush1.msra.mxu0 0.0
    %611 = vmatprep.subr.mxu0 0.0
    %612 = vmatpush1.msra.mxu0 0.0
    %613 = vmatprep.subr.mxu0 0.0
    %614 = vmatpush1.msra.mxu0 0.0
    %615 = vmatprep.subr.mxu0 0.0
    %616 = vmatpush1.msra.mxu0 0.0
    %617 = vmatprep.subr.mxu0 0.0
    %618 = vmatpush1.msra.mxu0 0.0
    %619 = vmatprep.subr.mxu0 0.0
    %620 = vmatpush1.msra.mxu0 0.0
    %621 = vmatprep.subr.mxu0 0.0
    %622 = vmatpush1.msra.mxu0 0.0
    %623 = vmatprep.subr.mxu0 0.0
    %624 = vmatpush1.msra.mxu0 0.0
    %625 = vmatprep.subr.mxu0 0.0
    %626 = vmatpush1.msra.mxu0 0.0
    %627 = vmatprep.subr.mxu0 0.0
    %628 = vmatpush1.msra.mxu0 0.0
    %629 = vmatprep.mubr.f32.mxu0 0.0
    %630 = vmatmul.mubr.f32.gmra.mrb[0].mxu0 %v109
    %v631 = vpop.f32.mrb[0].mxu0
    %v632 = vadd.f32 %v90, %v631
    %v633 = vpop.f32.mrb[0].mxu0
    %v634 = vadd.f32 %v90, %v633
    %635 = vmatprep.mubr.f32.mxu0 0.0
    %636 = vmatmul.mubr.f32.gmra.mrb[0].mxu0 %v112
    %v637 = vpop.f32.mrb[0].mxu0
    %v638 = vadd.f32 %v95, %v637
    %v639 = vpop.f32.mrb[0].mxu0
    %v640 = vadd.f32 %v95, %v639
    %641 = vmatprep.mubr.f32.mxu0 0.0
    %642 = vmatmul.mubr.f32.gmra.mrb[0].mxu0 %v115
    %v643 = vpop.f32.mrb[0].mxu0
    %v644 = vadd.f32 %v100, %v643
    %v645 = vpop.f32.mrb[0].mxu0
    %v646 = vadd.f32 %v100, %v645
    %647 = vmatprep.mubr.f32.mxu0 0.0
    %648 = vmatmul.mubr.f32.gmra.mrb[0].mxu0 %v118
    %v649 = vpop.f32.mrb[0].mxu0
    %v650 = vadd.f32 %v105, %v649
    %v651 = vpop.f32.mrb[0].mxu0
    %v652 = vadd.f32 %v105, %v651
    %653 = vdwg.mxu0
    %654 = vmatprep.subr.mxu0 %v64
    %655 = vmatpush1.msra.mxu0 %v63
    %656 = vmatprep.subr.mxu0 %v80
    %657 = vmatpush1.msra.mxu0 %v79
    %658 = vmatprep.subr.mxu0 0.0
    %659 = vmatpush1.msra.mxu0 0.0
    %660 = vmatprep.subr.mxu0 0.0
    %661 = vmatpush1.msra.mxu0 0.0
    %662 = vmatprep.subr.mxu0 0.0
    %663 = vmatpush1.msra.mxu0 0.0
    %664 = vmatprep.subr.mxu0 0.0
    %665 = vmatpush1.msra.mxu0 0.0
    %666 = vmatprep.subr.mxu0 0.0
    %667 = vmatpush1.msra.mxu0 0.0
    %668 = vmatprep.subr.mxu0 0.0
    %669 = vmatpush1.msra.mxu0 0.0
    %670 = vmatprep.subr.mxu0 0.0
    %671 = vmatpush1.msra.mxu0 0.0
    %672 = vmatprep.subr.mxu0 0.0
    %673 = vmatpush1.msra.mxu0 0.0
    %674 = vmatprep.subr.mxu0 0.0
    %675 = vmatpush1.msra.mxu0 0.0
    %676 = vmatprep.subr.mxu0 0.0
    %677 = vmatpush1.msra.mxu0 0.0
    %678 = vmatprep.subr.mxu0 0.0
    %679 = vmatpush1.msra.mxu0 0.0
    %680 = vmatprep.subr.mxu0 0.0
    %681 = vmatpush1.msra.mxu0 0.0
    %682 = vmatprep.subr.mxu0 0.0
    %683 = vmatpush1.msra.mxu0 0.0
    %684 = vmatprep.subr.mxu0 0.0
    %685 = vmatpush1.msra.mxu0 0.0
    %686 = vmatprep.subr.mxu0 0.0
    %687 = vmatpush1.msra.mxu0 0.0
    %688 = vmatprep.subr.mxu0 0.0
    %689 = vmatpush1.msra.mxu0 0.0
    %690 = vmatprep.subr.mxu0 0.0
    %691 = vmatpush1.msra.mxu0 0.0
    %692 = vmatprep.subr.mxu0 0.0
    %693 = vmatpush1.msra.mxu0 0.0
    %694 = vmatprep.subr.mxu0 0.0
    %695 = vmatpush1.msra.mxu0 0.0
    %696 = vmatprep.subr.mxu0 0.0
    %697 = vmatpush1.msra.mxu0 0.0
    %698 = vmatprep.subr.mxu0 0.0
    %699 = vmatpush1.msra.mxu0 0.0
    %700 = vmatprep.subr.mxu0 0.0
    %701 = vmatpush1.msra.mxu0 0.0
    %702 = vmatprep.subr.mxu0 0.0
    %703 = vmatpush1.msra.mxu0 0.0
    %704 = vmatprep.subr.mxu0 0.0
    %705 = vmatpush1.msra.mxu0 0.0
    %706 = vmatprep.subr.mxu0 0.0
    %707 = vmatpush1.msra.mxu0 0.0
    %708 = vmatprep.subr.mxu0 0.0
    %709 = vmatpush1.msra.mxu0 0.0
    %710 = vmatprep.subr.mxu0 0.0
    %711 = vmatpush1.msra.mxu0 0.0
    %712 = vmatprep.subr.mxu0 0.0
    %713 = vmatpush1.msra.mxu0 0.0
    %714 = vmatprep.subr.mxu0 0.0
    %715 = vmatpush1.msra.mxu0 0.0
    %716 = vmatprep.subr.mxu0 0.0
    %717 = vmatpush1.msra.mxu0 0.0
    %718 = vmatprep.mubr.f32.mxu0 0.0
    %719 = vmatmul.mubr.f32.gmra.mrb[0].mxu0 %v109
    %v720 = vpop.f32.mrb[0].mxu0
    %v721 = vadd.f32 %v90, %v720
    %v722 = vpop.f32.mrb[0].mxu0
    %v723 = vadd.f32 %v90, %v722
    %724 = vmatprep.mubr.f32.mxu0 0.0
    %725 = vmatmul.mubr.f32.gmra.mrb[0].mxu0 %v112
    %v726 = vpop.f32.mrb[0].mxu0
    %v727 = vadd.f32 %v95, %v726
    %v728 = vpop.f32.mrb[0].mxu0
    %v729 = vadd.f32 %v95, %v728
    %730 = vmatprep.mubr.f32.mxu0 0.0
    %731 = vmatmul.mubr.f32.gmra.mrb[0].mxu0 %v115
    %v732 = vpop.f32.mrb[0].mxu0
    %v733 = vadd.f32 %v100, %v732
    %v734 = vpop.f32.mrb[0].mxu0
    %v735 = vadd.f32 %v100, %v734
    %736 = vmatprep.mubr.f32.mxu0 0.0
    %737 = vmatmul.mubr.f32.gmra.mrb[0].mxu0 %v118
    %v738 = vpop.f32.mrb[0].mxu0
    %v739 = vadd.f32 %v105, %v738
    %v740 = vpop.f32.mrb[0].mxu0
    %v741 = vadd.f32 %v105, %v740
    %742 = vdwg.mxu0
    %743 = vmatprep.subr.mxu0 %v66
    %744 = vmatpush1.msra.mxu0 %v65
    %745 = vmatprep.subr.mxu0 %v82
    %746 = vmatpush1.msra.mxu0 %v81
    %747 = vmatprep.subr.mxu0 0.0
    %748 = vmatpush1.msra.mxu0 0.0
    %749 = vmatprep.subr.mxu0 0.0
    %750 = vmatpush1.msra.mxu0 0.0
    %751 = vmatprep.subr.mxu0 0.0
    %752 = vmatpush1.msra.mxu0 0.0
    %753 = vmatprep.subr.mxu0 0.0
    %754 = vmatpush1.msra.mxu0 0.0
    %755 = vmatprep.subr.mxu0 0.0
    %756 = vmatpush1.msra.mxu0 0.0
    %757 = vmatprep.subr.mxu0 0.0
    %758 = vmatpush1.msra.mxu0 0.0
    %759 = vmatprep.subr.mxu0 0.0
    %760 = vmatpush1.msra.mxu0 0.0
    %761 = vmatprep.subr.mxu0 0.0
    %762 = vmatpush1.msra.mxu0 0.0
    %763 = vmatprep.subr.mxu0 0.0
    %764 = vmatpush1.msra.mxu0 0.0
    %765 = vmatprep.subr.mxu0 0.0
    %766 = vmatpush1.msra.mxu0 0.0
    %767 = vmatprep.subr.mxu0 0.0
    %768 = vmatpush1.msra.mxu0 0.0
    %769 = vmatprep.subr.mxu0 0.0
    %770 = vmatpush1.msra.mxu0 0.0
    %771 = vmatprep.subr.mxu0 0.0
    %772 = vmatpush1.msra.mxu0 0.0
    %773 = vmatprep.subr.mxu0 0.0
    %774 = vmatpush1.msra.mxu0 0.0
    %775 = vmatprep.subr.mxu0 0.0
    %776 = vmatpush1.msra.mxu0 0.0
    %777 = vmatprep.subr.mxu0 0.0
    %778 = vmatpush1.msra.mxu0 0.0
    %779 = vmatprep.subr.mxu0 0.0
    %780 = vmatpush1.msra.mxu0 0.0
    %781 = vmatprep.subr.mxu0 0.0
    %782 = vmatpush1.msra.mxu0 0.0
    %783 = vmatprep.subr.mxu0 0.0
    %784 = vmatpush1.msra.mxu0 0.0
    %785 = vmatprep.subr.mxu0 0.0
    %786 = vmatpush1.msra.mxu0 0.0
    %787 = vmatprep.subr.mxu0 0.0
    %788 = vmatpush1.msra.mxu0 0.0
    %789 = vmatprep.subr.mxu0 0.0
    %790 = vmatpush1.msra.mxu0 0.0
    %791 = vmatprep.subr.mxu0 0.0
    %792 = vmatpush1.msra.mxu0 0.0
    %793 = vmatprep.subr.mxu0 0.0
    %794 = vmatpush1.msra.mxu0 0.0
    %795 = vmatprep.subr.mxu0 0.0
    %796 = vmatpush1.msra.mxu0 0.0
    %797 = vmatprep.subr.mxu0 0.0
    %798 = vmatpush1.msra.mxu0 0.0
    %799 = vmatprep.subr.mxu0 0.0
    %800 = vmatpush1.msra.mxu0 0.0
    %801 = vmatprep.subr.mxu0 0.0
    %802 = vmatpush1.msra.mxu0 0.0
    %803 = vmatprep.subr.mxu0 0.0
    %804 = vmatpush1.msra.mxu0 0.0
    %805 = vmatprep.subr.mxu0 0.0
    %806 = vmatpush1.msra.mxu0 0.0
    %807 = vmatprep.mubr.f32.mxu0 0.0
    %808 = vmatmul.mubr.f32.gmra.mrb[0].mxu0 %v109
    %v809 = vpop.f32.mrb[0].mxu0
    %v810 = vadd.f32 %v90, %v809
    %v811 = vpop.f32.mrb[0].mxu0
    %v812 = vadd.f32 %v90, %v811
    %813 = vmatprep.mubr.f32.mxu0 0.0
    %814 = vmatmul.mubr.f32.gmra.mrb[0].mxu0 %v112
    %v815 = vpop.f32.mrb[0].mxu0
    %v816 = vadd.f32 %v95, %v815
    %v817 = vpop.f32.mrb[0].mxu0
    %v818 = vadd.f32 %v95, %v817
    %819 = vmatprep.mubr.f32.mxu0 0.0
    %820 = vmatmul.mubr.f32.gmra.mrb[0].mxu0 %v115
    %v821 = vpop.f32.mrb[0].mxu0
    %v822 = vadd.f32 %v100, %v821
    %v823 = vpop.f32.mrb[0].mxu0
    %v824 = vadd.f32 %v100, %v823
    %825 = vmatprep.mubr.f32.mxu0 0.0
    %826 = vmatmul.mubr.f32.gmra.mrb[0].mxu0 %v118
    %v827 = vpop.f32.mrb[0].mxu0
    %v828 = vadd.f32 %v105, %v827
    %v829 = vpop.f32.mrb[0].mxu0
    %v830 = vadd.f32 %v105, %v829
    %831 = vdwg.mxu0
    %v832 = vmax.f32 %v187, 0.0
    %v833 = vmax.f32 %v189, 0.0
    %v834 = vmax.f32 %v276, 0.0
    %v835 = vmax.f32 %v278, 0.0
    %v836 = vmax.f32 %v365, 0.0
    %v837 = vmax.f32 %v367, 0.0
    %v838 = vmax.f32 %v454, 0.0
    %v839 = vmax.f32 %v456, 0.0
    %v840 = vmax.f32 %v543, 0.0
    %v841 = vmax.f32 %v545, 0.0
    %v842 = vmax.f32 %v632, 0.0
    %v843 = vmax.f32 %v634, 0.0
    %v844 = vmax.f32 %v721, 0.0
    %v845 = vmax.f32 %v723, 0.0
    %v846 = vmax.f32 %v810, 0.0
    %v847 = vmax.f32 %v812, 0.0
    %v848 = vmax.f32 %v193, 0.0
    %v849 = vmax.f32 %v195, 0.0
    %v850 = vmax.f32 %v282, 0.0
    %v851 = vmax.f32 %v284, 0.0
    %v852 = vmax.f32 %v371, 0.0
    %v853 = vmax.f32 %v373, 0.0
    %v854 = vmax.f32 %v460, 0.0
    %v855 = vmax.f32 %v462, 0.0
    %v856 = vmax.f32 %v549, 0.0
    %v857 = vmax.f32 %v551, 0.0
    %v858 = vmax.f32 %v638, 0.0
    %v859 = vmax.f32 %v640, 0.0
    %v860 = vmax.f32 %v727, 0.0
    %v861 = vmax.f32 %v729, 0.0
    %v862 = vmax.f32 %v816, 0.0
    %v863 = vmax.f32 %v818, 0.0
    %v864 = vmax.f32 %v199, 0.0
    %v865 = vmax.f32 %v201, 0.0
    %v866 = vmax.f32 %v288, 0.0
    %v867 = vmax.f32 %v290, 0.0
    %v868 = vmax.f32 %v377, 0.0
    %v869 = vmax.f32 %v379, 0.0
    %v870 = vmax.f32 %v466, 0.0
    %v871 = vmax.f32 %v468, 0.0
    %v872 = vmax.f32 %v555, 0.0
    %v873 = vmax.f32 %v557, 0.0
    %v874 = vmax.f32 %v644, 0.0
    %v875 = vmax.f32 %v646, 0.0
    %v876 = vmax.f32 %v733, 0.0
    %v877 = vmax.f32 %v735, 0.0
    %v878 = vmax.f32 %v822, 0.0
    %v879 = vmax.f32 %v824, 0.0
    %v880 = vmax.f32 %v205, 0.0
    %v881 = vmax.f32 %v207, 0.0
    %v882 = vmax.f32 %v294, 0.0
    %v883 = vmax.f32 %v296, 0.0
    %v884 = vmax.f32 %v383, 0.0
    %v885 = vmax.f32 %v385, 0.0
    %v886 = vmax.f32 %v472, 0.0
    %v887 = vmax.f32 %v474, 0.0
    %v888 = vmax.f32 %v561, 0.0
    %v889 = vmax.f32 %v563, 0.0
    %v890 = vmax.f32 %v650, 0.0
    %v891 = vmax.f32 %v652, 0.0
    %v892 = vmax.f32 %v739, 0.0
    %v893 = vmax.f32 %v741, 0.0
    %v894 = vmax.f32 %v828, 0.0
    %v895 = vmax.f32 %v830, 0.0
    %v896 = vld [vmem:[%s3] sm:$0xff]
    %v897 = vld [vmem:[%s3 + $0x8] sm:$0xff]
    %v898 = vld [vmem:[%s3 + $0x10] sm:$0xff]
    %v899 = vld [vmem:[%s3 + $0x18] sm:$0xff]
    %v900 = vld [vmem:[%s4] sm:$0xff]
    %v901 = vld [vmem:[%s4 + $0x8] sm:$0xff]
    %v902 = vld [vmem:[%s4 + $0x10] sm:$0xff]
    %v903 = vld [vmem:[%s4 + $0x18] sm:$0xff]
    %905 = vset.pattern.permute.xlu0 0
    %906 = vperm.xlu0 %905, %v900
    %v907 = vpop.permute.xlu0 %906
    %910 = vset.pattern.permute.xlu0 0
    %911 = vperm.xlu0 %910, %v901
    %v912 = vpop.permute.xlu0 %911
    %915 = vset.pattern.permute.xlu0 0
    %916 = vperm.xlu0 %915, %v902
    %v917 = vpop.permute.xlu0 %916
    %920 = vset.pattern.permute.xlu0 0
    %921 = vperm.xlu0 %920, %v903
    %v922 = vpop.permute.xlu0 %921
    %vm924 = vcmask 261120
    %v926 = vsel %vm924, %v896, 0
    %v929 = vsel %vm924, %v897, 0
    %v932 = vsel %vm924, %v898, 0
    %v935 = vsel %vm924, %v899, 0
    %937 = vmatprep.subr.mxu0 %v833
    %938 = vmatpush1.msra.mxu0 %v832
    %939 = vmatprep.subr.mxu0 %v849
    %940 = vmatpush1.msra.mxu0 %v848
    %941 = vmatprep.subr.mxu0 %v865
    %942 = vmatpush1.msra.mxu0 %v864
    %943 = vmatprep.subr.mxu0 %v881
    %944 = vmatpush1.msra.mxu0 %v880
    %945 = vmatprep.subr.mxu0 0.0
    %946 = vmatpush1.msra.mxu0 0.0
    %947 = vmatprep.subr.mxu0 0.0
    %948 = vmatpush1.msra.mxu0 0.0
    %949 = vmatprep.subr.mxu0 0.0
    %950 = vmatpush1.msra.mxu0 0.0
    %951 = vmatprep.subr.mxu0 0.0
    %952 = vmatpush1.msra.mxu0 0.0
    %953 = vmatprep.subr.mxu0 0.0
    %954 = vmatpush1.msra.mxu0 0.0
    %955 = vmatprep.subr.mxu0 0.0
    %956 = vmatpush1.msra.mxu0 0.0
    %957 = vmatprep.subr.mxu0 0.0
    %958 = vmatpush1.msra.mxu0 0.0
    %959 = vmatprep.subr.mxu0 0.0
    %960 = vmatpush1.msra.mxu0 0.0
    %961 = vmatprep.subr.mxu0 0.0
    %962 = vmatpush1.msra.mxu0 0.0
    %963 = vmatprep.subr.mxu0 0.0
    %964 = vmatpush1.msra.mxu0 0.0
    %965 = vmatprep.subr.mxu0 0.0
    %966 = vmatpush1.msra.mxu0 0.0
    %967 = vmatprep.subr.mxu0 0.0
    %968 = vmatpush1.msra.mxu0 0.0
    %969 = vmatprep.subr.mxu0 0.0
    %970 = vmatpush1.msra.mxu0 0.0
    %971 = vmatprep.subr.mxu0 0.0
    %972 = vmatpush1.msra.mxu0 0.0
    %973 = vmatprep.subr.mxu0 0.0
    %974 = vmatpush1.msra.mxu0 0.0
    %975 = vmatprep.subr.mxu0 0.0
    %976 = vmatpush1.msra.mxu0 0.0
    %977 = vmatprep.subr.mxu0 0.0
    %978 = vmatpush1.msra.mxu0 0.0
    %979 = vmatprep.subr.mxu0 0.0
    %980 = vmatpush1.msra.mxu0 0.0
    %981 = vmatprep.subr.mxu0 0.0
    %982 = vmatpush1.msra.mxu0 0.0
    %983 = vmatprep.subr.mxu0 0.0
    %984 = vmatpush1.msra.mxu0 0.0
    %985 = vmatprep.subr.mxu0 0.0
    %986 = vmatpush1.msra.mxu0 0.0
    %987 = vmatprep.subr.mxu0 0.0
    %988 = vmatpush1.msra.mxu0 0.0
    %989 = vmatprep.subr.mxu0 0.0
    %990 = vmatpush1.msra.mxu0 0.0
    %991 = vmatprep.subr.mxu0 0.0
    %992 = vmatpush1.msra.mxu0 0.0
    %993 = vmatprep.subr.mxu0 0.0
    %994 = vmatpush1.msra.mxu0 0.0
    %995 = vmatprep.subr.mxu0 0.0
    %996 = vmatpush1.msra.mxu0 0.0
    %997 = vmatprep.subr.mxu0 0.0
    %998 = vmatpush1.msra.mxu0 0.0
    %999 = vmatprep.subr.mxu0 0.0
    %1000 = vmatpush1.msra.mxu0 0.0
    %1001 = vmatprep.mubr.f32.mxu0 0.0
    %1002 = vmatmul.mubr.f32.gmra.mrb[0].mxu0 %v926
    %v1003 = vpop.f32.mrb[0].mxu0
    %v1004 = vadd.f32 %v907, %v1003
    %v1005 = vpop.f32.mrb[0].mxu0
    %v1006 = vadd.f32 %v907, %v1005
    %1007 = vmatprep.mubr.f32.mxu0 0.0
    %1008 = vmatmul.mubr.f32.gmra.mrb[0].mxu0 %v929
    %v1009 = vpop.f32.mrb[0].mxu0
    %v1010 = vadd.f32 %v912, %v1009
    %v1011 = vpop.f32.mrb[0].mxu0
    %v1012 = vadd.f32 %v912, %v1011
    %1013 = vmatprep.mubr.f32.mxu0 0.0
    %1014 = vmatmul.mubr.f32.gmra.mrb[0].mxu0 %v932
    %v1015 = vpop.f32.mrb[0].mxu0
    %v1016 = vadd.f32 %v917, %v1015
    %v1017 = vpop.f32.mrb[0].mxu0
    %v1018 = vadd.f32 %v917, %v1017
    %1019 = vmatprep.mubr.f32.mxu0 0.0
    %1020 = vmatmul.mubr.f32.gmra.mrb[0].mxu0 %v935
    %v1021 = vpop.f32.mrb[0].mxu0
    %v1022 = vadd.f32 %v922, %v1021
    %v1023 = vpop.f32.mrb[0].mxu0
    %v1024 = vadd.f32 %v922, %v1023
    %1025 = vdwg.mxu0
    %1026 = vmatprep.subr.mxu0 %v835
    %1027 = vmatpush1.msra.mxu0 %v834
    %1028 = vmatprep.subr.mxu0 %v851
    %1029 = vmatpush1.msra.mxu0 %v850
    %1030 = vmatprep.subr.mxu0 %v867
    %1031 = vmatpush1.msra.mxu0 %v866
    %1032 = vmatprep.subr.mxu0 %v883
    %1033 = vmatpush1.msra.mxu0 %v882
    %1034 = vmatprep.subr.mxu0 0.0
    %1035 = vmatpush1.msra.mxu0 0.0
    %1036 = vmatprep.subr.mxu0 0.0
    %1037 = vmatpush1.msra.mxu0 0.0
    %1038 = vmatprep.subr.mxu0 0.0
    %1039 = vmatpush1.msra.mxu0 0.0
    %1040 = vmatprep.subr.mxu0 0.0
    %1041 = vmatpush1.msra.mxu0 0.0
    %1042 = vmatprep.subr.mxu0 0.0
    %1043 = vmatpush1.msra.mxu0 0.0
    %1044 = vmatprep.subr.mxu0 0.0
    %1045 = vmatpush1.msra.mxu0 0.0
    %1046 = vmatprep.subr.mxu0 0.0
    %1047 = vmatpush1.msra.mxu0 0.0
    %1048 = vmatprep.subr.mxu0 0.0
    %1049 = vmatpush1.msra.mxu0 0.0
    %1050 = vmatprep.subr.mxu0 0.0
    %1051 = vmatpush1.msra.mxu0 0.0
    %1052 = vmatprep.subr.mxu0 0.0
    %1053 = vmatpush1.msra.mxu0 0.0
    %1054 = vmatprep.subr.mxu0 0.0
    %1055 = vmatpush1.msra.mxu0 0.0
    %1056 = vmatprep.subr.mxu0 0.0
    %1057 = vmatpush1.msra.mxu0 0.0
    %1058 = vmatprep.subr.mxu0 0.0
    %1059 = vmatpush1.msra.mxu0 0.0
    %1060 = vmatprep.subr.mxu0 0.0
    %1061 = vmatpush1.msra.mxu0 0.0
    %1062 = vmatprep.subr.mxu0 0.0
    %1063 = vmatpush1.msra.mxu0 0.0
    %1064 = vmatprep.subr.mxu0 0.0
    %1065 = vmatpush1.msra.mxu0 0.0
    %1066 = vmatprep.subr.mxu0 0.0
    %1067 = vmatpush1.msra.mxu0 0.0
    %1068 = vmatprep.subr.mxu0 0.0
    %1069 = vmatpush1.msra.mxu0 0.0
    %1070 = vmatprep.subr.mxu0 0.0
    %1071 = vmatpush1.msra.mxu0 0.0
    %1072 = vmatprep.subr.mxu0 0.0
    %1073 = vmatpush1.msra.mxu0 0.0
    %1074 = vmatprep.subr.mxu0 0.0
    %1075 = vmatpush1.msra.mxu0 0.0
    %1076 = vmatprep.subr.mxu0 0.0
    %1077 = vmatpush1.msra.mxu0 0.0
    %1078 = vmatprep.subr.mxu0 0.0
    %1079 = vmatpush1.msra.mxu0 0.0
    %1080 = vmatprep.subr.mxu0 0.0
    %1081 = vmatpush1.msra.mxu0 0.0
    %1082 = vmatprep.subr.mxu0 0.0
    %1083 = vmatpush1.msra.mxu0 0.0
    %1084 = vmatprep.subr.mxu0 0.0
    %1085 = vmatpush1.msra.mxu0 0.0
    %1086 = vmatprep.subr.mxu0 0.0
    %1087 = vmatpush1.msra.mxu0 0.0
    %1088 = vmatprep.subr.mxu0 0.0
    %1089 = vmatpush1.msra.mxu0 0.0
    %1090 = vmatprep.mubr.f32.mxu0 0.0
    %1091 = vmatmul.mubr.f32.gmra.mrb[0].mxu0 %v926
    %v1092 = vpop.f32.mrb[0].mxu0
    %v1093 = vadd.f32 %v907, %v1092
    %v1094 = vpop.f32.mrb[0].mxu0
    %v1095 = vadd.f32 %v907, %v1094
    %1096 = vmatprep.mubr.f32.mxu0 0.0
    %1097 = vmatmul.mubr.f32.gmra.mrb[0].mxu0 %v929
    %v1098 = vpop.f32.mrb[0].mxu0
    %v1099 = vadd.f32 %v912, %v1098
    %v1100 = vpop.f32.mrb[0].mxu0
    %v1101 = vadd.f32 %v912, %v1100
    %1102 = vmatprep.mubr.f32.mxu0 0.0
    %1103 = vmatmul.mubr.f32.gmra.mrb[0].mxu0 %v932
    %v1104 = vpop.f32.mrb[0].mxu0
    %v1105 = vadd.f32 %v917, %v1104
    %v1106 = vpop.f32.mrb[0].mxu0
    %v1107 = vadd.f32 %v917, %v1106
    %1108 = vmatprep.mubr.f32.mxu0 0.0
    %1109 = vmatmul.mubr.f32.gmra.mrb[0].mxu0 %v935
    %v1110 = vpop.f32.mrb[0].mxu0
    %v1111 = vadd.f32 %v922, %v1110
    %v1112 = vpop.f32.mrb[0].mxu0
    %v1113 = vadd.f32 %v922, %v1112
    %1114 = vdwg.mxu0
    %1115 = vmatprep.subr.mxu0 %v837
    %1116 = vmatpush1.msra.mxu0 %v836
    %1117 = vmatprep.subr.mxu0 %v853
    %1118 = vmatpush1.msra.mxu0 %v852
    %1119 = vmatprep.subr.mxu0 %v869
    %1120 = vmatpush1.msra.mxu0 %v868
    %1121 = vmatprep.subr.mxu0 %v885
    %1122 = vmatpush1.msra.mxu0 %v884
    %1123 = vmatprep.subr.mxu0 0.0
    %1124 = vmatpush1.msra.mxu0 0.0
    %1125 = vmatprep.subr.mxu0 0.0
    %1126 = vmatpush1.msra.mxu0 0.0
    %1127 = vmatprep.subr.mxu0 0.0
    %1128 = vmatpush1.msra.mxu0 0.0
    %1129 = vmatprep.subr.mxu0 0.0
    %1130 = vmatpush1.msra.mxu0 0.0
    %1131 = vmatprep.subr.mxu0 0.0
    %1132 = vmatpush1.msra.mxu0 0.0
    %1133 = vmatprep.subr.mxu0 0.0
    %1134 = vmatpush1.msra.mxu0 0.0
    %1135 = vmatprep.subr.mxu0 0.0
    %1136 = vmatpush1.msra.mxu0 0.0
    %1137 = vmatprep.subr.mxu0 0.0
    %1138 = vmatpush1.msra.mxu0 0.0
    %1139 = vmatprep.subr.mxu0 0.0
    %1140 = vmatpush1.msra.mxu0 0.0
    %1141 = vmatprep.subr.mxu0 0.0
    %1142 = vmatpush1.msra.mxu0 0.0
    %1143 = vmatprep.subr.mxu0 0.0
    %1144 = vmatpush1.msra.mxu0 0.0
    %1145 = vmatprep.subr.mxu0 0.0
    %1146 = vmatpush1.msra.mxu0 0.0
    %1147 = vmatprep.subr.mxu0 0.0
    %1148 = vmatpush1.msra.mxu0 0.0
    %1149 = vmatprep.subr.mxu0 0.0
    %1150 = vmatpush1.msra.mxu0 0.0
    %1151 = vmatprep.subr.mxu0 0.0
    %1152 = vmatpush1.msra.mxu0 0.0
    %1153 = vmatprep.subr.mxu0 0.0
    %1154 = vmatpush1.msra.mxu0 0.0
    %1155 = vmatprep.subr.mxu0 0.0
    %1156 = vmatpush1.msra.mxu0 0.0
    %1157 = vmatprep.subr.mxu0 0.0
    %1158 = vmatpush1.msra.mxu0 0.0
    %1159 = vmatprep.subr.mxu0 0.0
    %1160 = vmatpush1.msra.mxu0 0.0
    %1161 = vmatprep.subr.mxu0 0.0
    %1162 = vmatpush1.msra.mxu0 0.0
    %1163 = vmatprep.subr.mxu0 0.0
    %1164 = vmatpush1.msra.mxu0 0.0
    %1165 = vmatprep.subr.mxu0 0.0
    %1166 = vmatpush1.msra.mxu0 0.0
    %1167 = vmatprep.subr.mxu0 0.0
    %1168 = vmatpush1.msra.mxu0 0.0
    %1169 = vmatprep.subr.mxu0 0.0
    %1170 = vmatpush1.msra.mxu0 0.0
    %1171 = vmatprep.subr.mxu0 0.0
    %1172 = vmatpush1.msra.mxu0 0.0
    %1173 = vmatprep.subr.mxu0 0.0
    %1174 = vmatpush1.msra.mxu0 0.0
    %1175 = vmatprep.subr.mxu0 0.0
    %1176 = vmatpush1.msra.mxu0 0.0
    %1177 = vmatprep.subr.mxu0 0.0
    %1178 = vmatpush1.msra.mxu0 0.0
    %1179 = vmatprep.mubr.f32.mxu0 0.0
    %1180 = vmatmul.mubr.f32.gmra.mrb[0].mxu0 %v926
    %v1181 = vpop.f32.mrb[0].mxu0
    %v1182 = vadd.f32 %v907, %v1181
    %v1183 = vpop.f32.mrb[0].mxu0
    %v1184 = vadd.f32 %v907, %v1183
    %1185 = vmatprep.mubr.f32.mxu0 0.0
    %1186 = vmatmul.mubr.f32.gmra.mrb[0].mxu0 %v929
    %v1187 = vpop.f32.mrb[0].mxu0
    %v1188 = vadd.f32 %v912, %v1187
    %v1189 = vpop.f32.mrb[0].mxu0
    %v1190 = vadd.f32 %v912, %v1189
    %1191 = vmatprep.mubr.f32.mxu0 0.0
    %1192 = vmatmul.mubr.f32.gmra.mrb[0].mxu0 %v932
    %v1193 = vpop.f32.mrb[0].mxu0
    %v1194 = vadd.f32 %v917, %v1193
    %v1195 = vpop.f32.mrb[0].mxu0
    %v1196 = vadd.f32 %v917, %v1195
    %1197 = vmatprep.mubr.f32.mxu0 0.0
    %1198 = vmatmul.mubr.f32.gmra.mrb[0].mxu0 %v935
    %v1199 = vpop.f32.mrb[0].mxu0
    %v1200 = vadd.f32 %v922, %v1199
    %v1201 = vpop.f32.mrb[0].mxu0
    %v1202 = vadd.f32 %v922, %v1201
    %1203 = vdwg.mxu0
    %1204 = vmatprep.subr.mxu0 %v839
    %1205 = vmatpush1.msra.mxu0 %v838
    %1206 = vmatprep.subr.mxu0 %v855
    %1207 = vmatpush1.msra.mxu0 %v854
    %1208 = vmatprep.subr.mxu0 %v871
    %1209 = vmatpush1.msra.mxu0 %v870
    %1210 = vmatprep.subr.mxu0 %v887
    %1211 = vmatpush1.msra.mxu0 %v886
    %1212 = vmatprep.subr.mxu0 0.0
    %1213 = vmatpush1.msra.mxu0 0.0
    %1214 = vmatprep.subr.mxu0 0.0
    %1215 = vmatpush1.msra.mxu0 0.0
    %1216 = vmatprep.subr.mxu0 0.0
    %1217 = vmatpush1.msra.mxu0 0.0
    %1218 = vmatprep.subr.mxu0 0.0
    %1219 = vmatpush1.msra.mxu0 0.0
    %1220 = vmatprep.subr.mxu0 0.0
    %1221 = vmatpush1.msra.mxu0 0.0
    %1222 = vmatprep.subr.mxu0 0.0
    %1223 = vmatpush1.msra.mxu0 0.0
    %1224 = vmatprep.subr.mxu0 0.0
    %1225 = vmatpush1.msra.mxu0 0.0
    %1226 = vmatprep.subr.mxu0 0.0
    %1227 = vmatpush1.msra.mxu0 0.0
    %1228 = vmatprep.subr.mxu0 0.0
    %1229 = vmatpush1.msra.mxu0 0.0
    %1230 = vmatprep.subr.mxu0 0.0
    %1231 = vmatpush1.msra.mxu0 0.0
    %1232 = vmatprep.subr.mxu0 0.0
    %1233 = vmatpush1.msra.mxu0 0.0
    %1234 = vmatprep.subr.mxu0 0.0
    %1235 = vmatpush1.msra.mxu0 0.0
    %1236 = vmatprep.subr.mxu0 0.0
    %1237 = vmatpush1.msra.mxu0 0.0
    %1238 = vmatprep.subr.mxu0 0.0
    %1239 = vmatpush1.msra.mxu0 0.0
    %1240 = vmatprep.subr.mxu0 0.0
    %1241 = vmatpush1.msra.mxu0 0.0
    %1242 = vmatprep.subr.mxu0 0.0
    %1243 = vmatpush1.msra.mxu0 0.0
    %1244 = vmatprep.subr.mxu0 0.0
    %1245 = vmatpush1.msra.mxu0 0.0
    %1246 = vmatprep.subr.mxu0 0.0
    %1247 = vmatpush1.msra.mxu0 0.0
    %1248 = vmatprep.subr.mxu0 0.0
    %1249 = vmatpush1.msra.mxu0 0.0
    %1250 = vmatprep.subr.mxu0 0.0
    %1251 = vmatpush1.msra.mxu0 0.0
    %1252 = vmatprep.subr.mxu0 0.0
    %1253 = vmatpush1.msra.mxu0 0.0
    %1254 = vmatprep.subr.mxu0 0.0
    %1255 = vmatpush1.msra.mxu0 0.0
    %1256 = vmatprep.subr.mxu0 0.0
    %1257 = vmatpush1.msra.mxu0 0.0
    %1258 = vmatprep.subr.mxu0 0.0
    %1259 = vmatpush1.msra.mxu0 0.0
    %1260 = vmatprep.subr.mxu0 0.0
    %1261 = vmatpush1.msra.mxu0 0.0
    %1262 = vmatprep.subr.mxu0 0.0
    %1263 = vmatpush1.msra.mxu0 0.0
    %1264 = vmatprep.subr.mxu0 0.0
    %1265 = vmatpush1.msra.mxu0 0.0
    %1266 = vmatprep.subr.mxu0 0.0
    %1267 = vmatpush1.msra.mxu0 0.0
    %1268 = vmatprep.mubr.f32.mxu0 0.0
    %1269 = vmatmul.mubr.f32.gmra.mrb[0].mxu0 %v926
    %v1270 = vpop.f32.mrb[0].mxu0
    %v1271 = vadd.f32 %v907, %v1270
    %v1272 = vpop.f32.mrb[0].mxu0
    %v1273 = vadd.f32 %v907, %v1272
    %1274 = vmatprep.mubr.f32.mxu0 0.0
    %1275 = vmatmul.mubr.f32.gmra.mrb[0].mxu0 %v929
    %v1276 = vpop.f32.mrb[0].mxu0
    %v1277 = vadd.f32 %v912, %v1276
    %v1278 = vpop.f32.mrb[0].mxu0
    %v1279 = vadd.f32 %v912, %v1278
    %1280 = vmatprep.mubr.f32.mxu0 0.0
    %1281 = vmatmul.mubr.f32.gmra.mrb[0].mxu0 %v932
    %v1282 = vpop.f32.mrb[0].mxu0
    %v1283 = vadd.f32 %v917, %v1282
    %v1284 = vpop.f32.mrb[0].mxu0
    %v1285 = vadd.f32 %v917, %v1284
    %1286 = vmatprep.mubr.f32.mxu0 0.0
    %1287 = vmatmul.mubr.f32.gmra.mrb[0].mxu0 %v935
    %v1288 = vpop.f32.mrb[0].mxu0
    %v1289 = vadd.f32 %v922, %v1288
    %v1290 = vpop.f32.mrb[0].mxu0
    %v1291 = vadd.f32 %v922, %v1290
    %1292 = vdwg.mxu0
    %1293 = vmatprep.subr.mxu0 %v841
    %1294 = vmatpush1.msra.mxu0 %v840
    %1295 = vmatprep.subr.mxu0 %v857
    %1296 = vmatpush1.msra.mxu0 %v856
    %1297 = vmatprep.subr.mxu0 %v873
    %1298 = vmatpush1.msra.mxu0 %v872
    %1299 = vmatprep.subr.mxu0 %v889
    %1300 = vmatpush1.msra.mxu0 %v888
    %1301 = vmatprep.subr.mxu0 0.0
    %1302 = vmatpush1.msra.mxu0 0.0
    %1303 = vmatprep.subr.mxu0 0.0
    %1304 = vmatpush1.msra.mxu0 0.0
    %1305 = vmatprep.subr.mxu0 0.0
    %1306 = vmatpush1.msra.mxu0 0.0
    %1307 = vmatprep.subr.mxu0 0.0
    %1308 = vmatpush1.msra.mxu0 0.0
    %1309 = vmatprep.subr.mxu0 0.0
    %1310 = vmatpush1.msra.mxu0 0.0
    %1311 = vmatprep.subr.mxu0 0.0
    %1312 = vmatpush1.msra.mxu0 0.0
    %1313 = vmatprep.subr.mxu0 0.0
    %1314 = vmatpush1.msra.mxu0 0.0
    %1315 = vmatprep.subr.mxu0 0.0
    %1316 = vmatpush1.msra.mxu0 0.0
    %1317 = vmatprep.subr.mxu0 0.0
    %1318 = vmatpush1.msra.mxu0 0.0
    %1319 = vmatprep.subr.mxu0 0.0
    %1320 = vmatpush1.msra.mxu0 0.0
    %1321 = vmatprep.subr.mxu0 0.0
    %1322 = vmatpush1.msra.mxu0 0.0
    %1323 = vmatprep.subr.mxu0 0.0
    %1324 = vmatpush1.msra.mxu0 0.0
    %1325 = vmatprep.subr.mxu0 0.0
    %1326 = vmatpush1.msra.mxu0 0.0
    %1327 = vmatprep.subr.mxu0 0.0
    %1328 = vmatpush1.msra.mxu0 0.0
    %1329 = vmatprep.subr.mxu0 0.0
    %1330 = vmatpush1.msra.mxu0 0.0
    %1331 = vmatprep.subr.mxu0 0.0
    %1332 = vmatpush1.msra.mxu0 0.0
    %1333 = vmatprep.subr.mxu0 0.0
    %1334 = vmatpush1.msra.mxu0 0.0
    %1335 = vmatprep.subr.mxu0 0.0
    %1336 = vmatpush1.msra.mxu0 0.0
    %1337 = vmatprep.subr.mxu0 0.0
    %1338 = vmatpush1.msra.mxu0 0.0
    %1339 = vmatprep.subr.mxu0 0.0
    %1340 = vmatpush1.msra.mxu0 0.0
    %1341 = vmatprep.subr.mxu0 0.0
    %1342 = vmatpush1.msra.mxu0 0.0
    %1343 = vmatprep.subr.mxu0 0.0
    %1344 = vmatpush1.msra.mxu0 0.0
    %1345 = vmatprep.subr.mxu0 0.0
    %1346 = vmatpush1.msra.mxu0 0.0
    %1347 = vmatprep.subr.mxu0 0.0
    %1348 = vmatpush1.msra.mxu0 0.0
    %1349 = vmatprep.subr.mxu0 0.0
    %1350 = vmatpush1.msra.mxu0 0.0
    %1351 = vmatprep.subr.mxu0 0.0
    %1352 = vmatpush1.msra.mxu0 0.0
    %1353 = vmatprep.subr.mxu0 0.0
    %1354 = vmatpush1.msra.mxu0 0.0
    %1355 = vmatprep.subr.mxu0 0.0
    %1356 = vmatpush1.msra.mxu0 0.0
    %1357 = vmatprep.mubr.f32.mxu0 0.0
    %1358 = vmatmul.mubr.f32.gmra.mrb[0].mxu0 %v926
    %v1359 = vpop.f32.mrb[0].mxu0
    %v1360 = vadd.f32 %v907, %v1359
    %v1361 = vpop.f32.mrb[0].mxu0
    %v1362 = vadd.f32 %v907, %v1361
    %1363 = vmatprep.mubr.f32.mxu0 0.0
    %1364 = vmatmul.mubr.f32.gmra.mrb[0].mxu0 %v929
    %v1365 = vpop.f32.mrb[0].mxu0
    %v1366 = vadd.f32 %v912, %v1365
    %v1367 = vpop.f32.mrb[0].mxu0
    %v1368 = vadd.f32 %v912, %v1367
    %1369 = vmatprep.mubr.f32.mxu0 0.0
    %1370 = vmatmul.mubr.f32.gmra.mrb[0].mxu0 %v932
    %v1371 = vpop.f32.mrb[0].mxu0
    %v1372 = vadd.f32 %v917, %v1371
    %v1373 = vpop.f32.mrb[0].mxu0
    %v1374 = vadd.f32 %v917, %v1373
    %1375 = vmatprep.mubr.f32.mxu0 0.0
    %1376 = vmatmul.mubr.f32.gmra.mrb[0].mxu0 %v935
    %v1377 = vpop.f32.mrb[0].mxu0
    %v1378 = vadd.f32 %v922, %v1377
    %v1379 = vpop.f32.mrb[0].mxu0
    %v1380 = vadd.f32 %v922, %v1379
    %1381 = vdwg.mxu0
    %1382 = vmatprep.subr.mxu0 %v843
    %1383 = vmatpush1.msra.mxu0 %v842
    %1384 = vmatprep.subr.mxu0 %v859
    %1385 = vmatpush1.msra.mxu0 %v858
    %1386 = vmatprep.subr.mxu0 %v875
    %1387 = vmatpush1.msra.mxu0 %v874
    %1388 = vmatprep.subr.mxu0 %v891
    %1389 = vmatpush1.msra.mxu0 %v890
    %1390 = vmatprep.subr.mxu0 0.0
    %1391 = vmatpush1.msra.mxu0 0.0
    %1392 = vmatprep.subr.mxu0 0.0
    %1393 = vmatpush1.msra.mxu0 0.0
    %1394 = vmatprep.subr.mxu0 0.0
    %1395 = vmatpush1.msra.mxu0 0.0
    %1396 = vmatprep.subr.mxu0 0.0
    %1397 = vmatpush1.msra.mxu0 0.0
    %1398 = vmatprep.subr.mxu0 0.0
    %1399 = vmatpush1.msra.mxu0 0.0
    %1400 = vmatprep.subr.mxu0 0.0
    %1401 = vmatpush1.msra.mxu0 0.0
    %1402 = vmatprep.subr.mxu0 0.0
    %1403 = vmatpush1.msra.mxu0 0.0
    %1404 = vmatprep.subr.mxu0 0.0
    %1405 = vmatpush1.msra.mxu0 0.0
    %1406 = vmatprep.subr.mxu0 0.0
    %1407 = vmatpush1.msra.mxu0 0.0
    %1408 = vmatprep.subr.mxu0 0.0
    %1409 = vmatpush1.msra.mxu0 0.0
    %1410 = vmatprep.subr.mxu0 0.0
    %1411 = vmatpush1.msra.mxu0 0.0
    %1412 = vmatprep.subr.mxu0 0.0
    %1413 = vmatpush1.msra.mxu0 0.0
    %1414 = vmatprep.subr.mxu0 0.0
    %1415 = vmatpush1.msra.mxu0 0.0
    %1416 = vmatprep.subr.mxu0 0.0
    %1417 = vmatpush1.msra.mxu0 0.0
    %1418 = vmatprep.subr.mxu0 0.0
    %1419 = vmatpush1.msra.mxu0 0.0
    %1420 = vmatprep.subr.mxu0 0.0
    %1421 = vmatpush1.msra.mxu0 0.0
    %1422 = vmatprep.subr.mxu0 0.0
    %1423 = vmatpush1.msra.mxu0 0.0
    %1424 = vmatprep.subr.mxu0 0.0
    %1425 = vmatpush1.msra.mxu0 0.0
    %1426 = vmatprep.subr.mxu0 0.0
    %1427 = vmatpush1.msra.mxu0 0.0
    %1428 = vmatprep.subr.mxu0 0.0
    %1429 = vmatpush1.msra.mxu0 0.0
    %1430 = vmatprep.subr.mxu0 0.0
    %1431 = vmatpush1.msra.mxu0 0.0
    %1432 = vmatprep.subr.mxu0 0.0
    %1433 = vmatpush1.msra.mxu0 0.0
    %1434 = vmatprep.subr.mxu0 0.0
    %1435 = vmatpush1.msra.mxu0 0.0
    %1436 = vmatprep.subr.mxu0 0.0
    %1437 = vmatpush1.msra.mxu0 0.0
    %1438 = vmatprep.subr.mxu0 0.0
    %1439 = vmatpush1.msra.mxu0 0.0
    %1440 = vmatprep.subr.mxu0 0.0
    %1441 = vmatpush1.msra.mxu0 0.0
    %1442 = vmatprep.subr.mxu0 0.0
    %1443 = vmatpush1.msra.mxu0 0.0
    %1444 = vmatprep.subr.mxu0 0.0
    %1445 = vmatpush1.msra.mxu0 0.0
    %1446 = vmatprep.mubr.f32.mxu0 0.0
    %1447 = vmatmul.mubr.f32.gmra.mrb[0].mxu0 %v926
    %v1448 = vpop.f32.mrb[0].mxu0
    %v1449 = vadd.f32 %v907, %v1448
    %v1450 = vpop.f32.mrb[0].mxu0
    %v1451 = vadd.f32 %v907, %v1450
    %1452 = vmatprep.mubr.f32.mxu0 0.0
    %1453 = vmatmul.mubr.f32.gmra.mrb[0].mxu0 %v929
    %v1454 = vpop.f32.mrb[0].mxu0
    %v1455 = vadd.f32 %v912, %v1454
    %v1456 = vpop.f32.mrb[0].mxu0
    %v1457 = vadd.f32 %v912, %v1456
    %1458 = vmatprep.mubr.f32.mxu0 0.0
    %1459 = vmatmul.mubr.f32.gmra.mrb[0].mxu0 %v932
    %v1460 = vpop.f32.mrb[0].mxu0
    %v1461 = vadd.f32 %v917, %v1460
    %v1462 = vpop.f32.mrb[0].mxu0
    %v1463 = vadd.f32 %v917, %v1462
    %1464 = vmatprep.mubr.f32.mxu0 0.0
    %1465 = vmatmul.mubr.f32.gmra.mrb[0].mxu0 %v935
    %v1466 = vpop.f32.mrb[0].mxu0
    %v1467 = vadd.f32 %v922, %v1466
    %v1468 = vpop.f32.mrb[0].mxu0
    %v1469 = vadd.f32 %v922, %v1468
    %1470 = vdwg.mxu0
    %1471 = vmatprep.subr.mxu0 %v845
    %1472 = vmatpush1.msra.mxu0 %v844
    %1473 = vmatprep.subr.mxu0 %v861
    %1474 = vmatpush1.msra.mxu0 %v860
    %1475 = vmatprep.subr.mxu0 %v877
    %1476 = vmatpush1.msra.mxu0 %v876
    %1477 = vmatprep.subr.mxu0 %v893
    %1478 = vmatpush1.msra.mxu0 %v892
    %1479 = vmatprep.subr.mxu0 0.0
    %1480 = vmatpush1.msra.mxu0 0.0
    %1481 = vmatprep.subr.mxu0 0.0
    %1482 = vmatpush1.msra.mxu0 0.0
    %1483 = vmatprep.subr.mxu0 0.0
    %1484 = vmatpush1.msra.mxu0 0.0
    %1485 = vmatprep.subr.mxu0 0.0
    %1486 = vmatpush1.msra.mxu0 0.0
    %1487 = vmatprep.subr.mxu0 0.0
    %1488 = vmatpush1.msra.mxu0 0.0
    %1489 = vmatprep.subr.mxu0 0.0
    %1490 = vmatpush1.msra.mxu0 0.0
    %1491 = vmatprep.subr.mxu0 0.0
    %1492 = vmatpush1.msra.mxu0 0.0
    %1493 = vmatprep.subr.mxu0 0.0
    %1494 = vmatpush1.msra.mxu0 0.0
    %1495 = vmatprep.subr.mxu0 0.0
    %1496 = vmatpush1.msra.mxu0 0.0
    %1497 = vmatprep.subr.mxu0 0.0
    %1498 = vmatpush1.msra.mxu0 0.0
    %1499 = vmatprep.subr.mxu0 0.0
    %1500 = vmatpush1.msra.mxu0 0.0
    %1501 = vmatprep.subr.mxu0 0.0
    %1502 = vmatpush1.msra.mxu0 0.0
    %1503 = vmatprep.subr.mxu0 0.0
    %1504 = vmatpush1.msra.mxu0 0.0
    %1505 = vmatprep.subr.mxu0 0.0
    %1506 = vmatpush1.msra.mxu0 0.0
    %1507 = vmatprep.subr.mxu0 0.0
    %1508 = vmatpush1.msra.mxu0 0.0
    %1509 = vmatprep.subr.mxu0 0.0
    %1510 = vmatpush1.msra.mxu0 0.0
    %1511 = vmatprep.subr.mxu0 0.0
    %1512 = vmatpush1.msra.mxu0 0.0
    %1513 = vmatprep.subr.mxu0 0.0
    %1514 = vmatpush1.msra.mxu0 0.0
    %1515 = vmatprep.subr.mxu0 0.0
    %1516 = vmatpush1.msra.mxu0 0.0
    %1517 = vmatprep.subr.mxu0 0.0
    %1518 = vmatpush1.msra.mxu0 0.0
    %1519 = vmatprep.subr.mxu0 0.0
    %1520 = vmatpush1.msra.mxu0 0.0
    %1521 = vmatprep.subr.mxu0 0.0
    %1522 = vmatpush1.msra.mxu0 0.0
    %1523 = vmatprep.subr.mxu0 0.0
    %1524 = vmatpush1.msra.mxu0 0.0
    %1525 = vmatprep.subr.mxu0 0.0
    %1526 = vmatpush1.msra.mxu0 0.0
    %1527 = vmatprep.subr.mxu0 0.0
    %1528 = vmatpush1.msra.mxu0 0.0
    %1529 = vmatprep.subr.mxu0 0.0
    %1530 = vmatpush1.msra.mxu0 0.0
    %1531 = vmatprep.subr.mxu0 0.0
    %1532 = vmatpush1.msra.mxu0 0.0
    %1533 = vmatprep.subr.mxu0 0.0
    %1534 = vmatpush1.msra.mxu0 0.0
    %1535 = vmatprep.mubr.f32.mxu0 0.0
    %1536 = vmatmul.mubr.f32.gmra.mrb[0].mxu0 %v926
    %v1537 = vpop.f32.mrb[0].mxu0
    %v1538 = vadd.f32 %v907, %v1537
    %v1539 = vpop.f32.mrb[0].mxu0
    %v1540 = vadd.f32 %v907, %v1539
    %1541 = vmatprep.mubr.f32.mxu0 0.0
    %1542 = vmatmul.mubr.f32.gmra.mrb[0].mxu0 %v929
    %v1543 = vpop.f32.mrb[0].mxu0
    %v1544 = vadd.f32 %v912, %v1543
    %v1545 = vpop.f32.mrb[0].mxu0
    %v1546 = vadd.f32 %v912, %v1545
    %1547 = vmatprep.mubr.f32.mxu0 0.0
    %1548 = vmatmul.mubr.f32.gmra.mrb[0].mxu0 %v932
    %v1549 = vpop.f32.mrb[0].mxu0
    %v1550 = vadd.f32 %v917, %v1549
    %v1551 = vpop.f32.mrb[0].mxu0
    %v1552 = vadd.f32 %v917, %v1551
    %1553 = vmatprep.mubr.f32.mxu0 0.0
    %1554 = vmatmul.mubr.f32.gmra.mrb[0].mxu0 %v935
    %v1555 = vpop.f32.mrb[0].mxu0
    %v1556 = vadd.f32 %v922, %v1555
    %v1557 = vpop.f32.mrb[0].mxu0
    %v1558 = vadd.f32 %v922, %v1557
    %1559 = vdwg.mxu0
    %1560 = vmatprep.subr.mxu0 %v847
    %1561 = vmatpush1.msra.mxu0 %v846
    %1562 = vmatprep.subr.mxu0 %v863
    %1563 = vmatpush1.msra.mxu0 %v862
    %1564 = vmatprep.subr.mxu0 %v879
    %1565 = vmatpush1.msra.mxu0 %v878
    %1566 = vmatprep.subr.mxu0 %v895
    %1567 = vmatpush1.msra.mxu0 %v894
    %1568 = vmatprep.subr.mxu0 0.0
    %1569 = vmatpush1.msra.mxu0 0.0
    %1570 = vmatprep.subr.mxu0 0.0
    %1571 = vmatpush1.msra.mxu0 0.0
    %1572 = vmatprep.subr.mxu0 0.0
    %1573 = vmatpush1.msra.mxu0 0.0
    %1574 = vmatprep.subr.mxu0 0.0
    %1575 = vmatpush1.msra.mxu0 0.0
    %1576 = vmatprep.subr.mxu0 0.0
    %1577 = vmatpush1.msra.mxu0 0.0
    %1578 = vmatprep.subr.mxu0 0.0
    %1579 = vmatpush1.msra.mxu0 0.0
    %1580 = vmatprep.subr.mxu0 0.0
    %1581 = vmatpush1.msra.mxu0 0.0
    %1582 = vmatprep.subr.mxu0 0.0
    %1583 = vmatpush1.msra.mxu0 0.0
    %1584 = vmatprep.subr.mxu0 0.0
    %1585 = vmatpush1.msra.mxu0 0.0
    %1586 = vmatprep.subr.mxu0 0.0
    %1587 = vmatpush1.msra.mxu0 0.0
    %1588 = vmatprep.subr.mxu0 0.0
    %1589 = vmatpush1.msra.mxu0 0.0
    %1590 = vmatprep.subr.mxu0 0.0
    %1591 = vmatpush1.msra.mxu0 0.0
    %1592 = vmatprep.subr.mxu0 0.0
    %1593 = vmatpush1.msra.mxu0 0.0
    %1594 = vmatprep.subr.mxu0 0.0
    %1595 = vmatpush1.msra.mxu0 0.0
    %1596 = vmatprep.subr.mxu0 0.0
    %1597 = vmatpush1.msra.mxu0 0.0
    %1598 = vmatprep.subr.mxu0 0.0
    %1599 = vmatpush1.msra.mxu0 0.0
    %1600 = vmatprep.subr.mxu0 0.0
    %1601 = vmatpush1.msra.mxu0 0.0
    %1602 = vmatprep.subr.mxu0 0.0
    %1603 = vmatpush1.msra.mxu0 0.0
    %1604 = vmatprep.subr.mxu0 0.0
    %1605 = vmatpush1.msra.mxu0 0.0
    %1606 = vmatprep.subr.mxu0 0.0
    %1607 = vmatpush1.msra.mxu0 0.0
    %1608 = vmatprep.subr.mxu0 0.0
    %1609 = vmatpush1.msra.mxu0 0.0
    %1610 = vmatprep.subr.mxu0 0.0
    %1611 = vmatpush1.msra.mxu0 0.0
    %1612 = vmatprep.subr.mxu0 0.0
    %1613 = vmatpush1.msra.mxu0 0.0
    %1614 = vmatprep.subr.mxu0 0.0
    %1615 = vmatpush1.msra.mxu0 0.0
    %1616 = vmatprep.subr.mxu0 0.0
    %1617 = vmatpush1.msra.mxu0 0.0
    %1618 = vmatprep.subr.mxu0 0.0
    %1619 = vmatpush1.msra.mxu0 0.0
    %1620 = vmatprep.subr.mxu0 0.0
    %1621 = vmatpush1.msra.mxu0 0.0
    %1622 = vmatprep.subr.mxu0 0.0
    %1623 = vmatpush1.msra.mxu0 0.0
    %1624 = vmatprep.mubr.f32.mxu0 0.0
    %1625 = vmatmul.mubr.f32.gmra.mrb[0].mxu0 %v926
    %v1626 = vpop.f32.mrb[0].mxu0
    %v1627 = vadd.f32 %v907, %v1626
    %v1628 = vpop.f32.mrb[0].mxu0
    %v1629 = vadd.f32 %v907, %v1628
    %1630 = vmatprep.mubr.f32.mxu0 0.0
    %1631 = vmatmul.mubr.f32.gmra.mrb[0].mxu0 %v929
    %v1632 = vpop.f32.mrb[0].mxu0
    %v1633 = vadd.f32 %v912, %v1632
    %v1634 = vpop.f32.mrb[0].mxu0
    %v1635 = vadd.f32 %v912, %v1634
    %1636 = vmatprep.mubr.f32.mxu0 0.0
    %1637 = vmatmul.mubr.f32.gmra.mrb[0].mxu0 %v932
    %v1638 = vpop.f32.mrb[0].mxu0
    %v1639 = vadd.f32 %v917, %v1638
    %v1640 = vpop.f32.mrb[0].mxu0
    %v1641 = vadd.f32 %v917, %v1640
    %1642 = vmatprep.mubr.f32.mxu0 0.0
    %1643 = vmatmul.mubr.f32.gmra.mrb[0].mxu0 %v935
    %v1644 = vpop.f32.mrb[0].mxu0
    %v1645 = vadd.f32 %v922, %v1644
    %v1646 = vpop.f32.mrb[0].mxu0
    %v1647 = vadd.f32 %v922, %v1646
    %1648 = vdwg.mxu0
    %v1649 = vmax.f32 %v1004, 0.0
    %v1650 = vmax.f32 %v1006, 0.0
    %v1651 = vmax.f32 %v1093, 0.0
    %v1652 = vmax.f32 %v1095, 0.0
    %v1653 = vmax.f32 %v1182, 0.0
    %v1654 = vmax.f32 %v1184, 0.0
    %v1655 = vmax.f32 %v1271, 0.0
    %v1656 = vmax.f32 %v1273, 0.0
    %v1657 = vmax.f32 %v1360, 0.0
    %v1658 = vmax.f32 %v1362, 0.0
    %v1659 = vmax.f32 %v1449, 0.0
    %v1660 = vmax.f32 %v1451, 0.0
    %v1661 = vmax.f32 %v1538, 0.0
    %v1662 = vmax.f32 %v1540, 0.0
    %v1663 = vmax.f32 %v1627, 0.0
    %v1664 = vmax.f32 %v1629, 0.0
    %v1665 = vmax.f32 %v1010, 0.0
    %v1666 = vmax.f32 %v1012, 0.0
    %v1667 = vmax.f32 %v1099, 0.0
    %v1668 = vmax.f32 %v1101, 0.0
    %v1669 = vmax.f32 %v1188, 0.0
    %v1670 = vmax.f32 %v1190, 0.0
    %v1671 = vmax.f32 %v1277, 0.0
    %v1672 = vmax.f32 %v1279, 0.0
    %v1673 = vmax.f32 %v1366, 0.0
    %v1674 = vmax.f32 %v1368, 0.0
    %v1675 = vmax.f32 %v1455, 0.0
    %v1676 = vmax.f32 %v1457, 0.0
    %v1677 = vmax.f32 %v1544, 0.0
    %v1678 = vmax.f32 %v1546, 0.0
    %v1679 = vmax.f32 %v1633, 0.0
    %v1680 = vmax.f32 %v1635, 0.0
    %v1681 = vmax.f32 %v1016, 0.0
    %v1682 = vmax.f32 %v1018, 0.0
    %v1683 = vmax.f32 %v1105, 0.0
    %v1684 = vmax.f32 %v1107, 0.0
    %v1685 = vmax.f32 %v1194, 0.0
    %v1686 = vmax.f32 %v1196, 0.0
    %v1687 = vmax.f32 %v1283, 0.0
    %v1688 = vmax.f32 %v1285, 0.0
    %v1689 = vmax.f32 %v1372, 0.0
    %v1690 = vmax.f32 %v1374, 0.0
    %v1691 = vmax.f32 %v1461, 0.0
    %v1692 = vmax.f32 %v1463, 0.0
    %v1693 = vmax.f32 %v1550, 0.0
    %v1694 = vmax.f32 %v1552, 0.0
    %v1695 = vmax.f32 %v1639, 0.0
    %v1696 = vmax.f32 %v1641, 0.0
    %v1697 = vmax.f32 %v1022, 0.0
    %v1698 = vmax.f32 %v1024, 0.0
    %v1699 = vmax.f32 %v1111, 0.0
    %v1700 = vmax.f32 %v1113, 0.0
    %v1701 = vmax.f32 %v1200, 0.0
    %v1702 = vmax.f32 %v1202, 0.0
    %v1703 = vmax.f32 %v1289, 0.0
    %v1704 = vmax.f32 %v1291, 0.0
    %v1705 = vmax.f32 %v1378, 0.0
    %v1706 = vmax.f32 %v1380, 0.0
    %v1707 = vmax.f32 %v1467, 0.0
    %v1708 = vmax.f32 %v1469, 0.0
    %v1709 = vmax.f32 %v1556, 0.0
    %v1710 = vmax.f32 %v1558, 0.0
    %v1711 = vmax.f32 %v1645, 0.0
    %v1712 = vmax.f32 %v1647, 0.0
    %v1713 = vld [vmem:[%s5] sm:$0xff]
    %v1714 = vld [vmem:[%s5 + $0x8] sm:$0xff]
    %v1715 = vld [vmem:[%s5 + $0x10] sm:$0xff]
    %v1716 = vld [vmem:[%s5 + $0x18] sm:$0xff]
    %v1717 = vld [vmem:[%s6] sm:$0xff]
    %v1718 = vld [vmem:[%s6 + $0x8] sm:$0xff]
    %v1719 = vld [vmem:[%s6 + $0x10] sm:$0xff]
    %v1720 = vld [vmem:[%s6 + $0x18] sm:$0xff]
    %1722 = vset.pattern.permute.xlu0 0
    %1723 = vperm.xlu0 %1722, %v1717
    %v1724 = vpop.permute.xlu0 %1723
    %1727 = vset.pattern.permute.xlu0 0
    %1728 = vperm.xlu0 %1727, %v1718
    %v1729 = vpop.permute.xlu0 %1728
    %1732 = vset.pattern.permute.xlu0 0
    %1733 = vperm.xlu0 %1732, %v1719
    %v1734 = vpop.permute.xlu0 %1733
    %1737 = vset.pattern.permute.xlu0 0
    %1738 = vperm.xlu0 %1737, %v1720
    %v1739 = vpop.permute.xlu0 %1738
    %v1742 = vsel %vm924, %v1713, 0
    %v1745 = vsel %vm924, %v1714, 0
    %v1748 = vsel %vm924, %v1715, 0
    %v1751 = vsel %vm924, %v1716, 0
    %1753 = vmatprep.subr.mxu0 %v1650
    %1754 = vmatpush1.msra.mxu0 %v1649
    %1755 = vmatprep.subr.mxu0 %v1666
    %1756 = vmatpush1.msra.mxu0 %v1665
    %1757 = vmatprep.subr.mxu0 %v1682
    %1758 = vmatpush1.msra.mxu0 %v1681
    %1759 = vmatprep.subr.mxu0 %v1698
    %1760 = vmatpush1.msra.mxu0 %v1697
    %1761 = vmatprep.subr.mxu0 0.0
    %1762 = vmatpush1.msra.mxu0 0.0
    %1763 = vmatprep.subr.mxu0 0.0
    %1764 = vmatpush1.msra.mxu0 0.0
    %1765 = vmatprep.subr.mxu0 0.0
    %1766 = vmatpush1.msra.mxu0 0.0
    %1767 = vmatprep.subr.mxu0 0.0
    %1768 = vmatpush1.msra.mxu0 0.0
    %1769 = vmatprep.subr.mxu0 0.0
    %1770 = vmatpush1.msra.mxu0 0.0
    %1771 = vmatprep.subr.mxu0 0.0
    %1772 = vmatpush1.msra.mxu0 0.0
    %1773 = vmatprep.subr.mxu0 0.0
    %1774 = vmatpush1.msra.mxu0 0.0
    %1775 = vmatprep.subr.mxu0 0.0
    %1776 = vmatpush1.msra.mxu0 0.0
    %1777 = vmatprep.subr.mxu0 0.0
    %1778 = vmatpush1.msra.mxu0 0.0
    %1779 = vmatprep.subr.mxu0 0.0
    %1780 = vmatpush1.msra.mxu0 0.0
    %1781 = vmatprep.subr.mxu0 0.0
    %1782 = vmatpush1.msra.mxu0 0.0
    %1783 = vmatprep.subr.mxu0 0.0
    %1784 = vmatpush1.msra.mxu0 0.0
    %1785 = vmatprep.subr.mxu0 0.0
    %1786 = vmatpush1.msra.mxu0 0.0
    %1787 = vmatprep.subr.mxu0 0.0
    %1788 = vmatpush1.msra.mxu0 0.0
    %1789 = vmatprep.subr.mxu0 0.0
    %1790 = vmatpush1.msra.mxu0 0.0
    %1791 = vmatprep.subr.mxu0 0.0
    %1792 = vmatpush1.msra.mxu0 0.0
    %1793 = vmatprep.subr.mxu0 0.0
    %1794 = vmatpush1.msra.mxu0 0.0
    %1795 = vmatprep.subr.mxu0 0.0
    %1796 = vmatpush1.msra.mxu0 0.0
    %1797 = vmatprep.subr.mxu0 0.0
    %1798 = vmatpush1.msra.mxu0 0.0
    %1799 = vmatprep.subr.mxu0 0.0
    %1800 = vmatpush1.msra.mxu0 0.0
    %1801 = vmatprep.subr.mxu0 0.0
    %1802 = vmatpush1.msra.mxu0 0.0
    %1803 = vmatprep.subr.mxu0 0.0
    %1804 = vmatpush1.msra.mxu0 0.0
    %1805 = vmatprep.subr.mxu0 0.0
    %1806 = vmatpush1.msra.mxu0 0.0
    %1807 = vmatprep.subr.mxu0 0.0
    %1808 = vmatpush1.msra.mxu0 0.0
    %1809 = vmatprep.subr.mxu0 0.0
    %1810 = vmatpush1.msra.mxu0 0.0
    %1811 = vmatprep.subr.mxu0 0.0
    %1812 = vmatpush1.msra.mxu0 0.0
    %1813 = vmatprep.subr.mxu0 0.0
    %1814 = vmatpush1.msra.mxu0 0.0
    %1815 = vmatprep.subr.mxu0 0.0
    %1816 = vmatpush1.msra.mxu0 0.0
    %1817 = vmatprep.mubr.f32.mxu0 0.0
    %1818 = vmatmul.mubr.f32.gmra.mrb[0].mxu0 %v1742
    %v1819 = vpop.f32.mrb[0].mxu0
    %v1820 = vadd.f32 %v1724, %v1819
    %v1821 = vpop.f32.mrb[0].mxu0
    %v1822 = vadd.f32 %v1724, %v1821
    %1823 = vmatprep.mubr.f32.mxu0 0.0
    %1824 = vmatmul.mubr.f32.gmra.mrb[0].mxu0 %v1745
    %v1825 = vpop.f32.mrb[0].mxu0
    %v1826 = vadd.f32 %v1729, %v1825
    %v1827 = vpop.f32.mrb[0].mxu0
    %v1828 = vadd.f32 %v1729, %v1827
    %1829 = vmatprep.mubr.f32.mxu0 0.0
    %1830 = vmatmul.mubr.f32.gmra.mrb[0].mxu0 %v1748
    %v1831 = vpop.f32.mrb[0].mxu0
    %v1832 = vadd.f32 %v1734, %v1831
    %v1833 = vpop.f32.mrb[0].mxu0
    %v1834 = vadd.f32 %v1734, %v1833
    %1835 = vmatprep.mubr.f32.mxu0 0.0
    %1836 = vmatmul.mubr.f32.gmra.mrb[0].mxu0 %v1751
    %v1837 = vpop.f32.mrb[0].mxu0
    %v1838 = vadd.f32 %v1739, %v1837
    %v1839 = vpop.f32.mrb[0].mxu0
    %v1840 = vadd.f32 %v1739, %v1839
    %1841 = vdwg.mxu0
    %1842 = vmatprep.subr.mxu0 %v1652
    %1843 = vmatpush1.msra.mxu0 %v1651
    %1844 = vmatprep.subr.mxu0 %v1668
    %1845 = vmatpush1.msra.mxu0 %v1667
    %1846 = vmatprep.subr.mxu0 %v1684
    %1847 = vmatpush1.msra.mxu0 %v1683
    %1848 = vmatprep.subr.mxu0 %v1700
    %1849 = vmatpush1.msra.mxu0 %v1699
    %1850 = vmatprep.subr.mxu0 0.0
    %1851 = vmatpush1.msra.mxu0 0.0
    %1852 = vmatprep.subr.mxu0 0.0
    %1853 = vmatpush1.msra.mxu0 0.0
    %1854 = vmatprep.subr.mxu0 0.0
    %1855 = vmatpush1.msra.mxu0 0.0
    %1856 = vmatprep.subr.mxu0 0.0
    %1857 = vmatpush1.msra.mxu0 0.0
    %1858 = vmatprep.subr.mxu0 0.0
    %1859 = vmatpush1.msra.mxu0 0.0
    %1860 = vmatprep.subr.mxu0 0.0
    %1861 = vmatpush1.msra.mxu0 0.0
    %1862 = vmatprep.subr.mxu0 0.0
    %1863 = vmatpush1.msra.mxu0 0.0
    %1864 = vmatprep.subr.mxu0 0.0
    %1865 = vmatpush1.msra.mxu0 0.0
    %1866 = vmatprep.subr.mxu0 0.0
    %1867 = vmatpush1.msra.mxu0 0.0
    %1868 = vmatprep.subr.mxu0 0.0
    %1869 = vmatpush1.msra.mxu0 0.0
    %1870 = vmatprep.subr.mxu0 0.0
    %1871 = vmatpush1.msra.mxu0 0.0
    %1872 = vmatprep.subr.mxu0 0.0
    %1873 = vmatpush1.msra.mxu0 0.0
    %1874 = vmatprep.subr.mxu0 0.0
    %1875 = vmatpush1.msra.mxu0 0.0
    %1876 = vmatprep.subr.mxu0 0.0
    %1877 = vmatpush1.msra.mxu0 0.0
    %1878 = vmatprep.subr.mxu0 0.0
    %1879 = vmatpush1.msra.mxu0 0.0
    %1880 = vmatprep.subr.mxu0 0.0
    %1881 = vmatpush1.msra.mxu0 0.0
    %1882 = vmatprep.subr.mxu0 0.0
    %1883 = vmatpush1.msra.mxu0 0.0
    %1884 = vmatprep.subr.mxu0 0.0
    %1885 = vmatpush1.msra.mxu0 0.0
    %1886 = vmatprep.subr.mxu0 0.0
    %1887 = vmatpush1.msra.mxu0 0.0
    %1888 = vmatprep.subr.mxu0 0.0
    %1889 = vmatpush1.msra.mxu0 0.0
    %1890 = vmatprep.subr.mxu0 0.0
    %1891 = vmatpush1.msra.mxu0 0.0
    %1892 = vmatprep.subr.mxu0 0.0
    %1893 = vmatpush1.msra.mxu0 0.0
    %1894 = vmatprep.subr.mxu0 0.0
    %1895 = vmatpush1.msra.mxu0 0.0
    %1896 = vmatprep.subr.mxu0 0.0
    %1897 = vmatpush1.msra.mxu0 0.0
    %1898 = vmatprep.subr.mxu0 0.0
    %1899 = vmatpush1.msra.mxu0 0.0
    %1900 = vmatprep.subr.mxu0 0.0
    %1901 = vmatpush1.msra.mxu0 0.0
    %1902 = vmatprep.subr.mxu0 0.0
    %1903 = vmatpush1.msra.mxu0 0.0
    %1904 = vmatprep.subr.mxu0 0.0
    %1905 = vmatpush1.msra.mxu0 0.0
    %1906 = vmatprep.mubr.f32.mxu0 0.0
    %1907 = vmatmul.mubr.f32.gmra.mrb[0].mxu0 %v1742
    %v1908 = vpop.f32.mrb[0].mxu0
    %v1909 = vadd.f32 %v1724, %v1908
    %v1910 = vpop.f32.mrb[0].mxu0
    %v1911 = vadd.f32 %v1724, %v1910
    %1912 = vmatprep.mubr.f32.mxu0 0.0
    %1913 = vmatmul.mubr.f32.gmra.mrb[0].mxu0 %v1745
    %v1914 = vpop.f32.mrb[0].mxu0
    %v1915 = vadd.f32 %v1729, %v1914
    %v1916 = vpop.f32.mrb[0].mxu0
    %v1917 = vadd.f32 %v1729, %v1916
    %1918 = vmatprep.mubr.f32.mxu0 0.0
    %1919 = vmatmul.mubr.f32.gmra.mrb[0].mxu0 %v1748
    %v1920 = vpop.f32.mrb[0].mxu0
    %v1921 = vadd.f32 %v1734, %v1920
    %v1922 = vpop.f32.mrb[0].mxu0
    %v1923 = vadd.f32 %v1734, %v1922
    %1924 = vmatprep.mubr.f32.mxu0 0.0
    %1925 = vmatmul.mubr.f32.gmra.mrb[0].mxu0 %v1751
    %v1926 = vpop.f32.mrb[0].mxu0
    %v1927 = vadd.f32 %v1739, %v1926
    %v1928 = vpop.f32.mrb[0].mxu0
    %v1929 = vadd.f32 %v1739, %v1928
    %1930 = vdwg.mxu0
    %1931 = vmatprep.subr.mxu0 %v1654
    %1932 = vmatpush1.msra.mxu0 %v1653
    %1933 = vmatprep.subr.mxu0 %v1670
    %1934 = vmatpush1.msra.mxu0 %v1669
    %1935 = vmatprep.subr.mxu0 %v1686
    %1936 = vmatpush1.msra.mxu0 %v1685
    %1937 = vmatprep.subr.mxu0 %v1702
    %1938 = vmatpush1.msra.mxu0 %v1701
    %1939 = vmatprep.subr.mxu0 0.0
    %1940 = vmatpush1.msra.mxu0 0.0
    %1941 = vmatprep.subr.mxu0 0.0
    %1942 = vmatpush1.msra.mxu0 0.0
    %1943 = vmatprep.subr.mxu0 0.0
    %1944 = vmatpush1.msra.mxu0 0.0
    %1945 = vmatprep.subr.mxu0 0.0
    %1946 = vmatpush1.msra.mxu0 0.0
    %1947 = vmatprep.subr.mxu0 0.0
    %1948 = vmatpush1.msra.mxu0 0.0
    %1949 = vmatprep.subr.mxu0 0.0
    %1950 = vmatpush1.msra.mxu0 0.0
    %1951 = vmatprep.subr.mxu0 0.0
    %1952 = vmatpush1.msra.mxu0 0.0
    %1953 = vmatprep.subr.mxu0 0.0
    %1954 = vmatpush1.msra.mxu0 0.0
    %1955 = vmatprep.subr.mxu0 0.0
    %1956 = vmatpush1.msra.mxu0 0.0
    %1957 = vmatprep.subr.mxu0 0.0
    %1958 = vmatpush1.msra.mxu0 0.0
    %1959 = vmatprep.subr.mxu0 0.0
    %1960 = vmatpush1.msra.mxu0 0.0
    %1961 = vmatprep.subr.mxu0 0.0
    %1962 = vmatpush1.msra.mxu0 0.0
    %1963 = vmatprep.subr.mxu0 0.0
    %1964 = vmatpush1.msra.mxu0 0.0
    %1965 = vmatprep.subr.mxu0 0.0
    %1966 = vmatpush1.msra.mxu0 0.0
    %1967 = vmatprep.subr.mxu0 0.0
    %1968 = vmatpush1.msra.mxu0 0.0
    %1969 = vmatprep.subr.mxu0 0.0
    %1970 = vmatpush1.msra.mxu0 0.0
    %1971 = vmatprep.subr.mxu0 0.0
    %1972 = vmatpush1.msra.mxu0 0.0
    %1973 = vmatprep.subr.mxu0 0.0
    %1974 = vmatpush1.msra.mxu0 0.0
    %1975 = vmatprep.subr.mxu0 0.0
    %1976 = vmatpush1.msra.mxu0 0.0
    %1977 = vmatprep.subr.mxu0 0.0
    %1978 = vmatpush1.msra.mxu0 0.0
    %1979 = vmatprep.subr.mxu0 0.0
    %1980 = vmatpush1.msra.mxu0 0.0
    %1981 = vmatprep.subr.mxu0 0.0
    %1982 = vmatpush1.msra.mxu0 0.0
    %1983 = vmatprep.subr.mxu0 0.0
    %1984 = vmatpush1.msra.mxu0 0.0
    %1985 = vmatprep.subr.mxu0 0.0
    %1986 = vmatpush1.msra.mxu0 0.0
    %1987 = vmatprep.subr.mxu0 0.0
    %1988 = vmatpush1.msra.mxu0 0.0
    %1989 = vmatprep.subr.mxu0 0.0
    %1990 = vmatpush1.msra.mxu0 0.0
    %1991 = vmatprep.subr.mxu0 0.0
    %1992 = vmatpush1.msra.mxu0 0.0
    %1993 = vmatprep.subr.mxu0 0.0
    %1994 = vmatpush1.msra.mxu0 0.0
    %1995 = vmatprep.mubr.f32.mxu0 0.0
    %1996 = vmatmul.mubr.f32.gmra.mrb[0].mxu0 %v1742
    %v1997 = vpop.f32.mrb[0].mxu0
    %v1998 = vadd.f32 %v1724, %v1997
    %v1999 = vpop.f32.mrb[0].mxu0
    %v2000 = vadd.f32 %v1724, %v1999
    %2001 = vmatprep.mubr.f32.mxu0 0.0
    %2002 = vmatmul.mubr.f32.gmra.mrb[0].mxu0 %v1745
    %v2003 = vpop.f32.mrb[0].mxu0
    %v2004 = vadd.f32 %v1729, %v2003
    %v2005 = vpop.f32.mrb[0].mxu0
    %v2006 = vadd.f32 %v1729, %v2005
    %2007 = vmatprep.mubr.f32.mxu0 0.0
    %2008 = vmatmul.mubr.f32.gmra.mrb[0].mxu0 %v1748
    %v2009 = vpop.f32.mrb[0].mxu0
    %v2010 = vadd.f32 %v1734, %v2009
    %v2011 = vpop.f32.mrb[0].mxu0
    %v2012 = vadd.f32 %v1734, %v2011
    %2013 = vmatprep.mubr.f32.mxu0 0.0
    %2014 = vmatmul.mubr.f32.gmra.mrb[0].mxu0 %v1751
    %v2015 = vpop.f32.mrb[0].mxu0
    %v2016 = vadd.f32 %v1739, %v2015
    %v2017 = vpop.f32.mrb[0].mxu0
    %v2018 = vadd.f32 %v1739, %v2017
    %2019 = vdwg.mxu0
    %2020 = vmatprep.subr.mxu0 %v1656
    %2021 = vmatpush1.msra.mxu0 %v1655
    %2022 = vmatprep.subr.mxu0 %v1672
    %2023 = vmatpush1.msra.mxu0 %v1671
    %2024 = vmatprep.subr.mxu0 %v1688
    %2025 = vmatpush1.msra.mxu0 %v1687
    %2026 = vmatprep.subr.mxu0 %v1704
    %2027 = vmatpush1.msra.mxu0 %v1703
    %2028 = vmatprep.subr.mxu0 0.0
    %2029 = vmatpush1.msra.mxu0 0.0
    %2030 = vmatprep.subr.mxu0 0.0
    %2031 = vmatpush1.msra.mxu0 0.0
    %2032 = vmatprep.subr.mxu0 0.0
    %2033 = vmatpush1.msra.mxu0 0.0
    %2034 = vmatprep.subr.mxu0 0.0
    %2035 = vmatpush1.msra.mxu0 0.0
    %2036 = vmatprep.subr.mxu0 0.0
    %2037 = vmatpush1.msra.mxu0 0.0
    %2038 = vmatprep.subr.mxu0 0.0
    %2039 = vmatpush1.msra.mxu0 0.0
    %2040 = vmatprep.subr.mxu0 0.0
    %2041 = vmatpush1.msra.mxu0 0.0
    %2042 = vmatprep.subr.mxu0 0.0
    %2043 = vmatpush1.msra.mxu0 0.0
    %2044 = vmatprep.subr.mxu0 0.0
    %2045 = vmatpush1.msra.mxu0 0.0
    %2046 = vmatprep.subr.mxu0 0.0
    %2047 = vmatpush1.msra.mxu0 0.0
    %2048 = vmatprep.subr.mxu0 0.0
    %2049 = vmatpush1.msra.mxu0 0.0
    %2050 = vmatprep.subr.mxu0 0.0
    %2051 = vmatpush1.msra.mxu0 0.0
    %2052 = vmatprep.subr.mxu0 0.0
    %2053 = vmatpush1.msra.mxu0 0.0
    %2054 = vmatprep.subr.mxu0 0.0
    %2055 = vmatpush1.msra.mxu0 0.0
    %2056 = vmatprep.subr.mxu0 0.0
    %2057 = vmatpush1.msra.mxu0 0.0
    %2058 = vmatprep.subr.mxu0 0.0
    %2059 = vmatpush1.msra.mxu0 0.0
    %2060 = vmatprep.subr.mxu0 0.0
    %2061 = vmatpush1.msra.mxu0 0.0
    %2062 = vmatprep.subr.mxu0 0.0
    %2063 = vmatpush1.msra.mxu0 0.0
    %2064 = vmatprep.subr.mxu0 0.0
    %2065 = vmatpush1.msra.mxu0 0.0
    %2066 = vmatprep.subr.mxu0 0.0
    %2067 = vmatpush1.msra.mxu0 0.0
    %2068 = vmatprep.subr.mxu0 0.0
    %2069 = vmatpush1.msra.mxu0 0.0
    %2070 = vmatprep.subr.mxu0 0.0
    %2071 = vmatpush1.msra.mxu0 0.0
    %2072 = vmatprep.subr.mxu0 0.0
    %2073 = vmatpush1.msra.mxu0 0.0
    %2074 = vmatprep.subr.mxu0 0.0
    %2075 = vmatpush1.msra.mxu0 0.0
    %2076 = vmatprep.subr.mxu0 0.0
    %2077 = vmatpush1.msra.mxu0 0.0
    %2078 = vmatprep.subr.mxu0 0.0
    %2079 = vmatpush1.msra.mxu0 0.0
    %2080 = vmatprep.subr.mxu0 0.0
    %2081 = vmatpush1.msra.mxu0 0.0
    %2082 = vmatprep.subr.mxu0 0.0
    %2083 = vmatpush1.msra.mxu0 0.0
    %2084 = vmatprep.mubr.f32.mxu0 0.0
    %2085 = vmatmul.mubr.f32.gmra.mrb[0].mxu0 %v1742
    %v2086 = vpop.f32.mrb[0].mxu0
    %v2087 = vadd.f32 %v1724, %v2086
    %v2088 = vpop.f32.mrb[0].mxu0
    %v2089 = vadd.f32 %v1724, %v2088
    %2090 = vmatprep.mubr.f32.mxu0 0.0
    %2091 = vmatmul.mubr.f32.gmra.mrb[0].mxu0 %v1745
    %v2092 = vpop.f32.mrb[0].mxu0
    %v2093 = vadd.f32 %v1729, %v2092
    %v2094 = vpop.f32.mrb[0].mxu0
    %v2095 = vadd.f32 %v1729, %v2094
    %2096 = vmatprep.mubr.f32.mxu0 0.0
    %2097 = vmatmul.mubr.f32.gmra.mrb[0].mxu0 %v1748
    %v2098 = vpop.f32.mrb[0].mxu0
    %v2099 = vadd.f32 %v1734, %v2098
    %v2100 = vpop.f32.mrb[0].mxu0
    %v2101 = vadd.f32 %v1734, %v2100
    %2102 = vmatprep.mubr.f32.mxu0 0.0
    %2103 = vmatmul.mubr.f32.gmra.mrb[0].mxu0 %v1751
    %v2104 = vpop.f32.mrb[0].mxu0
    %v2105 = vadd.f32 %v1739, %v2104
    %v2106 = vpop.f32.mrb[0].mxu0
    %v2107 = vadd.f32 %v1739, %v2106
    %2108 = vdwg.mxu0
    %2109 = vmatprep.subr.mxu0 %v1658
    %2110 = vmatpush1.msra.mxu0 %v1657
    %2111 = vmatprep.subr.mxu0 %v1674
    %2112 = vmatpush1.msra.mxu0 %v1673
    %2113 = vmatprep.subr.mxu0 %v1690
    %2114 = vmatpush1.msra.mxu0 %v1689
    %2115 = vmatprep.subr.mxu0 %v1706
    %2116 = vmatpush1.msra.mxu0 %v1705
    %2117 = vmatprep.subr.mxu0 0.0
    %2118 = vmatpush1.msra.mxu0 0.0
    %2119 = vmatprep.subr.mxu0 0.0
    %2120 = vmatpush1.msra.mxu0 0.0
    %2121 = vmatprep.subr.mxu0 0.0
    %2122 = vmatpush1.msra.mxu0 0.0
    %2123 = vmatprep.subr.mxu0 0.0
    %2124 = vmatpush1.msra.mxu0 0.0
    %2125 = vmatprep.subr.mxu0 0.0
    %2126 = vmatpush1.msra.mxu0 0.0
    %2127 = vmatprep.subr.mxu0 0.0
    %2128 = vmatpush1.msra.mxu0 0.0
    %2129 = vmatprep.subr.mxu0 0.0
    %2130 = vmatpush1.msra.mxu0 0.0
    %2131 = vmatprep.subr.mxu0 0.0
    %2132 = vmatpush1.msra.mxu0 0.0
    %2133 = vmatprep.subr.mxu0 0.0
    %2134 = vmatpush1.msra.mxu0 0.0
    %2135 = vmatprep.subr.mxu0 0.0
    %2136 = vmatpush1.msra.mxu0 0.0
    %2137 = vmatprep.subr.mxu0 0.0
    %2138 = vmatpush1.msra.mxu0 0.0
    %2139 = vmatprep.subr.mxu0 0.0
    %2140 = vmatpush1.msra.mxu0 0.0
    %2141 = vmatprep.subr.mxu0 0.0
    %2142 = vmatpush1.msra.mxu0 0.0
    %2143 = vmatprep.subr.mxu0 0.0
    %2144 = vmatpush1.msra.mxu0 0.0
    %2145 = vmatprep.subr.mxu0 0.0
    %2146 = vmatpush1.msra.mxu0 0.0
    %2147 = vmatprep.subr.mxu0 0.0
    %2148 = vmatpush1.msra.mxu0 0.0
    %2149 = vmatprep.subr.mxu0 0.0
    %2150 = vmatpush1.msra.mxu0 0.0
    %2151 = vmatprep.subr.mxu0 0.0
    %2152 = vmatpush1.msra.mxu0 0.0
    %2153 = vmatprep.subr.mxu0 0.0
    %2154 = vmatpush1.msra.mxu0 0.0
    %2155 = vmatprep.subr.mxu0 0.0
    %2156 = vmatpush1.msra.mxu0 0.0
    %2157 = vmatprep.subr.mxu0 0.0
    %2158 = vmatpush1.msra.mxu0 0.0
    %2159 = vmatprep.subr.mxu0 0.0
    %2160 = vmatpush1.msra.mxu0 0.0
    %2161 = vmatprep.subr.mxu0 0.0
    %2162 = vmatpush1.msra.mxu0 0.0
    %2163 = vmatprep.subr.mxu0 0.0
    %2164 = vmatpush1.msra.mxu0 0.0
    %2165 = vmatprep.subr.mxu0 0.0
    %2166 = vmatpush1.msra.mxu0 0.0
    %2167 = vmatprep.subr.mxu0 0.0
    %2168 = vmatpush1.msra.mxu0 0.0
    %2169 = vmatprep.subr.mxu0 0.0
    %2170 = vmatpush1.msra.mxu0 0.0
    %2171 = vmatprep.subr.mxu0 0.0
    %2172 = vmatpush1.msra.mxu0 0.0
    %2173 = vmatprep.mubr.f32.mxu0 0.0
    %2174 = vmatmul.mubr.f32.gmra.mrb[0].mxu0 %v1742
    %v2175 = vpop.f32.mrb[0].mxu0
    %v2176 = vadd.f32 %v1724, %v2175
    %v2177 = vpop.f32.mrb[0].mxu0
    %v2178 = vadd.f32 %v1724, %v2177
    %2179 = vmatprep.mubr.f32.mxu0 0.0
    %2180 = vmatmul.mubr.f32.gmra.mrb[0].mxu0 %v1745
    %v2181 = vpop.f32.mrb[0].mxu0
    %v2182 = vadd.f32 %v1729, %v2181
    %v2183 = vpop.f32.mrb[0].mxu0
    %v2184 = vadd.f32 %v1729, %v2183
    %2185 = vmatprep.mubr.f32.mxu0 0.0
    %2186 = vmatmul.mubr.f32.gmra.mrb[0].mxu0 %v1748
    %v2187 = vpop.f32.mrb[0].mxu0
    %v2188 = vadd.f32 %v1734, %v2187
    %v2189 = vpop.f32.mrb[0].mxu0
    %v2190 = vadd.f32 %v1734, %v2189
    %2191 = vmatprep.mubr.f32.mxu0 0.0
    %2192 = vmatmul.mubr.f32.gmra.mrb[0].mxu0 %v1751
    %v2193 = vpop.f32.mrb[0].mxu0
    %v2194 = vadd.f32 %v1739, %v2193
    %v2195 = vpop.f32.mrb[0].mxu0
    %v2196 = vadd.f32 %v1739, %v2195
    %2197 = vdwg.mxu0
    %2198 = vmatprep.subr.mxu0 %v1660
    %2199 = vmatpush1.msra.mxu0 %v1659
    %2200 = vmatprep.subr.mxu0 %v1676
    %2201 = vmatpush1.msra.mxu0 %v1675
    %2202 = vmatprep.subr.mxu0 %v1692
    %2203 = vmatpush1.msra.mxu0 %v1691
    %2204 = vmatprep.subr.mxu0 %v1708
    %2205 = vmatpush1.msra.mxu0 %v1707
    %2206 = vmatprep.subr.mxu0 0.0
    %2207 = vmatpush1.msra.mxu0 0.0
    %2208 = vmatprep.subr.mxu0 0.0
    %2209 = vmatpush1.msra.mxu0 0.0
    %2210 = vmatprep.subr.mxu0 0.0
    %2211 = vmatpush1.msra.mxu0 0.0
    %2212 = vmatprep.subr.mxu0 0.0
    %2213 = vmatpush1.msra.mxu0 0.0
    %2214 = vmatprep.subr.mxu0 0.0
    %2215 = vmatpush1.msra.mxu0 0.0
    %2216 = vmatprep.subr.mxu0 0.0
    %2217 = vmatpush1.msra.mxu0 0.0
    %2218 = vmatprep.subr.mxu0 0.0
    %2219 = vmatpush1.msra.mxu0 0.0
    %2220 = vmatprep.subr.mxu0 0.0
    %2221 = vmatpush1.msra.mxu0 0.0
    %2222 = vmatprep.subr.mxu0 0.0
    %2223 = vmatpush1.msra.mxu0 0.0
    %2224 = vmatprep.subr.mxu0 0.0
    %2225 = vmatpush1.msra.mxu0 0.0
    %2226 = vmatprep.subr.mxu0 0.0
    %2227 = vmatpush1.msra.mxu0 0.0
    %2228 = vmatprep.subr.mxu0 0.0
    %2229 = vmatpush1.msra.mxu0 0.0
    %2230 = vmatprep.subr.mxu0 0.0
    %2231 = vmatpush1.msra.mxu0 0.0
    %2232 = vmatprep.subr.mxu0 0.0
    %2233 = vmatpush1.msra.mxu0 0.0
    %2234 = vmatprep.subr.mxu0 0.0
    %2235 = vmatpush1.msra.mxu0 0.0
    %2236 = vmatprep.subr.mxu0 0.0
    %2237 = vmatpush1.msra.mxu0 0.0
    %2238 = vmatprep.subr.mxu0 0.0
    %2239 = vmatpush1.msra.mxu0 0.0
    %2240 = vmatprep.subr.mxu0 0.0
    %2241 = vmatpush1.msra.mxu0 0.0
    %2242 = vmatprep.subr.mxu0 0.0
    %2243 = vmatpush1.msra.mxu0 0.0
    %2244 = vmatprep.subr.mxu0 0.0
    %2245 = vmatpush1.msra.mxu0 0.0
    %2246 = vmatprep.subr.mxu0 0.0
    %2247 = vmatpush1.msra.mxu0 0.0
    %2248 = vmatprep.subr.mxu0 0.0
    %2249 = vmatpush1.msra.mxu0 0.0
    %2250 = vmatprep.subr.mxu0 0.0
    %2251 = vmatpush1.msra.mxu0 0.0
    %2252 = vmatprep.subr.mxu0 0.0
    %2253 = vmatpush1.msra.mxu0 0.0
    %2254 = vmatprep.subr.mxu0 0.0
    %2255 = vmatpush1.msra.mxu0 0.0
    %2256 = vmatprep.subr.mxu0 0.0
    %2257 = vmatpush1.msra.mxu0 0.0
    %2258 = vmatprep.subr.mxu0 0.0
    %2259 = vmatpush1.msra.mxu0 0.0
    %2260 = vmatprep.subr.mxu0 0.0
    %2261 = vmatpush1.msra.mxu0 0.0
    %2262 = vmatprep.mubr.f32.mxu0 0.0
    %2263 = vmatmul.mubr.f32.gmra.mrb[0].mxu0 %v1742
    %v2264 = vpop.f32.mrb[0].mxu0
    %v2265 = vadd.f32 %v1724, %v2264
    %v2266 = vpop.f32.mrb[0].mxu0
    %v2267 = vadd.f32 %v1724, %v2266
    %2268 = vmatprep.mubr.f32.mxu0 0.0
    %2269 = vmatmul.mubr.f32.gmra.mrb[0].mxu0 %v1745
    %v2270 = vpop.f32.mrb[0].mxu0
    %v2271 = vadd.f32 %v1729, %v2270
    %v2272 = vpop.f32.mrb[0].mxu0
    %v2273 = vadd.f32 %v1729, %v2272
    %2274 = vmatprep.mubr.f32.mxu0 0.0
    %2275 = vmatmul.mubr.f32.gmra.mrb[0].mxu0 %v1748
    %v2276 = vpop.f32.mrb[0].mxu0
    %v2277 = vadd.f32 %v1734, %v2276
    %v2278 = vpop.f32.mrb[0].mxu0
    %v2279 = vadd.f32 %v1734, %v2278
    %2280 = vmatprep.mubr.f32.mxu0 0.0
    %2281 = vmatmul.mubr.f32.gmra.mrb[0].mxu0 %v1751
    %v2282 = vpop.f32.mrb[0].mxu0
    %v2283 = vadd.f32 %v1739, %v2282
    %v2284 = vpop.f32.mrb[0].mxu0
    %v2285 = vadd.f32 %v1739, %v2284
    %2286 = vdwg.mxu0
    %2287 = vmatprep.subr.mxu0 %v1662
    %2288 = vmatpush1.msra.mxu0 %v1661
    %2289 = vmatprep.subr.mxu0 %v1678
    %2290 = vmatpush1.msra.mxu0 %v1677
    %2291 = vmatprep.subr.mxu0 %v1694
    %2292 = vmatpush1.msra.mxu0 %v1693
    %2293 = vmatprep.subr.mxu0 %v1710
    %2294 = vmatpush1.msra.mxu0 %v1709
    %2295 = vmatprep.subr.mxu0 0.0
    %2296 = vmatpush1.msra.mxu0 0.0
    %2297 = vmatprep.subr.mxu0 0.0
    %2298 = vmatpush1.msra.mxu0 0.0
    %2299 = vmatprep.subr.mxu0 0.0
    %2300 = vmatpush1.msra.mxu0 0.0
    %2301 = vmatprep.subr.mxu0 0.0
    %2302 = vmatpush1.msra.mxu0 0.0
    %2303 = vmatprep.subr.mxu0 0.0
    %2304 = vmatpush1.msra.mxu0 0.0
    %2305 = vmatprep.subr.mxu0 0.0
    %2306 = vmatpush1.msra.mxu0 0.0
    %2307 = vmatprep.subr.mxu0 0.0
    %2308 = vmatpush1.msra.mxu0 0.0
    %2309 = vmatprep.subr.mxu0 0.0
    %2310 = vmatpush1.msra.mxu0 0.0
    %2311 = vmatprep.subr.mxu0 0.0
    %2312 = vmatpush1.msra.mxu0 0.0
    %2313 = vmatprep.subr.mxu0 0.0
    %2314 = vmatpush1.msra.mxu0 0.0
    %2315 = vmatprep.subr.mxu0 0.0
    %2316 = vmatpush1.msra.mxu0 0.0
    %2317 = vmatprep.subr.mxu0 0.0
    %2318 = vmatpush1.msra.mxu0 0.0
    %2319 = vmatprep.subr.mxu0 0.0
    %2320 = vmatpush1.msra.mxu0 0.0
    %2321 = vmatprep.subr.mxu0 0.0
    %2322 = vmatpush1.msra.mxu0 0.0
    %2323 = vmatprep.subr.mxu0 0.0
    %2324 = vmatpush1.msra.mxu0 0.0
    %2325 = vmatprep.subr.mxu0 0.0
    %2326 = vmatpush1.msra.mxu0 0.0
    %2327 = vmatprep.subr.mxu0 0.0
    %2328 = vmatpush1.msra.mxu0 0.0
    %2329 = vmatprep.subr.mxu0 0.0
    %2330 = vmatpush1.msra.mxu0 0.0
    %2331 = vmatprep.subr.mxu0 0.0
    %2332 = vmatpush1.msra.mxu0 0.0
    %2333 = vmatprep.subr.mxu0 0.0
    %2334 = vmatpush1.msra.mxu0 0.0
    %2335 = vmatprep.subr.mxu0 0.0
    %2336 = vmatpush1.msra.mxu0 0.0
    %2337 = vmatprep.subr.mxu0 0.0
    %2338 = vmatpush1.msra.mxu0 0.0
    %2339 = vmatprep.subr.mxu0 0.0
    %2340 = vmatpush1.msra.mxu0 0.0
    %2341 = vmatprep.subr.mxu0 0.0
    %2342 = vmatpush1.msra.mxu0 0.0
    %2343 = vmatprep.subr.mxu0 0.0
    %2344 = vmatpush1.msra.mxu0 0.0
    %2345 = vmatprep.subr.mxu0 0.0
    %2346 = vmatpush1.msra.mxu0 0.0
    %2347 = vmatprep.subr.mxu0 0.0
    %2348 = vmatpush1.msra.mxu0 0.0
    %2349 = vmatprep.subr.mxu0 0.0
    %2350 = vmatpush1.msra.mxu0 0.0
    %2351 = vmatprep.mubr.f32.mxu0 0.0
    %2352 = vmatmul.mubr.f32.gmra.mrb[0].mxu0 %v1742
    %v2353 = vpop.f32.mrb[0].mxu0
    %v2354 = vadd.f32 %v1724, %v2353
    %v2355 = vpop.f32.mrb[0].mxu0
    %v2356 = vadd.f32 %v1724, %v2355
    %2357 = vmatprep.mubr.f32.mxu0 0.0
    %2358 = vmatmul.mubr.f32.gmra.mrb[0].mxu0 %v1745
    %v2359 = vpop.f32.mrb[0].mxu0
    %v2360 = vadd.f32 %v1729, %v2359
    %v2361 = vpop.f32.mrb[0].mxu0
    %v2362 = vadd.f32 %v1729, %v2361
    %2363 = vmatprep.mubr.f32.mxu0 0.0
    %2364 = vmatmul.mubr.f32.gmra.mrb[0].mxu0 %v1748
    %v2365 = vpop.f32.mrb[0].mxu0
    %v2366 = vadd.f32 %v1734, %v2365
    %v2367 = vpop.f32.mrb[0].mxu0
    %v2368 = vadd.f32 %v1734, %v2367
    %2369 = vmatprep.mubr.f32.mxu0 0.0
    %2370 = vmatmul.mubr.f32.gmra.mrb[0].mxu0 %v1751
    %v2371 = vpop.f32.mrb[0].mxu0
    %v2372 = vadd.f32 %v1739, %v2371
    %v2373 = vpop.f32.mrb[0].mxu0
    %v2374 = vadd.f32 %v1739, %v2373
    %2375 = vdwg.mxu0
    %2376 = vmatprep.subr.mxu0 %v1664
    %2377 = vmatpush1.msra.mxu0 %v1663
    %2378 = vmatprep.subr.mxu0 %v1680
    %2379 = vmatpush1.msra.mxu0 %v1679
    %2380 = vmatprep.subr.mxu0 %v1696
    %2381 = vmatpush1.msra.mxu0 %v1695
    %2382 = vmatprep.subr.mxu0 %v1712
    %2383 = vmatpush1.msra.mxu0 %v1711
    %2384 = vmatprep.subr.mxu0 0.0
    %2385 = vmatpush1.msra.mxu0 0.0
    %2386 = vmatprep.subr.mxu0 0.0
    %2387 = vmatpush1.msra.mxu0 0.0
    %2388 = vmatprep.subr.mxu0 0.0
    %2389 = vmatpush1.msra.mxu0 0.0
    %2390 = vmatprep.subr.mxu0 0.0
    %2391 = vmatpush1.msra.mxu0 0.0
    %2392 = vmatprep.subr.mxu0 0.0
    %2393 = vmatpush1.msra.mxu0 0.0
    %2394 = vmatprep.subr.mxu0 0.0
    %2395 = vmatpush1.msra.mxu0 0.0
    %2396 = vmatprep.subr.mxu0 0.0
    %2397 = vmatpush1.msra.mxu0 0.0
    %2398 = vmatprep.subr.mxu0 0.0
    %2399 = vmatpush1.msra.mxu0 0.0
    %2400 = vmatprep.subr.mxu0 0.0
    %2401 = vmatpush1.msra.mxu0 0.0
    %2402 = vmatprep.subr.mxu0 0.0
    %2403 = vmatpush1.msra.mxu0 0.0
    %2404 = vmatprep.subr.mxu0 0.0
    %2405 = vmatpush1.msra.mxu0 0.0
    %2406 = vmatprep.subr.mxu0 0.0
    %2407 = vmatpush1.msra.mxu0 0.0
    %2408 = vmatprep.subr.mxu0 0.0
    %2409 = vmatpush1.msra.mxu0 0.0
    %2410 = vmatprep.subr.mxu0 0.0
    %2411 = vmatpush1.msra.mxu0 0.0
    %2412 = vmatprep.subr.mxu0 0.0
    %2413 = vmatpush1.msra.mxu0 0.0
    %2414 = vmatprep.subr.mxu0 0.0
    %2415 = vmatpush1.msra.mxu0 0.0
    %2416 = vmatprep.subr.mxu0 0.0
    %2417 = vmatpush1.msra.mxu0 0.0
    %2418 = vmatprep.subr.mxu0 0.0
    %2419 = vmatpush1.msra.mxu0 0.0
    %2420 = vmatprep.subr.mxu0 0.0
    %2421 = vmatpush1.msra.mxu0 0.0
    %2422 = vmatprep.subr.mxu0 0.0
    %2423 = vmatpush1.msra.mxu0 0.0
    %2424 = vmatprep.subr.mxu0 0.0
    %2425 = vmatpush1.msra.mxu0 0.0
    %2426 = vmatprep.subr.mxu0 0.0
    %2427 = vmatpush1.msra.mxu0 0.0
    %2428 = vmatprep.subr.mxu0 0.0
    %2429 = vmatpush1.msra.mxu0 0.0
    %2430 = vmatprep.subr.mxu0 0.0
    %2431 = vmatpush1.msra.mxu0 0.0
    %2432 = vmatprep.subr.mxu0 0.0
    %2433 = vmatpush1.msra.mxu0 0.0
    %2434 = vmatprep.subr.mxu0 0.0
    %2435 = vmatpush1.msra.mxu0 0.0
    %2436 = vmatprep.subr.mxu0 0.0
    %2437 = vmatpush1.msra.mxu0 0.0
    %2438 = vmatprep.subr.mxu0 0.0
    %2439 = vmatpush1.msra.mxu0 0.0
    %2440 = vmatprep.mubr.f32.mxu0 0.0
    %2441 = vmatmul.mubr.f32.gmra.mrb[0].mxu0 %v1742
    %v2442 = vpop.f32.mrb[0].mxu0
    %v2443 = vadd.f32 %v1724, %v2442
    %v2444 = vpop.f32.mrb[0].mxu0
    %v2445 = vadd.f32 %v1724, %v2444
    %2446 = vmatprep.mubr.f32.mxu0 0.0
    %2447 = vmatmul.mubr.f32.gmra.mrb[0].mxu0 %v1745
    %v2448 = vpop.f32.mrb[0].mxu0
    %v2449 = vadd.f32 %v1729, %v2448
    %v2450 = vpop.f32.mrb[0].mxu0
    %v2451 = vadd.f32 %v1729, %v2450
    %2452 = vmatprep.mubr.f32.mxu0 0.0
    %2453 = vmatmul.mubr.f32.gmra.mrb[0].mxu0 %v1748
    %v2454 = vpop.f32.mrb[0].mxu0
    %v2455 = vadd.f32 %v1734, %v2454
    %v2456 = vpop.f32.mrb[0].mxu0
    %v2457 = vadd.f32 %v1734, %v2456
    %2458 = vmatprep.mubr.f32.mxu0 0.0
    %2459 = vmatmul.mubr.f32.gmra.mrb[0].mxu0 %v1751
    %v2460 = vpop.f32.mrb[0].mxu0
    %v2461 = vadd.f32 %v1739, %v2460
    %v2462 = vpop.f32.mrb[0].mxu0
    %v2463 = vadd.f32 %v1739, %v2462
    %2464 = vdwg.mxu0
    %v2465 = vadd.f32 %v1820, %v1826
    %v2466 = vadd.f32 %v2465, %v1832
    %v2467 = vadd.f32 %v2466, %v1838
    %v2468 = vrot.slane %v2467, 4
    %v2469 = vadd.f32 %v2467, %v2468
    %v2470 = vrot.slane %v2469, 2
    %v2471 = vadd.f32 %v2469, %v2470
    %v2472 = vrot.slane %v2471, 1
    %v2473 = vadd.f32 %v2471, %v2472
    %v2474 = vadd.f32 %v1822, %v1828
    %v2475 = vadd.f32 %v2474, %v1834
    %v2476 = vadd.f32 %v2475, %v1840
    %v2477 = vrot.slane %v2476, 4
    %v2478 = vadd.f32 %v2476, %v2477
    %v2479 = vrot.slane %v2478, 2
    %v2480 = vadd.f32 %v2478, %v2479
    %v2481 = vrot.slane %v2480, 1
    %v2482 = vadd.f32 %v2480, %v2481
    %v2483 = vadd.f32 %v1909, %v1915
    %v2484 = vadd.f32 %v2483, %v1921
    %v2485 = vadd.f32 %v2484, %v1927
    %v2486 = vrot.slane %v2485, 4
    %v2487 = vadd.f32 %v2485, %v2486
    %v2488 = vrot.slane %v2487, 2
    %v2489 = vadd.f32 %v2487, %v2488
    %v2490 = vrot.slane %v2489, 1
    %v2491 = vadd.f32 %v2489, %v2490
    %v2492 = vadd.f32 %v1911, %v1917
    %v2493 = vadd.f32 %v2492, %v1923
    %v2494 = vadd.f32 %v2493, %v1929
    %v2495 = vrot.slane %v2494, 4
    %v2496 = vadd.f32 %v2494, %v2495
    %v2497 = vrot.slane %v2496, 2
    %v2498 = vadd.f32 %v2496, %v2497
    %v2499 = vrot.slane %v2498, 1
    %v2500 = vadd.f32 %v2498, %v2499
    %v2501 = vadd.f32 %v1998, %v2004
    %v2502 = vadd.f32 %v2501, %v2010
    %v2503 = vadd.f32 %v2502, %v2016
    %v2504 = vrot.slane %v2503, 4
    %v2505 = vadd.f32 %v2503, %v2504
    %v2506 = vrot.slane %v2505, 2
    %v2507 = vadd.f32 %v2505, %v2506
    %v2508 = vrot.slane %v2507, 1
    %v2509 = vadd.f32 %v2507, %v2508
    %v2510 = vadd.f32 %v2000, %v2006
    %v2511 = vadd.f32 %v2510, %v2012
    %v2512 = vadd.f32 %v2511, %v2018
    %v2513 = vrot.slane %v2512, 4
    %v2514 = vadd.f32 %v2512, %v2513
    %v2515 = vrot.slane %v2514, 2
    %v2516 = vadd.f32 %v2514, %v2515
    %v2517 = vrot.slane %v2516, 1
    %v2518 = vadd.f32 %v2516, %v2517
    %v2519 = vadd.f32 %v2087, %v2093
    %v2520 = vadd.f32 %v2519, %v2099
    %v2521 = vadd.f32 %v2520, %v2105
    %v2522 = vrot.slane %v2521, 4
    %v2523 = vadd.f32 %v2521, %v2522
    %v2524 = vrot.slane %v2523, 2
    %v2525 = vadd.f32 %v2523, %v2524
    %v2526 = vrot.slane %v2525, 1
    %v2527 = vadd.f32 %v2525, %v2526
    %v2528 = vadd.f32 %v2089, %v2095
    %v2529 = vadd.f32 %v2528, %v2101
    %v2530 = vadd.f32 %v2529, %v2107
    %v2531 = vrot.slane %v2530, 4
    %v2532 = vadd.f32 %v2530, %v2531
    %v2533 = vrot.slane %v2532, 2
    %v2534 = vadd.f32 %v2532, %v2533
    %v2535 = vrot.slane %v2534, 1
    %v2536 = vadd.f32 %v2534, %v2535
    %v2537 = vadd.f32 %v2176, %v2182
    %v2538 = vadd.f32 %v2537, %v2188
    %v2539 = vadd.f32 %v2538, %v2194
    %v2540 = vrot.slane %v2539, 4
    %v2541 = vadd.f32 %v2539, %v2540
    %v2542 = vrot.slane %v2541, 2
    %v2543 = vadd.f32 %v2541, %v2542
    %v2544 = vrot.slane %v2543, 1
    %v2545 = vadd.f32 %v2543, %v2544
    %v2546 = vadd.f32 %v2178, %v2184
    %v2547 = vadd.f32 %v2546, %v2190
    %v2548 = vadd.f32 %v2547, %v2196
    %v2549 = vrot.slane %v2548, 4
    %v2550 = vadd.f32 %v2548, %v2549
    %v2551 = vrot.slane %v2550, 2
    %v2552 = vadd.f32 %v2550, %v2551
    %v2553 = vrot.slane %v2552, 1
    %v2554 = vadd.f32 %v2552, %v2553
    %v2555 = vadd.f32 %v2265, %v2271
    %v2556 = vadd.f32 %v2555, %v2277
    %v2557 = vadd.f32 %v2556, %v2283
    %v2558 = vrot.slane %v2557, 4
    %v2559 = vadd.f32 %v2557, %v2558
    %v2560 = vrot.slane %v2559, 2
    %v2561 = vadd.f32 %v2559, %v2560
    %v2562 = vrot.slane %v2561, 1
    %v2563 = vadd.f32 %v2561, %v2562
    %v2564 = vadd.f32 %v2267, %v2273
    %v2565 = vadd.f32 %v2564, %v2279
    %v2566 = vadd.f32 %v2565, %v2285
    %v2567 = vrot.slane %v2566, 4
    %v2568 = vadd.f32 %v2566, %v2567
    %v2569 = vrot.slane %v2568, 2
    %v2570 = vadd.f32 %v2568, %v2569
    %v2571 = vrot.slane %v2570, 1
    %v2572 = vadd.f32 %v2570, %v2571
    %v2573 = vadd.f32 %v2354, %v2360
    %v2574 = vadd.f32 %v2573, %v2366
    %v2575 = vadd.f32 %v2574, %v2372
    %v2576 = vrot.slane %v2575, 4
    %v2577 = vadd.f32 %v2575, %v2576
    %v2578 = vrot.slane %v2577, 2
    %v2579 = vadd.f32 %v2577, %v2578
    %v2580 = vrot.slane %v2579, 1
    %v2581 = vadd.f32 %v2579, %v2580
    %v2582 = vadd.f32 %v2356, %v2362
    %v2583 = vadd.f32 %v2582, %v2368
    %v2584 = vadd.f32 %v2583, %v2374
    %v2585 = vrot.slane %v2584, 4
    %v2586 = vadd.f32 %v2584, %v2585
    %v2587 = vrot.slane %v2586, 2
    %v2588 = vadd.f32 %v2586, %v2587
    %v2589 = vrot.slane %v2588, 1
    %v2590 = vadd.f32 %v2588, %v2589
    %v2591 = vadd.f32 %v2443, %v2449
    %v2592 = vadd.f32 %v2591, %v2455
    %v2593 = vadd.f32 %v2592, %v2461
    %v2594 = vrot.slane %v2593, 4
    %v2595 = vadd.f32 %v2593, %v2594
    %v2596 = vrot.slane %v2595, 2
    %v2597 = vadd.f32 %v2595, %v2596
    %v2598 = vrot.slane %v2597, 1
    %v2599 = vadd.f32 %v2597, %v2598
    %v2600 = vadd.f32 %v2445, %v2451
    %v2601 = vadd.f32 %v2600, %v2457
    %v2602 = vadd.f32 %v2601, %v2463
    %v2603 = vrot.slane %v2602, 4
    %v2604 = vadd.f32 %v2602, %v2603
    %v2605 = vrot.slane %v2604, 2
    %v2606 = vadd.f32 %v2604, %v2605
    %v2607 = vrot.slane %v2606, 1
    %v2608 = vadd.f32 %v2606, %v2607
    %v2609 = vmul.f32 %v2473, 0.03125
    %v2610 = vmul.f32 %v2482, 0.03125
    %v2611 = vmul.f32 %v2491, 0.03125
    %v2612 = vmul.f32 %v2500, 0.03125
    %v2613 = vmul.f32 %v2509, 0.03125
    %v2614 = vmul.f32 %v2518, 0.03125
    %v2615 = vmul.f32 %v2527, 0.03125
    %v2616 = vmul.f32 %v2536, 0.03125
    %v2617 = vmul.f32 %v2545, 0.03125
    %v2618 = vmul.f32 %v2554, 0.03125
    %v2619 = vmul.f32 %v2563, 0.03125
    %v2620 = vmul.f32 %v2572, 0.03125
    %v2621 = vmul.f32 %v2581, 0.03125
    %v2622 = vmul.f32 %v2590, 0.03125
    %v2623 = vmul.f32 %v2599, 0.03125
    %v2624 = vmul.f32 %v2608, 0.03125
    %v2625 = vsub.f32 %v1820, %v2609
    %v2626 = vsub.f32 %v1822, %v2610
    %v2627 = vsub.f32 %v1909, %v2611
    %v2628 = vsub.f32 %v1911, %v2612
    %v2629 = vsub.f32 %v1998, %v2613
    %v2630 = vsub.f32 %v2000, %v2614
    %v2631 = vsub.f32 %v2087, %v2615
    %v2632 = vsub.f32 %v2089, %v2616
    %v2633 = vsub.f32 %v2176, %v2617
    %v2634 = vsub.f32 %v2178, %v2618
    %v2635 = vsub.f32 %v2265, %v2619
    %v2636 = vsub.f32 %v2267, %v2620
    %v2637 = vsub.f32 %v2354, %v2621
    %v2638 = vsub.f32 %v2356, %v2622
    %v2639 = vsub.f32 %v2443, %v2623
    %v2640 = vsub.f32 %v2445, %v2624
    %v2641 = vsub.f32 %v1826, %v2609
    %v2642 = vsub.f32 %v1828, %v2610
    %v2643 = vsub.f32 %v1915, %v2611
    %v2644 = vsub.f32 %v1917, %v2612
    %v2645 = vsub.f32 %v2004, %v2613
    %v2646 = vsub.f32 %v2006, %v2614
    %v2647 = vsub.f32 %v2093, %v2615
    %v2648 = vsub.f32 %v2095, %v2616
    %v2649 = vsub.f32 %v2182, %v2617
    %v2650 = vsub.f32 %v2184, %v2618
    %v2651 = vsub.f32 %v2271, %v2619
    %v2652 = vsub.f32 %v2273, %v2620
    %v2653 = vsub.f32 %v2360, %v2621
    %v2654 = vsub.f32 %v2362, %v2622
    %v2655 = vsub.f32 %v2449, %v2623
    %v2656 = vsub.f32 %v2451, %v2624
    %v2657 = vsub.f32 %v1832, %v2609
    %v2658 = vsub.f32 %v1834, %v2610
    %v2659 = vsub.f32 %v1921, %v2611
    %v2660 = vsub.f32 %v1923, %v2612
    %v2661 = vsub.f32 %v2010, %v2613
    %v2662 = vsub.f32 %v2012, %v2614
    %v2663 = vsub.f32 %v2099, %v2615
    %v2664 = vsub.f32 %v2101, %v2616
    %v2665 = vsub.f32 %v2188, %v2617
    %v2666 = vsub.f32 %v2190, %v2618
    %v2667 = vsub.f32 %v2277, %v2619
    %v2668 = vsub.f32 %v2279, %v2620
    %v2669 = vsub.f32 %v2366, %v2621
    %v2670 = vsub.f32 %v2368, %v2622
    %v2671 = vsub.f32 %v2455, %v2623
    %v2672 = vsub.f32 %v2457, %v2624
    %v2673 = vsub.f32 %v1838, %v2609
    %v2674 = vsub.f32 %v1840, %v2610
    %v2675 = vsub.f32 %v1927, %v2611
    %v2676 = vsub.f32 %v1929, %v2612
    %v2677 = vsub.f32 %v2016, %v2613
    %v2678 = vsub.f32 %v2018, %v2614
    %v2679 = vsub.f32 %v2105, %v2615
    %v2680 = vsub.f32 %v2107, %v2616
    %v2681 = vsub.f32 %v2194, %v2617
    %v2682 = vsub.f32 %v2196, %v2618
    %v2683 = vsub.f32 %v2283, %v2619
    %v2684 = vsub.f32 %v2285, %v2620
    %v2685 = vsub.f32 %v2372, %v2621
    %v2686 = vsub.f32 %v2374, %v2622
    %v2687 = vsub.f32 %v2461, %v2623
    %v2688 = vsub.f32 %v2463, %v2624
    %v2689 = vmul.f32 %v2625, %v2625
    %v2690 = vmul.f32 %v2626, %v2626
    %v2691 = vmul.f32 %v2627, %v2627
    %v2692 = vmul.f32 %v2628, %v2628
    %v2693 = vmul.f32 %v2629, %v2629
    %v2694 = vmul.f32 %v2630, %v2630
    %v2695 = vmul.f32 %v2631, %v2631
    %v2696 = vmul.f32 %v2632, %v2632
    %v2697 = vmul.f32 %v2633, %v2633
    %v2698 = vmul.f32 %v2634, %v2634
    %v2699 = vmul.f32 %v2635, %v2635
    %v2700 = vmul.f32 %v2636, %v2636
    %v2701 = vmul.f32 %v2637, %v2637
    %v2702 = vmul.f32 %v2638, %v2638
    %v2703 = vmul.f32 %v2639, %v2639
    %v2704 = vmul.f32 %v2640, %v2640
    %v2705 = vmul.f32 %v2641, %v2641
    %v2706 = vmul.f32 %v2642, %v2642
    %v2707 = vmul.f32 %v2643, %v2643
    %v2708 = vmul.f32 %v2644, %v2644
    %v2709 = vmul.f32 %v2645, %v2645
    %v2710 = vmul.f32 %v2646, %v2646
    %v2711 = vmul.f32 %v2647, %v2647
    %v2712 = vmul.f32 %v2648, %v2648
    %v2713 = vmul.f32 %v2649, %v2649
    %v2714 = vmul.f32 %v2650, %v2650
    %v2715 = vmul.f32 %v2651, %v2651
    %v2716 = vmul.f32 %v2652, %v2652
    %v2717 = vmul.f32 %v2653, %v2653
    %v2718 = vmul.f32 %v2654, %v2654
    %v2719 = vmul.f32 %v2655, %v2655
    %v2720 = vmul.f32 %v2656, %v2656
    %v2721 = vmul.f32 %v2657, %v2657
    %v2722 = vmul.f32 %v2658, %v2658
    %v2723 = vmul.f32 %v2659, %v2659
    %v2724 = vmul.f32 %v2660, %v2660
    %v2725 = vmul.f32 %v2661, %v2661
    %v2726 = vmul.f32 %v2662, %v2662
    %v2727 = vmul.f32 %v2663, %v2663
    %v2728 = vmul.f32 %v2664, %v2664
    %v2729 = vmul.f32 %v2665, %v2665
    %v2730 = vmul.f32 %v2666, %v2666
    %v2731 = vmul.f32 %v2667, %v2667
    %v2732 = vmul.f32 %v2668, %v2668
    %v2733 = vmul.f32 %v2669, %v2669
    %v2734 = vmul.f32 %v2670, %v2670
    %v2735 = vmul.f32 %v2671, %v2671
    %v2736 = vmul.f32 %v2672, %v2672
    %v2737 = vmul.f32 %v2673, %v2673
    %v2738 = vmul.f32 %v2674, %v2674
    %v2739 = vmul.f32 %v2675, %v2675
    %v2740 = vmul.f32 %v2676, %v2676
    %v2741 = vmul.f32 %v2677, %v2677
    %v2742 = vmul.f32 %v2678, %v2678
    %v2743 = vmul.f32 %v2679, %v2679
    %v2744 = vmul.f32 %v2680, %v2680
    %v2745 = vmul.f32 %v2681, %v2681
    %v2746 = vmul.f32 %v2682, %v2682
    %v2747 = vmul.f32 %v2683, %v2683
    %v2748 = vmul.f32 %v2684, %v2684
    %v2749 = vmul.f32 %v2685, %v2685
    %v2750 = vmul.f32 %v2686, %v2686
    %v2751 = vmul.f32 %v2687, %v2687
    %v2752 = vmul.f32 %v2688, %v2688
    %v2753 = vadd.f32 %v2689, %v2705
    %v2754 = vadd.f32 %v2753, %v2721
    %v2755 = vadd.f32 %v2754, %v2737
    %v2756 = vrot.slane %v2755, 4
    %v2757 = vadd.f32 %v2755, %v2756
    %v2758 = vrot.slane %v2757, 2
    %v2759 = vadd.f32 %v2757, %v2758
    %v2760 = vrot.slane %v2759, 1
    %v2761 = vadd.f32 %v2759, %v2760
    %v2762 = vadd.f32 %v2690, %v2706
    %v2763 = vadd.f32 %v2762, %v2722
    %v2764 = vadd.f32 %v2763, %v2738
    %v2765 = vrot.slane %v2764, 4
    %v2766 = vadd.f32 %v2764, %v2765
    %v2767 = vrot.slane %v2766, 2
    %v2768 = vadd.f32 %v2766, %v2767
    %v2769 = vrot.slane %v2768, 1
    %v2770 = vadd.f32 %v2768, %v2769
    %v2771 = vadd.f32 %v2691, %v2707
    %v2772 = vadd.f32 %v2771, %v2723
    %v2773 = vadd.f32 %v2772, %v2739
    %v2774 = vrot.slane %v2773, 4
    %v2775 = vadd.f32 %v2773, %v2774
    %v2776 = vrot.slane %v2775, 2
    %v2777 = vadd.f32 %v2775, %v2776
    %v2778 = vrot.slane %v2777, 1
    %v2779 = vadd.f32 %v2777, %v2778
    %v2780 = vadd.f32 %v2692, %v2708
    %v2781 = vadd.f32 %v2780, %v2724
    %v2782 = vadd.f32 %v2781, %v2740
    %v2783 = vrot.slane %v2782, 4
    %v2784 = vadd.f32 %v2782, %v2783
    %v2785 = vrot.slane %v2784, 2
    %v2786 = vadd.f32 %v2784, %v2785
    %v2787 = vrot.slane %v2786, 1
    %v2788 = vadd.f32 %v2786, %v2787
    %v2789 = vadd.f32 %v2693, %v2709
    %v2790 = vadd.f32 %v2789, %v2725
    %v2791 = vadd.f32 %v2790, %v2741
    %v2792 = vrot.slane %v2791, 4
    %v2793 = vadd.f32 %v2791, %v2792
    %v2794 = vrot.slane %v2793, 2
    %v2795 = vadd.f32 %v2793, %v2794
    %v2796 = vrot.slane %v2795, 1
    %v2797 = vadd.f32 %v2795, %v2796
    %v2798 = vadd.f32 %v2694, %v2710
    %v2799 = vadd.f32 %v2798, %v2726
    %v2800 = vadd.f32 %v2799, %v2742
    %v2801 = vrot.slane %v2800, 4
    %v2802 = vadd.f32 %v2800, %v2801
    %v2803 = vrot.slane %v2802, 2
    %v2804 = vadd.f32 %v2802, %v2803
    %v2805 = vrot.slane %v2804, 1
    %v2806 = vadd.f32 %v2804, %v2805
    %v2807 = vadd.f32 %v2695, %v2711
    %v2808 = vadd.f32 %v2807, %v2727
    %v2809 = vadd.f32 %v2808, %v2743
    %v2810 = vrot.slane %v2809, 4
    %v2811 = vadd.f32 %v2809, %v2810
    %v2812 = vrot.slane %v2811, 2
    %v2813 = vadd.f32 %v2811, %v2812
    %v2814 = vrot.slane %v2813, 1
    %v2815 = vadd.f32 %v2813, %v2814
    %v2816 = vadd.f32 %v2696, %v2712
    %v2817 = vadd.f32 %v2816, %v2728
    %v2818 = vadd.f32 %v2817, %v2744
    %v2819 = vrot.slane %v2818, 4
    %v2820 = vadd.f32 %v2818, %v2819
    %v2821 = vrot.slane %v2820, 2
    %v2822 = vadd.f32 %v2820, %v2821
    %v2823 = vrot.slane %v2822, 1
    %v2824 = vadd.f32 %v2822, %v2823
    %v2825 = vadd.f32 %v2697, %v2713
    %v2826 = vadd.f32 %v2825, %v2729
    %v2827 = vadd.f32 %v2826, %v2745
    %v2828 = vrot.slane %v2827, 4
    %v2829 = vadd.f32 %v2827, %v2828
    %v2830 = vrot.slane %v2829, 2
    %v2831 = vadd.f32 %v2829, %v2830
    %v2832 = vrot.slane %v2831, 1
    %v2833 = vadd.f32 %v2831, %v2832
    %v2834 = vadd.f32 %v2698, %v2714
    %v2835 = vadd.f32 %v2834, %v2730
    %v2836 = vadd.f32 %v2835, %v2746
    %v2837 = vrot.slane %v2836, 4
    %v2838 = vadd.f32 %v2836, %v2837
    %v2839 = vrot.slane %v2838, 2
    %v2840 = vadd.f32 %v2838, %v2839
    %v2841 = vrot.slane %v2840, 1
    %v2842 = vadd.f32 %v2840, %v2841
    %v2843 = vadd.f32 %v2699, %v2715
    %v2844 = vadd.f32 %v2843, %v2731
    %v2845 = vadd.f32 %v2844, %v2747
    %v2846 = vrot.slane %v2845, 4
    %v2847 = vadd.f32 %v2845, %v2846
    %v2848 = vrot.slane %v2847, 2
    %v2849 = vadd.f32 %v2847, %v2848
    %v2850 = vrot.slane %v2849, 1
    %v2851 = vadd.f32 %v2849, %v2850
    %v2852 = vadd.f32 %v2700, %v2716
    %v2853 = vadd.f32 %v2852, %v2732
    %v2854 = vadd.f32 %v2853, %v2748
    %v2855 = vrot.slane %v2854, 4
    %v2856 = vadd.f32 %v2854, %v2855
    %v2857 = vrot.slane %v2856, 2
    %v2858 = vadd.f32 %v2856, %v2857
    %v2859 = vrot.slane %v2858, 1
    %v2860 = vadd.f32 %v2858, %v2859
    %v2861 = vadd.f32 %v2701, %v2717
    %v2862 = vadd.f32 %v2861, %v2733
    %v2863 = vadd.f32 %v2862, %v2749
    %v2864 = vrot.slane %v2863, 4
    %v2865 = vadd.f32 %v2863, %v2864
    %v2866 = vrot.slane %v2865, 2
    %v2867 = vadd.f32 %v2865, %v2866
    %v2868 = vrot.slane %v2867, 1
    %v2869 = vadd.f32 %v2867, %v2868
    %v2870 = vadd.f32 %v2702, %v2718
    %v2871 = vadd.f32 %v2870, %v2734
    %v2872 = vadd.f32 %v2871, %v2750
    %v2873 = vrot.slane %v2872, 4
    %v2874 = vadd.f32 %v2872, %v2873
    %v2875 = vrot.slane %v2874, 2
    %v2876 = vadd.f32 %v2874, %v2875
    %v2877 = vrot.slane %v2876, 1
    %v2878 = vadd.f32 %v2876, %v2877
    %v2879 = vadd.f32 %v2703, %v2719
    %v2880 = vadd.f32 %v2879, %v2735
    %v2881 = vadd.f32 %v2880, %v2751
    %v2882 = vrot.slane %v2881, 4
    %v2883 = vadd.f32 %v2881, %v2882
    %v2884 = vrot.slane %v2883, 2
    %v2885 = vadd.f32 %v2883, %v2884
    %v2886 = vrot.slane %v2885, 1
    %v2887 = vadd.f32 %v2885, %v2886
    %v2888 = vadd.f32 %v2704, %v2720
    %v2889 = vadd.f32 %v2888, %v2736
    %v2890 = vadd.f32 %v2889, %v2752
    %v2891 = vrot.slane %v2890, 4
    %v2892 = vadd.f32 %v2890, %v2891
    %v2893 = vrot.slane %v2892, 2
    %v2894 = vadd.f32 %v2892, %v2893
    %v2895 = vrot.slane %v2894, 1
    %v2896 = vadd.f32 %v2894, %v2895
    %v2897 = vmul.f32 %v2761, 0.03125
    %v2898 = vmul.f32 %v2770, 0.03125
    %v2899 = vmul.f32 %v2779, 0.03125
    %v2900 = vmul.f32 %v2788, 0.03125
    %v2901 = vmul.f32 %v2797, 0.03125
    %v2902 = vmul.f32 %v2806, 0.03125
    %v2903 = vmul.f32 %v2815, 0.03125
    %v2904 = vmul.f32 %v2824, 0.03125
    %v2905 = vmul.f32 %v2833, 0.03125
    %v2906 = vmul.f32 %v2842, 0.03125
    %v2907 = vmul.f32 %v2851, 0.03125
    %v2908 = vmul.f32 %v2860, 0.03125
    %v2909 = vmul.f32 %v2869, 0.03125
    %v2910 = vmul.f32 %v2878, 0.03125
    %v2911 = vmul.f32 %v2887, 0.03125
    %v2912 = vmul.f32 %v2896, 0.03125
    %v2913 = vadd.f32 %v2897, 1e-05
    %v2914 = vadd.f32 %v2898, 1e-05
    %v2915 = vadd.f32 %v2899, 1e-05
    %v2916 = vadd.f32 %v2900, 1e-05
    %v2917 = vadd.f32 %v2901, 1e-05
    %v2918 = vadd.f32 %v2902, 1e-05
    %v2919 = vadd.f32 %v2903, 1e-05
    %v2920 = vadd.f32 %v2904, 1e-05
    %v2921 = vadd.f32 %v2905, 1e-05
    %v2922 = vadd.f32 %v2906, 1e-05
    %v2923 = vadd.f32 %v2907, 1e-05
    %v2924 = vadd.f32 %v2908, 1e-05
    %v2925 = vadd.f32 %v2909, 1e-05
    %v2926 = vadd.f32 %v2910, 1e-05
    %v2927 = vadd.f32 %v2911, 1e-05
    %v2928 = vadd.f32 %v2912, 1e-05
    %v2929 = vrsqrt.pop %v2913
    %v2930 = vrsqrt.pop %v2914
    %v2931 = vrsqrt.pop %v2915
    %v2932 = vrsqrt.pop %v2916
    %v2933 = vrsqrt.pop %v2917
    %v2934 = vrsqrt.pop %v2918
    %v2935 = vrsqrt.pop %v2919
    %v2936 = vrsqrt.pop %v2920
    %v2937 = vrsqrt.pop %v2921
    %v2938 = vrsqrt.pop %v2922
    %v2939 = vrsqrt.pop %v2923
    %v2940 = vrsqrt.pop %v2924
    %v2941 = vrsqrt.pop %v2925
    %v2942 = vrsqrt.pop %v2926
    %v2943 = vrsqrt.pop %v2927
    %v2944 = vrsqrt.pop %v2928
    %v2945 = vmul.f32 %v2625, %v2929
    %v2946 = vmul.f32 %v2626, %v2930
    %v2947 = vmul.f32 %v2627, %v2931
    %v2948 = vmul.f32 %v2628, %v2932
    %v2949 = vmul.f32 %v2629, %v2933
    %v2950 = vmul.f32 %v2630, %v2934
    %v2951 = vmul.f32 %v2631, %v2935
    %v2952 = vmul.f32 %v2632, %v2936
    %v2953 = vmul.f32 %v2633, %v2937
    %v2954 = vmul.f32 %v2634, %v2938
    %v2955 = vmul.f32 %v2635, %v2939
    %v2956 = vmul.f32 %v2636, %v2940
    %v2957 = vmul.f32 %v2637, %v2941
    %v2958 = vmul.f32 %v2638, %v2942
    %v2959 = vmul.f32 %v2639, %v2943
    %v2960 = vmul.f32 %v2640, %v2944
    %v2961 = vmul.f32 %v2641, %v2929
    %v2962 = vmul.f32 %v2642, %v2930
    %v2963 = vmul.f32 %v2643, %v2931
    %v2964 = vmul.f32 %v2644, %v2932
    %v2965 = vmul.f32 %v2645, %v2933
    %v2966 = vmul.f32 %v2646, %v2934
    %v2967 = vmul.f32 %v2647, %v2935
    %v2968 = vmul.f32 %v2648, %v2936
    %v2969 = vmul.f32 %v2649, %v2937
    %v2970 = vmul.f32 %v2650, %v2938
    %v2971 = vmul.f32 %v2651, %v2939
    %v2972 = vmul.f32 %v2652, %v2940
    %v2973 = vmul.f32 %v2653, %v2941
    %v2974 = vmul.f32 %v2654, %v2942
    %v2975 = vmul.f32 %v2655, %v2943
    %v2976 = vmul.f32 %v2656, %v2944
    %v2977 = vmul.f32 %v2657, %v2929
    %v2978 = vmul.f32 %v2658, %v2930
    %v2979 = vmul.f32 %v2659, %v2931
    %v2980 = vmul.f32 %v2660, %v2932
    %v2981 = vmul.f32 %v2661, %v2933
    %v2982 = vmul.f32 %v2662, %v2934
    %v2983 = vmul.f32 %v2663, %v2935
    %v2984 = vmul.f32 %v2664, %v2936
    %v2985 = vmul.f32 %v2665, %v2937
    %v2986 = vmul.f32 %v2666, %v2938
    %v2987 = vmul.f32 %v2667, %v2939
    %v2988 = vmul.f32 %v2668, %v2940
    %v2989 = vmul.f32 %v2669, %v2941
    %v2990 = vmul.f32 %v2670, %v2942
    %v2991 = vmul.f32 %v2671, %v2943
    %v2992 = vmul.f32 %v2672, %v2944
    %v2993 = vmul.f32 %v2673, %v2929
    %v2994 = vmul.f32 %v2674, %v2930
    %v2995 = vmul.f32 %v2675, %v2931
    %v2996 = vmul.f32 %v2676, %v2932
    %v2997 = vmul.f32 %v2677, %v2933
    %v2998 = vmul.f32 %v2678, %v2934
    %v2999 = vmul.f32 %v2679, %v2935
    %v3000 = vmul.f32 %v2680, %v2936
    %v3001 = vmul.f32 %v2681, %v2937
    %v3002 = vmul.f32 %v2682, %v2938
    %v3003 = vmul.f32 %v2683, %v2939
    %v3004 = vmul.f32 %v2684, %v2940
    %v3005 = vmul.f32 %v2685, %v2941
    %v3006 = vmul.f32 %v2686, %v2942
    %v3007 = vmul.f32 %v2687, %v2943
    %v3008 = vmul.f32 %v2688, %v2944
    %v3009 = vld [vmem:[%s7] sm:$0xff]
    %v3010 = vld [vmem:[%s7 + $0x8] sm:$0xff]
    %v3011 = vld [vmem:[%s7 + $0x10] sm:$0xff]
    %v3012 = vld [vmem:[%s7 + $0x18] sm:$0xff]
    %3014 = vset.pattern.permute.xlu0 0
    %3015 = vperm.xlu0 %3014, %v3009
    %v3016 = vpop.permute.xlu0 %3015
    %3019 = vset.pattern.permute.xlu0 0
    %3020 = vperm.xlu0 %3019, %v3010
    %v3021 = vpop.permute.xlu0 %3020
    %3024 = vset.pattern.permute.xlu0 0
    %3025 = vperm.xlu0 %3024, %v3011
    %v3026 = vpop.permute.xlu0 %3025
    %3029 = vset.pattern.permute.xlu0 0
    %3030 = vperm.xlu0 %3029, %v3012
    %v3031 = vpop.permute.xlu0 %3030
    %v3033 = vmul.f32 %v2945, %v3016
    %v3034 = vmul.f32 %v2946, %v3016
    %v3035 = vmul.f32 %v2947, %v3016
    %v3036 = vmul.f32 %v2948, %v3016
    %v3037 = vmul.f32 %v2949, %v3016
    %v3038 = vmul.f32 %v2950, %v3016
    %v3039 = vmul.f32 %v2951, %v3016
    %v3040 = vmul.f32 %v2952, %v3016
    %v3041 = vmul.f32 %v2953, %v3016
    %v3042 = vmul.f32 %v2954, %v3016
    %v3043 = vmul.f32 %v2955, %v3016
    %v3044 = vmul.f32 %v2956, %v3016
    %v3045 = vmul.f32 %v2957, %v3016
    %v3046 = vmul.f32 %v2958, %v3016
    %v3047 = vmul.f32 %v2959, %v3016
    %v3048 = vmul.f32 %v2960, %v3016
    %v3049 = vmul.f32 %v2961, %v3021
    %v3050 = vmul.f32 %v2962, %v3021
    %v3051 = vmul.f32 %v2963, %v3021
    %v3052 = vmul.f32 %v2964, %v3021
    %v3053 = vmul.f32 %v2965, %v3021
    %v3054 = vmul.f32 %v2966, %v3021
    %v3055 = vmul.f32 %v2967, %v3021
    %v3056 = vmul.f32 %v2968, %v3021
    %v3057 = vmul.f32 %v2969, %v3021
    %v3058 = vmul.f32 %v2970, %v3021
    %v3059 = vmul.f32 %v2971, %v3021
    %v3060 = vmul.f32 %v2972, %v3021
    %v3061 = vmul.f32 %v2973, %v3021
    %v3062 = vmul.f32 %v2974, %v3021
    %v3063 = vmul.f32 %v2975, %v3021
    %v3064 = vmul.f32 %v2976, %v3021
    %v3065 = vmul.f32 %v2977, %v3026
    %v3066 = vmul.f32 %v2978, %v3026
    %v3067 = vmul.f32 %v2979, %v3026
    %v3068 = vmul.f32 %v2980, %v3026
    %v3069 = vmul.f32 %v2981, %v3026
    %v3070 = vmul.f32 %v2982, %v3026
    %v3071 = vmul.f32 %v2983, %v3026
    %v3072 = vmul.f32 %v2984, %v3026
    %v3073 = vmul.f32 %v2985, %v3026
    %v3074 = vmul.f32 %v2986, %v3026
    %v3075 = vmul.f32 %v2987, %v3026
    %v3076 = vmul.f32 %v2988, %v3026
    %v3077 = vmul.f32 %v2989, %v3026
    %v3078 = vmul.f32 %v2990, %v3026
    %v3079 = vmul.f32 %v2991, %v3026
    %v3080 = vmul.f32 %v2992, %v3026
    %v3081 = vmul.f32 %v2993, %v3031
    %v3082 = vmul.f32 %v2994, %v3031
    %v3083 = vmul.f32 %v2995, %v3031
    %v3084 = vmul.f32 %v2996, %v3031
    %v3085 = vmul.f32 %v2997, %v3031
    %v3086 = vmul.f32 %v2998, %v3031
    %v3087 = vmul.f32 %v2999, %v3031
    %v3088 = vmul.f32 %v3000, %v3031
    %v3089 = vmul.f32 %v3001, %v3031
    %v3090 = vmul.f32 %v3002, %v3031
    %v3091 = vmul.f32 %v3003, %v3031
    %v3092 = vmul.f32 %v3004, %v3031
    %v3093 = vmul.f32 %v3005, %v3031
    %v3094 = vmul.f32 %v3006, %v3031
    %v3095 = vmul.f32 %v3007, %v3031
    %v3096 = vmul.f32 %v3008, %v3031
    %v3097 = vld [vmem:[%s8] sm:$0xff]
    %v3098 = vld [vmem:[%s8 + $0x8] sm:$0xff]
    %v3099 = vld [vmem:[%s8 + $0x10] sm:$0xff]
    %v3100 = vld [vmem:[%s8 + $0x18] sm:$0xff]
    %3102 = vset.pattern.permute.xlu0 0
    %3103 = vperm.xlu0 %3102, %v3097
    %v3104 = vpop.permute.xlu0 %3103
    %3107 = vset.pattern.permute.xlu0 0
    %3108 = vperm.xlu0 %3107, %v3098
    %v3109 = vpop.permute.xlu0 %3108
    %3112 = vset.pattern.permute.xlu0 0
    %3113 = vperm.xlu0 %3112, %v3099
    %v3114 = vpop.permute.xlu0 %3113
    %3117 = vset.pattern.permute.xlu0 0
    %3118 = vperm.xlu0 %3117, %v3100
    %v3119 = vpop.permute.xlu0 %3118
    %v3121 = vadd.f32 %v3033, %v3104
    %v3122 = vadd.f32 %v3034, %v3104
    %v3123 = vadd.f32 %v3035, %v3104
    %v3124 = vadd.f32 %v3036, %v3104
    %v3125 = vadd.f32 %v3037, %v3104
    %v3126 = vadd.f32 %v3038, %v3104
    %v3127 = vadd.f32 %v3039, %v3104
    %v3128 = vadd.f32 %v3040, %v3104
    %v3129 = vadd.f32 %v3041, %v3104
    %v3130 = vadd.f32 %v3042, %v3104
    %v3131 = vadd.f32 %v3043, %v3104
    %v3132 = vadd.f32 %v3044, %v3104
    %v3133 = vadd.f32 %v3045, %v3104
    %v3134 = vadd.f32 %v3046, %v3104
    %v3135 = vadd.f32 %v3047, %v3104
    %v3136 = vadd.f32 %v3048, %v3104
    %v3137 = vadd.f32 %v3049, %v3109
    %v3138 = vadd.f32 %v3050, %v3109
    %v3139 = vadd.f32 %v3051, %v3109
    %v3140 = vadd.f32 %v3052, %v3109
    %v3141 = vadd.f32 %v3053, %v3109
    %v3142 = vadd.f32 %v3054, %v3109
    %v3143 = vadd.f32 %v3055, %v3109
    %v3144 = vadd.f32 %v3056, %v3109
    %v3145 = vadd.f32 %v3057, %v3109
    %v3146 = vadd.f32 %v3058, %v3109
    %v3147 = vadd.f32 %v3059, %v3109
    %v3148 = vadd.f32 %v3060, %v3109
    %v3149 = vadd.f32 %v3061, %v3109
    %v3150 = vadd.f32 %v3062, %v3109
    %v3151 = vadd.f32 %v3063, %v3109
    %v3152 = vadd.f32 %v3064, %v3109
    %v3153 = vadd.f32 %v3065, %v3114
    %v3154 = vadd.f32 %v3066, %v3114
    %v3155 = vadd.f32 %v3067, %v3114
    %v3156 = vadd.f32 %v3068, %v3114
    %v3157 = vadd.f32 %v3069, %v3114
    %v3158 = vadd.f32 %v3070, %v3114
    %v3159 = vadd.f32 %v3071, %v3114
    %v3160 = vadd.f32 %v3072, %v3114
    %v3161 = vadd.f32 %v3073, %v3114
    %v3162 = vadd.f32 %v3074, %v3114
    %v3163 = vadd.f32 %v3075, %v3114
    %v3164 = vadd.f32 %v3076, %v3114
    %v3165 = vadd.f32 %v3077, %v3114
    %v3166 = vadd.f32 %v3078, %v3114
    %v3167 = vadd.f32 %v3079, %v3114
    %v3168 = vadd.f32 %v3080, %v3114
    %v3169 = vadd.f32 %v3081, %v3119
    %v3170 = vadd.f32 %v3082, %v3119
    %v3171 = vadd.f32 %v3083, %v3119
    %v3172 = vadd.f32 %v3084, %v3119
    %v3173 = vadd.f32 %v3085, %v3119
    %v3174 = vadd.f32 %v3086, %v3119
    %v3175 = vadd.f32 %v3087, %v3119
    %v3176 = vadd.f32 %v3088, %v3119
    %v3177 = vadd.f32 %v3089, %v3119
    %v3178 = vadd.f32 %v3090, %v3119
    %v3179 = vadd.f32 %v3091, %v3119
    %v3180 = vadd.f32 %v3092, %v3119
    %v3181 = vadd.f32 %v3093, %v3119
    %v3182 = vadd.f32 %v3094, %v3119
    %v3183 = vadd.f32 %v3095, %v3119
    %v3184 = vadd.f32 %v3096, %v3119
    %3185 = vst [vmem:[#allocation5] sm:$0xff] %v3121
    %3186 = vst [vmem:[#allocation5 + $0x8] sm:$0xff] %v3122
    %3187 = vst [vmem:[#allocation5 + $0x10] sm:$0xff] %v3123
    %3188 = vst [vmem:[#allocation5 + $0x18] sm:$0xff] %v3124
    %3189 = vst [vmem:[#allocation5 + $0x20] sm:$0xff] %v3125
    %3190 = vst [vmem:[#allocation5 + $0x28] sm:$0xff] %v3126
    %3191 = vst [vmem:[#allocation5 + $0x30] sm:$0xff] %v3127
    %3192 = vst [vmem:[#allocation5 + $0x38] sm:$0xff] %v3128
    %3193 = vst [vmem:[#allocation5 + $0x40] sm:$0xff] %v3129
    %3194 = vst [vmem:[#allocation5 + $0x48] sm:$0xff] %v3130
    %3195 = vst [vmem:[#allocation5 + $0x50] sm:$0xff] %v3131
    %3196 = vst [vmem:[#allocation5 + $0x58] sm:$0xff] %v3132
    %3197 = vst [vmem:[#allocation5 + $0x60] sm:$0xff] %v3133
    %3198 = vst [vmem:[#allocation5 + $0x68] sm:$0xff] %v3134
    %3199 = vst [vmem:[#allocation5 + $0x70] sm:$0xff] %v3135
    %3200 = vst [vmem:[#allocation5 + $0x78] sm:$0xff] %v3136
    %3201 = vst [vmem:[#allocation5 + $0x80] sm:$0xff] %v3137
    %3202 = vst [vmem:[#allocation5 + $0x88] sm:$0xff] %v3138
    %3203 = vst [vmem:[#allocation5 + $0x90] sm:$0xff] %v3139
    %3204 = vst [vmem:[#allocation5 + $0x98] sm:$0xff] %v3140
    %3205 = vst [vmem:[#allocation5 + $0xa0] sm:$0xff] %v3141
    %3206 = vst [vmem:[#allocation5 + $0xa8] sm:$0xff] %v3142
    %3207 = vst [vmem:[#allocation5 + $0xb0] sm:$0xff] %v3143
    %3208 = vst [vmem:[#allocation5 + $0xb8] sm:$0xff] %v3144
    %3209 = vst [vmem:[#allocation5 + $0xc0] sm:$0xff] %v3145
    %3210 = vst [vmem:[#allocation5 + $0xc8] sm:$0xff] %v3146
    %3211 = vst [vmem:[#allocation5 + $0xd0] sm:$0xff] %v3147
    %3212 = vst [vmem:[#allocation5 + $0xd8] sm:$0xff] %v3148
    %3213 = vst [vmem:[#allocation5 + $0xe0] sm:$0xff] %v3149
    %3214 = vst [vmem:[#allocation5 + $0xe8] sm:$0xff] %v3150
    %3215 = vst [vmem:[#allocation5 + $0xf0] sm:$0xff] %v3151
    %3216 = vst [vmem:[#allocation5 + $0xf8] sm:$0xff] %v3152
    %3217 = vst [vmem:[#allocation5 + $0x100] sm:$0xff] %v3153
    %3218 = vst [vmem:[#allocation5 + $0x108] sm:$0xff] %v3154
    %3219 = vst [vmem:[#allocation5 + $0x110] sm:$0xff] %v3155
    %3220 = vst [vmem:[#allocation5 + $0x118] sm:$0xff] %v3156
    %3221 = vst [vmem:[#allocation5 + $0x120] sm:$0xff] %v3157
    %3222 = vst [vmem:[#allocation5 + $0x128] sm:$0xff] %v3158
    %3223 = vst [vmem:[#allocation5 + $0x130] sm:$0xff] %v3159
    %3224 = vst [vmem:[#allocation5 + $0x138] sm:$0xff] %v3160
    %3225 = vst [vmem:[#allocation5 + $0x140] sm:$0xff] %v3161
    %3226 = vst [vmem:[#allocation5 + $0x148] sm:$0xff] %v3162
    %3227 = vst [vmem:[#allocation5 + $0x150] sm:$0xff] %v3163
    %3228 = vst [vmem:[#allocation5 + $0x158] sm:$0xff] %v3164
    %3229 = vst [vmem:[#allocation5 + $0x160] sm:$0xff] %v3165
    %3230 = vst [vmem:[#allocation5 + $0x168] sm:$0xff] %v3166
    %3231 = vst [vmem:[#allocation5 + $0x170] sm:$0xff] %v3167
    %3232 = vst [vmem:[#allocation5 + $0x178] sm:$0xff] %v3168
    %3233 = vst [vmem:[#allocation5 + $0x180] sm:$0xff] %v3169
    %3234 = vst [vmem:[#allocation5 + $0x188] sm:$0xff] %v3170
    %3235 = vst [vmem:[#allocation5 + $0x190] sm:$0xff] %v3171
    %3236 = vst [vmem:[#allocation5 + $0x198] sm:$0xff] %v3172
    %3237 = vst [vmem:[#allocation5 + $0x1a0] sm:$0xff] %v3173
    %3238 = vst [vmem:[#allocation5 + $0x1a8] sm:$0xff] %v3174
    %3239 = vst [vmem:[#allocation5 + $0x1b0] sm:$0xff] %v3175
    %3240 = vst [vmem:[#allocation5 + $0x1b8] sm:$0xff] %v3176
    %3241 = vst [vmem:[#allocation5 + $0x1c0] sm:$0xff] %v3177
    %3242 = vst [vmem:[#allocation5 + $0x1c8] sm:$0xff] %v3178
    %3243 = vst [vmem:[#allocation5 + $0x1d0] sm:$0xff] %v3179
    %3244 = vst [vmem:[#allocation5 + $0x1d8] sm:$0xff] %v3180
    %3245 = vst [vmem:[#allocation5 + $0x1e0] sm:$0xff] %v3181
    %3246 = vst [vmem:[#allocation5 + $0x1e8] sm:$0xff] %v3182
    %3247 = vst [vmem:[#allocation5 + $0x1f0] sm:$0xff] %v3183
    %3248 = vst [vmem:[#allocation5 + $0x1f8] sm:$0xff] %v3184
    // Predicated region
    $region42: #{tpu_custom_call.1} parent=1 // pred_check
      _
    $region43: #{tpu_custom_call.1} parent=1 // pred_check_branch
      %3250 = sbr.rel (0) target = $region45
    $region44: #{tpu_custom_call.1} parent=1 // pred_region
      %s3252 = ssub.s32 8192, 8192
      %3253 = vsyncadd [#allocation4], %s3252
      %s3254 = sshll.u32 [#allocation5], 4
      %s3255 = int_to_ptr.vmem [resolvable:$true] %s3254
      %3260 = dma.vmem_to_hbm [thread:$0]  %s3255, 8192, %s9, [#allocation4], 2048, 2048, 128
    $region45: #{tpu_custom_call.1} parent=1 // pred_fallthru
      _
    // Predicated region
    $region46: #{tpu_custom_call.1} parent=1 // pred_check
      _
    $region47: #{tpu_custom_call.1} parent=1 // pred_check_branch
      %3262 = sbr.rel (0) target = $region49
    $region48: #{tpu_custom_call.1} parent=1 // pred_region
      %3263 = dma.done [#allocation4], 8192
    $region49: #{tpu_custom_call.1} parent=1 // pred_fallthru
      _
    %3264 = vsyncpa [#allocation3], 1
    %3265 = vsyncpa [#allocation4], 1

</llo_original>
